<compile_context>
chip_gen: v7x
topology: tpu7x:2x2x1
jax: 0.10.0
libtpu: 0.0.40
codegen_flags: <defaults>
</compile_context>

<pallas_src>
import numpy as np
import jax
import jax.numpy as jnp
from jax import lax
from jax.experimental import pallas as pl
from jax.experimental.pallas import tpu as pltpu

# ----------------------------- model config ---------------------------------
IN_CH = 4
OUT_CH = 16           # also the LSTM sequence length after .view(B, Cout, -1)
KSIZE = 3
HIDDEN = 32
NUM_LAYERS = 2
NUM_CLASSES = 10
BATCH = 2
H_IN = W_IN = 6       # conv output 4x4 = 16 spatial == OUT_CH (required by module)

SEQ = OUT_CH                       # LSTM timesteps
CK = IN_CH * KSIZE * KSIZE         # im2col contraction size (36)
P_SP = (H_IN - KSIZE + 1) ** 2     # conv spatial size = LSTM layer-1 features (16)
GL = 4 * HIDDEN                    # 128: all four gates packed in one lane block
SROWS = 8                          # one sublane tile per timestep (batch in rows 0..1)
ROWS = SEQ * SROWS                 # 128
BIAS_COL = BATCH * CK              # column 72: conv bias (pairs with ones-row of patches)
assert GL == 128 and BATCH <= SROWS and NUM_LAYERS == 2

# --- constant-slab row offsets (every section starts on an 8-row boundary) ---
R_WIH1 = 0                         # [P_SP,   128]
R_WHH1 = R_WIH1 + P_SP             # [HIDDEN, 128]
R_B1   = R_WHH1 + HIDDEN           # [1,      128]
R_WIH2 = R_B1 + SROWS              # [HIDDEN, 128]
R_WHH2 = R_WIH2 + HIDDEN           # [HIDDEN, 128]
R_B2   = R_WHH2 + HIDDEN           # [1,      128]
R_WFC  = R_B2 + SROWS              # [HIDDEN, 128]  (cols >= NUM_CLASSES are zero)
R_BFC  = R_WFC + HIDDEN            # [1,      128]
R_ACT  = R_BFC + SROWS             # [3,      128]  tanh-form activation constants
R_CONV = R_ACT + SROWS             # [ROWS,   128]  block-diag conv weights + bias col
SLAB_ROWS = R_CONV + ROWS          # 304

_VMEM = pl.BlockSpec(memory_space=pltpu.MemorySpace.VMEM)


# ----------------------------- fused Pallas kernel ---------------------------
def seqglm_fused_kernel(slab_ref, patches_ref, out_ref):
    f32 = jnp.float32
    w = lambda r, n: slab_ref[r:r + n, :]          # static slices of a VMEM ref: free

    # Constants loaded once (hoisted out of the recurrent loop).
    wih1 = w(R_WIH1, P_SP)        # [16, 128]
    whh1 = w(R_WHH1, HIDDEN)      # [32, 128]
    b1   = w(R_B1, 1)             # [1, 128]
    wih2 = w(R_WIH2, HIDDEN)
    whh2 = w(R_WHH2, HIDDEN)
    b2   = w(R_B2, 1)
    wfc  = w(R_WFC, HIDDEN)       # [32, 128]
    bfc  = w(R_BFC, 1)
    s_v  = w(R_ACT + 0, 1)        # scale: 0.5 on i/f/o lanes, 1.0 on g lanes
    m_v  = w(R_ACT + 1, 1)        # mul:   0.5 on i/f/o lanes, 1.0 on g lanes
    a_v  = w(R_ACT + 2, 1)        # add:   0.5 on i/f/o lanes, 0.0 on g lanes
    conv_w = w(R_CONV, ROWS)      # [128, 128]

    # Conv + bias + ReLU as one matmul (bias folded via the ones-row of patches).
    # Row 8*t+b = (batch b, out-channel t); pad rows are exactly zero.
    x1 = jnp.maximum(
        jnp.dot(conv_w, patches_ref[...], preferred_element_type=f32), 0.0)   # [128, 16]

    # Layer-1 input projection hoisted for ALL timesteps in one MXU pass.
    xproj1 = jnp.dot(x1, wih1, preferred_element_type=f32) + b1               # [128, 128]

    def act(g):
        # sigmoid(x) = 0.5*tanh(0.5x)+0.5 on i/f/o lanes, tanh(x) on g lanes:
        # one EUP push per step instead of four.
        return jnp.tanh(g * s_v) * m_v + a_v

    def cell(gates, c):
        a = act(gates)                               # [8, 128]
        i_g = a[:, 0 * HIDDEN:1 * HIDDEN]            # 32-lane slices (cheap XLU work)
        f_g = a[:, 1 * HIDDEN:2 * HIDDEN]
        g_g = a[:, 2 * HIDDEN:3 * HIDDEN]
        o_g = a[:, 3 * HIDDEN:4 * HIDDEN]
        c = f_g * c + i_g * g_g                      # [8, 32]; pad rows stay bounded
        return o_g * jnp.tanh(c), c

    zeros = jnp.zeros((SROWS, HIDDEN), f32)
    h1, c1, h2, c2 = zeros, zeros, zeros, zeros
    for t in range(SEQ):                             # fully unrolled
        xp = xproj1[SROWS * t:SROWS * (t + 1), :]    # whole-tile, 8-aligned slice
        g1 = xp if t == 0 else xp + jnp.dot(h1, whh1, preferred_element_type=f32)
        h1, c1 = cell(g1, c1)
        # Layer 2 advances in the same step; its wih2 matmul is off the critical path.
        g2 = jnp.dot(h1, wih2, preferred_element_type=f32) + b2
        if t > 0:
            g2 = g2 + jnp.dot(h2, whh2, preferred_element_type=f32)
        h2, c2 = cell(g2, c2)

    # FC head; single full-tile (8,128) unmasked store.
    out_ref[...] = jnp.dot(h2, wfc, preferred_element_type=f32) + bfc


def seqglm_pallas(patches, slab):
    out = pl.pallas_call(
        seqglm_fused_kernel,
        out_shape=jax.ShapeDtypeStruct((SROWS, GL), jnp.float32),
        in_specs=[_VMEM, _VMEM],
        out_specs=_VMEM,
    )(slab, patches)
    return out[:BATCH, :NUM_CLASSES]


# ----------------------------- wrapper ---------------------------------------
def build_patches(x):
    # x: [B, Cin, H, W] -> [128, 16]; rows 0..71 = im2col patches (row =
    # b*CK + ci*K*K + ki*K + kj), row 72 = ones (conv bias), rows 73..127 = 0.
    Bb, C, H, W = x.shape
    Ho, Wo = H - KSIZE + 1, W - KSIZE + 1
    cols = [x[:, :, i:i + Ho, j:j + Wo]
            for i in range(KSIZE) for j in range(KSIZE)]
    p = jnp.stack(cols, axis=2).reshape(Bb * C * KSIZE * KSIZE, Ho * Wo)   # [72, 16]
    ones = jnp.ones((1, Ho * Wo), p.dtype)
    pad = jnp.zeros((ROWS - p.shape[0] - 1, Ho * Wo), p.dtype)
    return jnp.concatenate([p, ones, pad], axis=0)                         # [128, 16]


def prepare_params(params):
    # One-time weight re-layout into a single constant slab (outside the hot path).
    slab = np.zeros((SLAB_ROWS, GL), np.float32)
    (wih1, whh1, bih1, bhh1), (wih2, whh2, bih2, bhh2) = params["lstm"]
    slab[R_WIH1:R_WIH1 + P_SP, :]   = np.asarray(wih1).T     # PyTorch gate order i|f|g|o
    slab[R_WHH1:R_WHH1 + HIDDEN, :] = np.asarray(whh1).T
    slab[R_B1, :]                   = np.asarray(bih1 + bhh1)
    slab[R_WIH2:R_WIH2 + HIDDEN, :] = np.asarray(wih2).T
    slab[R_WHH2:R_WHH2 + HIDDEN, :] = np.asarray(whh2).T
    slab[R_B2, :]                   = np.asarray(bih2 + bhh2)
    slab[R_WFC:R_WFC + HIDDEN, :NUM_CLASSES] = np.asarray(params["w_fc"]).T
    slab[R_BFC, :NUM_CLASSES]                = np.asarray(params["b_fc"])
    # tanh-form activation constants per gate lane.
    lane = np.arange(GL)
    is_g = (lane >= 2 * HIDDEN) & (lane < 3 * HIDDEN)
    slab[R_ACT + 0, :] = np.where(is_g, 1.0, 0.5)
    slab[R_ACT + 1, :] = np.where(is_g, 1.0, 0.5)
    slab[R_ACT + 2, :] = np.where(is_g, 0.0, 0.5)
    # Conv block: row 8*t+b holds out-channel t's filter in per-batch column
    # block b plus the conv bias in the shared ones-column; pad rows stay zero.
    wc = np.asarray(params["w_conv"]).reshape(OUT_CH, CK)
    bc = np.asarray(params["b_conv"])
    for t in range(OUT_CH):
        for b in range(BATCH):
            r = R_CONV + SROWS * t + b
            slab[r, b * CK:(b + 1) * CK] = wc[t]
            slab[r, BIAS_COL] = bc[t]
    return jnp.asarray(slab)


@jax.jit
def seq_glm_forward(x, slab):
    return seqglm_pallas(build_patches(x), slab)


# ----------------------------- reference (plain JAX) -------------------------
def ref_forward(x, params):
    y = lax.conv_general_dilated(x, params["w_conv"], (1, 1), "VALID",
                                 dimension_numbers=("NCHW", "OIHW", "NCHW"))
    y = jnp.maximum(y + params["b_conv"][None, :, None, None], 0.0)
    Bb, Cout, Ho, Wo = y.shape
    h_in = y.reshape(Bb, Cout, Ho * Wo)
    for (wih, whh, bih, bhh) in params["lstm"]:
        H = whh.shape[1]

        def step(carry, x_t):
            h, c = carry
            gates = x_t @ wih.T + h @ whh.T + bih + bhh
            i = jax.nn.sigmoid(gates[:, :H])
            f = jax.nn.sigmoid(gates[:, H:2 * H])
            g = jnp.tanh(gates[:, 2 * H:3 * H])
            o = jax.nn.sigmoid(gates[:, 3 * H:])
            c = f * c + i * g
            h = o * jnp.tanh(c)
            return (h, c), h

        init = (jnp.zeros((Bb, H), jnp.float32), jnp.zeros((Bb, H), jnp.float32))
        _, hs = lax.scan(step, init, jnp.swapaxes(h_in, 0, 1))
        h_in = jnp.swapaxes(hs, 0, 1)
    return h_in[:, -1, :] @ params["w_fc"].T + params["b_fc"]


# ----------------------------- params + main ---------------------------------
def init_params(key):
    def nrm(k, shape, scale=0.1):
        return scale * jax.random.normal(k, shape, jnp.float32)

    keys = jax.random.split(key, 4 + 4 * NUM_LAYERS)
    params = {
        "w_conv": nrm(keys[0], (OUT_CH, IN_CH, KSIZE, KSIZE)),
        "b_conv": nrm(keys[1], (OUT_CH,)),
        "w_fc": nrm(keys[2], (NUM_CLASSES, HIDDEN)),
        "b_fc": nrm(keys[3], (NUM_CLASSES,)),
        "lstm": [],
    }
    in_sizes = [OUT_CH] + [HIDDEN] * (NUM_LAYERS - 1)   # layer-0 input = out_channels
    for l in range(NUM_LAYERS):
        k0, k1, k2, k3 = keys[4 + 4 * l:8 + 4 * l]
        params["lstm"].append((
            nrm(k0, (4 * HIDDEN, in_sizes[l])),          # W_ih (PyTorch gate order i,f,g,o)
            nrm(k1, (4 * HIDDEN, HIDDEN)),               # W_hh
            nrm(k2, (4 * HIDDEN,)),                      # b_ih
            nrm(k3, (4 * HIDDEN,)),                      # b_hh
        ))
    return params


if __name__ == "__main__":
    key = jax.random.PRNGKey(0)
    k_x, k_p = jax.random.split(key)
    x = jax.random.normal(k_x, (BATCH, IN_CH, H_IN, W_IN), jnp.float32)
    params = init_params(k_p)
    slab = prepare_params(params)

    out = seq_glm_forward(x, slab)
    out = jax.block_until_ready(out)

    ref = ref_forward(x, params)
    assert out.shape == (BATCH, NUM_CLASSES)
    assert jnp.allclose(out, ref, rtol=1e-4, atol=1e-4), (out, ref)

    print("KERNEL_OK")
</pallas_src>

<mosaic_0001>
module attributes {stable_mosaic.version = 11 : i64} {
  func.func @seqglm_fused_kernel(%arg0: memref<304x128xf32, #tpu.memory_space<vmem>>, %arg1: memref<128x16xf32, #tpu.memory_space<vmem>>, %arg2: memref<8x128xf32, #tpu.memory_space<vmem>>) attributes {dimension_semantics = [], scalar_prefetch = 0 : i64, scratch_operands = 0 : i64, tpu.core_type = #tpu.core_type<tc>} {
    %c0 = arith.constant 0 : index
    %c0_0 = arith.constant 0 : index
    %0 = vector.load %arg0[%c0, %c0_0] : memref<304x128xf32, #tpu.memory_space<vmem>>, vector<16x128xf32>
    %c16 = arith.constant 16 : index
    %c0_1 = arith.constant 0 : index
    %1 = vector.load %arg0[%c16, %c0_1] : memref<304x128xf32, #tpu.memory_space<vmem>>, vector<32x128xf32>
    %c48 = arith.constant 48 : index
    %c0_2 = arith.constant 0 : index
    %2 = vector.load %arg0[%c48, %c0_2] : memref<304x128xf32, #tpu.memory_space<vmem>>, vector<1x128xf32>
    %c56 = arith.constant 56 : index
    %c0_3 = arith.constant 0 : index
    %3 = vector.load %arg0[%c56, %c0_3] : memref<304x128xf32, #tpu.memory_space<vmem>>, vector<32x128xf32>
    %c88 = arith.constant 88 : index
    %c0_4 = arith.constant 0 : index
    %4 = vector.load %arg0[%c88, %c0_4] : memref<304x128xf32, #tpu.memory_space<vmem>>, vector<32x128xf32>
    %c120 = arith.constant 120 : index
    %c0_5 = arith.constant 0 : index
    %5 = vector.load %arg0[%c120, %c0_5] : memref<304x128xf32, #tpu.memory_space<vmem>>, vector<1x128xf32>
    %c128 = arith.constant 128 : index
    %c0_6 = arith.constant 0 : index
    %6 = vector.load %arg0[%c128, %c0_6] : memref<304x128xf32, #tpu.memory_space<vmem>>, vector<32x128xf32>
    %c160 = arith.constant 160 : index
    %c0_7 = arith.constant 0 : index
    %7 = vector.load %arg0[%c160, %c0_7] : memref<304x128xf32, #tpu.memory_space<vmem>>, vector<1x128xf32>
    %c168 = arith.constant 168 : index
    %c0_8 = arith.constant 0 : index
    %8 = vector.load %arg0[%c168, %c0_8] : memref<304x128xf32, #tpu.memory_space<vmem>>, vector<1x128xf32>
    %c169 = arith.constant 169 : index
    %c0_9 = arith.constant 0 : index
    %9 = vector.load %arg0[%c169, %c0_9] : memref<304x128xf32, #tpu.memory_space<vmem>>, vector<1x128xf32>
    %c170 = arith.constant 170 : index
    %c0_10 = arith.constant 0 : index
    %10 = vector.load %arg0[%c170, %c0_10] : memref<304x128xf32, #tpu.memory_space<vmem>>, vector<1x128xf32>
    %c176 = arith.constant 176 : index
    %c0_11 = arith.constant 0 : index
    %11 = vector.load %arg0[%c176, %c0_11] : memref<304x128xf32, #tpu.memory_space<vmem>>, vector<128x128xf32>
    %c0_12 = arith.constant 0 : index
    %c0_13 = arith.constant 0 : index
    %12 = vector.load %arg1[%c0_12, %c0_13] : memref<128x16xf32, #tpu.memory_space<vmem>>, vector<128x16xf32>
    %cst = arith.constant dense<0.000000e+00> : vector<128x16xf32>
    %13 = tpu.matmul %11, %12, %cst {dimension_numbers = #tpu.dot_dimension_numbers<[1], [0], [0], [1], [0, 0, 1, 1], [], []>} : vector<128x128xf32>, vector<128x16xf32>, vector<128x16xf32> -> vector<128x16xf32>
    %cst_14 = arith.constant 0.000000e+00 : f32
    %14 = vector.broadcast %cst_14 : f32 to vector<128x16xf32>
    %15 = arith.maximumf %13, %14 : vector<128x16xf32>
    %cst_15 = arith.constant dense<0.000000e+00> : vector<128x128xf32>
    %16 = tpu.matmul %15, %0, %cst_15 {dimension_numbers = #tpu.dot_dimension_numbers<[1], [0], [0], [1], [0, 0, 1, 1], [], []>} : vector<128x16xf32>, vector<16x128xf32>, vector<128x128xf32> -> vector<128x128xf32>
    %17 = vector.broadcast %2 : vector<1x128xf32> to vector<128x128xf32>
    %18 = arith.addf %16, %17 : vector<128x128xf32>
    %cst_16 = arith.constant 0.000000e+00 : f32
    %19 = vector.broadcast %cst_16 : f32 to vector<8x32xf32>
    %20 = vector.extract_strided_slice %18 {offsets = [0, 0], sizes = [8, 128], strides = [1, 1]} : vector<128x128xf32> to vector<8x128xf32>
    %21 = vector.broadcast %8 : vector<1x128xf32> to vector<8x128xf32>
    %22 = arith.mulf %20, %21 : vector<8x128xf32>
    %23 = math.tanh %22 : vector<8x128xf32>
    %24 = vector.broadcast %9 : vector<1x128xf32> to vector<8x128xf32>
    %25 = arith.mulf %23, %24 : vector<8x128xf32>
    %26 = vector.broadcast %10 : vector<1x128xf32> to vector<8x128xf32>
    %27 = arith.addf %25, %26 : vector<8x128xf32>
    %28 = vector.extract_strided_slice %27 {offsets = [0, 0], sizes = [8, 32], strides = [1, 1]} : vector<8x128xf32> to vector<8x32xf32>
    %29 = vector.extract_strided_slice %27 {offsets = [0, 32], sizes = [8, 32], strides = [1, 1]} : vector<8x128xf32> to vector<8x32xf32>
    %30 = vector.extract_strided_slice %27 {offsets = [0, 64], sizes = [8, 32], strides = [1, 1]} : vector<8x128xf32> to vector<8x32xf32>
    %31 = vector.extract_strided_slice %27 {offsets = [0, 96], sizes = [8, 32], strides = [1, 1]} : vector<8x128xf32> to vector<8x32xf32>
    %32 = arith.mulf %29, %19 : vector<8x32xf32>
    %33 = arith.mulf %28, %30 : vector<8x32xf32>
    %34 = arith.addf %32, %33 : vector<8x32xf32>
    %35 = math.tanh %34 : vector<8x32xf32>
    %36 = arith.mulf %31, %35 : vector<8x32xf32>
    %cst_17 = arith.constant dense<0.000000e+00> : vector<8x128xf32>
    %37 = tpu.matmul %36, %3, %cst_17 {dimension_numbers = #tpu.dot_dimension_numbers<[1], [0], [0], [1], [0, 0, 1, 1], [], []>} : vector<8x32xf32>, vector<32x128xf32>, vector<8x128xf32> -> vector<8x128xf32>
    %38 = vector.broadcast %5 : vector<1x128xf32> to vector<8x128xf32>
    %39 = arith.addf %37, %38 : vector<8x128xf32>
    %40 = vector.broadcast %8 : vector<1x128xf32> to vector<8x128xf32>
    %41 = arith.mulf %39, %40 : vector<8x128xf32>
    %42 = math.tanh %41 : vector<8x128xf32>
    %43 = vector.broadcast %9 : vector<1x128xf32> to vector<8x128xf32>
    %44 = arith.mulf %42, %43 : vector<8x128xf32>
    %45 = vector.broadcast %10 : vector<1x128xf32> to vector<8x128xf32>
    %46 = arith.addf %44, %45 : vector<8x128xf32>
    %47 = vector.extract_strided_slice %46 {offsets = [0, 0], sizes = [8, 32], strides = [1, 1]} : vector<8x128xf32> to vector<8x32xf32>
    %48 = vector.extract_strided_slice %46 {offsets = [0, 32], sizes = [8, 32], strides = [1, 1]} : vector<8x128xf32> to vector<8x32xf32>
    %49 = vector.extract_strided_slice %46 {offsets = [0, 64], sizes = [8, 32], strides = [1, 1]} : vector<8x128xf32> to vector<8x32xf32>
    %50 = vector.extract_strided_slice %46 {offsets = [0, 96], sizes = [8, 32], strides = [1, 1]} : vector<8x128xf32> to vector<8x32xf32>
    %51 = arith.mulf %48, %19 : vector<8x32xf32>
    %52 = arith.mulf %47, %49 : vector<8x32xf32>
    %53 = arith.addf %51, %52 : vector<8x32xf32>
    %54 = math.tanh %53 : vector<8x32xf32>
    %55 = arith.mulf %50, %54 : vector<8x32xf32>
    %56 = vector.extract_strided_slice %18 {offsets = [8, 0], sizes = [8, 128], strides = [1, 1]} : vector<128x128xf32> to vector<8x128xf32>
    %cst_18 = arith.constant dense<0.000000e+00> : vector<8x128xf32>
    %57 = tpu.matmul %36, %1, %cst_18 {dimension_numbers = #tpu.dot_dimension_numbers<[1], [0], [0], [1], [0, 0, 1, 1], [], []>} : vector<8x32xf32>, vector<32x128xf32>, vector<8x128xf32> -> vector<8x128xf32>
    %58 = arith.addf %56, %57 : vector<8x128xf32>
    %59 = vector.broadcast %8 : vector<1x128xf32> to vector<8x128xf32>
    %60 = arith.mulf %58, %59 : vector<8x128xf32>
    %61 = math.tanh %60 : vector<8x128xf32>
    %62 = vector.broadcast %9 : vector<1x128xf32> to vector<8x128xf32>
    %63 = arith.mulf %61, %62 : vector<8x128xf32>
    %64 = vector.broadcast %10 : vector<1x128xf32> to vector<8x128xf32>
    %65 = arith.addf %63, %64 : vector<8x128xf32>
    %66 = vector.extract_strided_slice %65 {offsets = [0, 0], sizes = [8, 32], strides = [1, 1]} : vector<8x128xf32> to vector<8x32xf32>
    %67 = vector.extract_strided_slice %65 {offsets = [0, 32], sizes = [8, 32], strides = [1, 1]} : vector<8x128xf32> to vector<8x32xf32>
    %68 = vector.extract_strided_slice %65 {offsets = [0, 64], sizes = [8, 32], strides = [1, 1]} : vector<8x128xf32> to vector<8x32xf32>
    %69 = vector.extract_strided_slice %65 {offsets = [0, 96], sizes = [8, 32], strides = [1, 1]} : vector<8x128xf32> to vector<8x32xf32>
    %70 = arith.mulf %67, %34 : vector<8x32xf32>
    %71 = arith.mulf %66, %68 : vector<8x32xf32>
    %72 = arith.addf %70, %71 : vector<8x32xf32>
    %73 = math.tanh %72 : vector<8x32xf32>
    %74 = arith.mulf %69, %73 : vector<8x32xf32>
    %cst_19 = arith.constant dense<0.000000e+00> : vector<8x128xf32>
    %75 = tpu.matmul %74, %3, %cst_19 {dimension_numbers = #tpu.dot_dimension_numbers<[1], [0], [0], [1], [0, 0, 1, 1], [], []>} : vector<8x32xf32>, vector<32x128xf32>, vector<8x128xf32> -> vector<8x128xf32>
    %76 = vector.broadcast %5 : vector<1x128xf32> to vector<8x128xf32>
    %77 = arith.addf %75, %76 : vector<8x128xf32>
    %cst_20 = arith.constant dense<0.000000e+00> : vector<8x128xf32>
    %78 = tpu.matmul %55, %4, %cst_20 {dimension_numbers = #tpu.dot_dimension_numbers<[1], [0], [0], [1], [0, 0, 1, 1], [], []>} : vector<8x32xf32>, vector<32x128xf32>, vector<8x128xf32> -> vector<8x128xf32>
    %79 = arith.addf %77, %78 : vector<8x128xf32>
    %80 = vector.broadcast %8 : vector<1x128xf32> to vector<8x128xf32>
    %81 = arith.mulf %79, %80 : vector<8x128xf32>
    %82 = math.tanh %81 : vector<8x128xf32>
    %83 = vector.broadcast %9 : vector<1x128xf32> to vector<8x128xf32>
    %84 = arith.mulf %82, %83 : vector<8x128xf32>
    %85 = vector.broadcast %10 : vector<1x128xf32> to vector<8x128xf32>
    %86 = arith.addf %84, %85 : vector<8x128xf32>
    %87 = vector.extract_strided_slice %86 {offsets = [0, 0], sizes = [8, 32], strides = [1, 1]} : vector<8x128xf32> to vector<8x32xf32>
    %88 = vector.extract_strided_slice %86 {offsets = [0, 32], sizes = [8, 32], strides = [1, 1]} : vector<8x128xf32> to vector<8x32xf32>
    %89 = vector.extract_strided_slice %86 {offsets = [0, 64], sizes = [8, 32], strides = [1, 1]} : vector<8x128xf32> to vector<8x32xf32>
    %90 = vector.extract_strided_slice %86 {offsets = [0, 96], sizes = [8, 32], strides = [1, 1]} : vector<8x128xf32> to vector<8x32xf32>
    %91 = arith.mulf %88, %53 : vector<8x32xf32>
    %92 = arith.mulf %87, %89 : vector<8x32xf32>
    %93 = arith.addf %91, %92 : vector<8x32xf32>
    %94 = math.tanh %93 : vector<8x32xf32>
    %95 = arith.mulf %90, %94 : vector<8x32xf32>
    %96 = vector.extract_strided_slice %18 {offsets = [16, 0], sizes = [8, 128], strides = [1, 1]} : vector<128x128xf32> to vector<8x128xf32>
    %cst_21 = arith.constant dense<0.000000e+00> : vector<8x128xf32>
    %97 = tpu.matmul %74, %1, %cst_21 {dimension_numbers = #tpu.dot_dimension_numbers<[1], [0], [0], [1], [0, 0, 1, 1], [], []>} : vector<8x32xf32>, vector<32x128xf32>, vector<8x128xf32> -> vector<8x128xf32>
    %98 = arith.addf %96, %97 : vector<8x128xf32>
    %99 = vector.broadcast %8 : vector<1x128xf32> to vector<8x128xf32>
    %100 = arith.mulf %98, %99 : vector<8x128xf32>
    %101 = math.tanh %100 : vector<8x128xf32>
    %102 = vector.broadcast %9 : vector<1x128xf32> to vector<8x128xf32>
    %103 = arith.mulf %101, %102 : vector<8x128xf32>
    %104 = vector.broadcast %10 : vector<1x128xf32> to vector<8x128xf32>
    %105 = arith.addf %103, %104 : vector<8x128xf32>
    %106 = vector.extract_strided_slice %105 {offsets = [0, 0], sizes = [8, 32], strides = [1, 1]} : vector<8x128xf32> to vector<8x32xf32>
    %107 = vector.extract_strided_slice %105 {offsets = [0, 32], sizes = [8, 32], strides = [1, 1]} : vector<8x128xf32> to vector<8x32xf32>
    %108 = vector.extract_strided_slice %105 {offsets = [0, 64], sizes = [8, 32], strides = [1, 1]} : vector<8x128xf32> to vector<8x32xf32>
    %109 = vector.extract_strided_slice %105 {offsets = [0, 96], sizes = [8, 32], strides = [1, 1]} : vector<8x128xf32> to vector<8x32xf32>
    %110 = arith.mulf %107, %72 : vector<8x32xf32>
    %111 = arith.mulf %106, %108 : vector<8x32xf32>
    %112 = arith.addf %110, %111 : vector<8x32xf32>
    %113 = math.tanh %112 : vector<8x32xf32>
    %114 = arith.mulf %109, %113 : vector<8x32xf32>
    %cst_22 = arith.constant dense<0.000000e+00> : vector<8x128xf32>
    %115 = tpu.matmul %114, %3, %cst_22 {dimension_numbers = #tpu.dot_dimension_numbers<[1], [0], [0], [1], [0, 0, 1, 1], [], []>} : vector<8x32xf32>, vector<32x128xf32>, vector<8x128xf32> -> vector<8x128xf32>
    %116 = vector.broadcast %5 : vector<1x128xf32> to vector<8x128xf32>
    %117 = arith.addf %115, %116 : vector<8x128xf32>
    %cst_23 = arith.constant dense<0.000000e+00> : vector<8x128xf32>
    %118 = tpu.matmul %95, %4, %cst_23 {dimension_numbers = #tpu.dot_dimension_numbers<[1], [0], [0], [1], [0, 0, 1, 1], [], []>} : vector<8x32xf32>, vector<32x128xf32>, vector<8x128xf32> -> vector<8x128xf32>
    %119 = arith.addf %117, %118 : vector<8x128xf32>
    %120 = vector.broadcast %8 : vector<1x128xf32> to vector<8x128xf32>
    %121 = arith.mulf %119, %120 : vector<8x128xf32>
    %122 = math.tanh %121 : vector<8x128xf32>
    %123 = vector.broadcast %9 : vector<1x128xf32> to vector<8x128xf32>
    %124 = arith.mulf %122, %123 : vector<8x128xf32>
    %125 = vector.broadcast %10 : vector<1x128xf32> to vector<8x128xf32>
    %126 = arith.addf %124, %125 : vector<8x128xf32>
    %127 = vector.extract_strided_slice %126 {offsets = [0, 0], sizes = [8, 32], strides = [1, 1]} : vector<8x128xf32> to vector<8x32xf32>
    %128 = vector.extract_strided_slice %126 {offsets = [0, 32], sizes = [8, 32], strides = [1, 1]} : vector<8x128xf32> to vector<8x32xf32>
    %129 = vector.extract_strided_slice %126 {offsets = [0, 64], sizes = [8, 32], strides = [1, 1]} : vector<8x128xf32> to vector<8x32xf32>
    %130 = vector.extract_strided_slice %126 {offsets = [0, 96], sizes = [8, 32], strides = [1, 1]} : vector<8x128xf32> to vector<8x32xf32>
    %131 = arith.mulf %128, %93 : vector<8x32xf32>
    %132 = arith.mulf %127, %129 : vector<8x32xf32>
    %133 = arith.addf %131, %132 : vector<8x32xf32>
    %134 = math.tanh %133 : vector<8x32xf32>
    %135 = arith.mulf %130, %134 : vector<8x32xf32>
    %136 = vector.extract_strided_slice %18 {offsets = [24, 0], sizes = [8, 128], strides = [1, 1]} : vector<128x128xf32> to vector<8x128xf32>
    %cst_24 = arith.constant dense<0.000000e+00> : vector<8x128xf32>
    %137 = tpu.matmul %114, %1, %cst_24 {dimension_numbers = #tpu.dot_dimension_numbers<[1], [0], [0], [1], [0, 0, 1, 1], [], []>} : vector<8x32xf32>, vector<32x128xf32>, vector<8x128xf32> -> vector<8x128xf32>
    %138 = arith.addf %136, %137 : vector<8x128xf32>
    %139 = vector.broadcast %8 : vector<1x128xf32> to vector<8x128xf32>
    %140 = arith.mulf %138, %139 : vector<8x128xf32>
    %141 = math.tanh %140 : vector<8x128xf32>
    %142 = vector.broadcast %9 : vector<1x128xf32> to vector<8x128xf32>
    %143 = arith.mulf %141, %142 : vector<8x128xf32>
    %144 = vector.broadcast %10 : vector<1x128xf32> to vector<8x128xf32>
    %145 = arith.addf %143, %144 : vector<8x128xf32>
    %146 = vector.extract_strided_slice %145 {offsets = [0, 0], sizes = [8, 32], strides = [1, 1]} : vector<8x128xf32> to vector<8x32xf32>
    %147 = vector.extract_strided_slice %145 {offsets = [0, 32], sizes = [8, 32], strides = [1, 1]} : vector<8x128xf32> to vector<8x32xf32>
    %148 = vector.extract_strided_slice %145 {offsets = [0, 64], sizes = [8, 32], strides = [1, 1]} : vector<8x128xf32> to vector<8x32xf32>
    %149 = vector.extract_strided_slice %145 {offsets = [0, 96], sizes = [8, 32], strides = [1, 1]} : vector<8x128xf32> to vector<8x32xf32>
    %150 = arith.mulf %147, %112 : vector<8x32xf32>
    %151 = arith.mulf %146, %148 : vector<8x32xf32>
    %152 = arith.addf %150, %151 : vector<8x32xf32>
    %153 = math.tanh %152 : vector<8x32xf32>
    %154 = arith.mulf %149, %153 : vector<8x32xf32>
    %cst_25 = arith.constant dense<0.000000e+00> : vector<8x128xf32>
    %155 = tpu.matmul %154, %3, %cst_25 {dimension_numbers = #tpu.dot_dimension_numbers<[1], [0], [0], [1], [0, 0, 1, 1], [], []>} : vector<8x32xf32>, vector<32x128xf32>, vector<8x128xf32> -> vector<8x128xf32>
    %156 = vector.broadcast %5 : vector<1x128xf32> to vector<8x128xf32>
    %157 = arith.addf %155, %156 : vector<8x128xf32>
    %cst_26 = arith.constant dense<0.000000e+00> : vector<8x128xf32>
    %158 = tpu.matmul %135, %4, %cst_26 {dimension_numbers = #tpu.dot_dimension_numbers<[1], [0], [0], [1], [0, 0, 1, 1], [], []>} : vector<8x32xf32>, vector<32x128xf32>, vector<8x128xf32> -> vector<8x128xf32>
    %159 = arith.addf %157, %158 : vector<8x128xf32>
    %160 = vector.broadcast %8 : vector<1x128xf32> to vector<8x128xf32>
    %161 = arith.mulf %159, %160 : vector<8x128xf32>
    %162 = math.tanh %161 : vector<8x128xf32>
    %163 = vector.broadcast %9 : vector<1x128xf32> to vector<8x128xf32>
    %164 = arith.mulf %162, %163 : vector<8x128xf32>
    %165 = vector.broadcast %10 : vector<1x128xf32> to vector<8x128xf32>
    %166 = arith.addf %164, %165 : vector<8x128xf32>
    %167 = vector.extract_strided_slice %166 {offsets = [0, 0], sizes = [8, 32], strides = [1, 1]} : vector<8x128xf32> to vector<8x32xf32>
    %168 = vector.extract_strided_slice %166 {offsets = [0, 32], sizes = [8, 32], strides = [1, 1]} : vector<8x128xf32> to vector<8x32xf32>
    %169 = vector.extract_strided_slice %166 {offsets = [0, 64], sizes = [8, 32], strides = [1, 1]} : vector<8x128xf32> to vector<8x32xf32>
    %170 = vector.extract_strided_slice %166 {offsets = [0, 96], sizes = [8, 32], strides = [1, 1]} : vector<8x128xf32> to vector<8x32xf32>
    %171 = arith.mulf %168, %133 : vector<8x32xf32>
    %172 = arith.mulf %167, %169 : vector<8x32xf32>
    %173 = arith.addf %171, %172 : vector<8x32xf32>
    %174 = math.tanh %173 : vector<8x32xf32>
    %175 = arith.mulf %170, %174 : vector<8x32xf32>
    %176 = vector.extract_strided_slice %18 {offsets = [32, 0], sizes = [8, 128], strides = [1, 1]} : vector<128x128xf32> to vector<8x128xf32>
    %cst_27 = arith.constant dense<0.000000e+00> : vector<8x128xf32>
    %177 = tpu.matmul %154, %1, %cst_27 {dimension_numbers = #tpu.dot_dimension_numbers<[1], [0], [0], [1], [0, 0, 1, 1], [], []>} : vector<8x32xf32>, vector<32x128xf32>, vector<8x128xf32> -> vector<8x128xf32>
    %178 = arith.addf %176, %177 : vector<8x128xf32>
    %179 = vector.broadcast %8 : vector<1x128xf32> to vector<8x128xf32>
    %180 = arith.mulf %178, %179 : vector<8x128xf32>
    %181 = math.tanh %180 : vector<8x128xf32>
    %182 = vector.broadcast %9 : vector<1x128xf32> to vector<8x128xf32>
    %183 = arith.mulf %181, %182 : vector<8x128xf32>
    %184 = vector.broadcast %10 : vector<1x128xf32> to vector<8x128xf32>
    %185 = arith.addf %183, %184 : vector<8x128xf32>
    %186 = vector.extract_strided_slice %185 {offsets = [0, 0], sizes = [8, 32], strides = [1, 1]} : vector<8x128xf32> to vector<8x32xf32>
    %187 = vector.extract_strided_slice %185 {offsets = [0, 32], sizes = [8, 32], strides = [1, 1]} : vector<8x128xf32> to vector<8x32xf32>
    %188 = vector.extract_strided_slice %185 {offsets = [0, 64], sizes = [8, 32], strides = [1, 1]} : vector<8x128xf32> to vector<8x32xf32>
    %189 = vector.extract_strided_slice %185 {offsets = [0, 96], sizes = [8, 32], strides = [1, 1]} : vector<8x128xf32> to vector<8x32xf32>
    %190 = arith.mulf %187, %152 : vector<8x32xf32>
    %191 = arith.mulf %186, %188 : vector<8x32xf32>
    %192 = arith.addf %190, %191 : vector<8x32xf32>
    %193 = math.tanh %192 : vector<8x32xf32>
    %194 = arith.mulf %189, %193 : vector<8x32xf32>
    %cst_28 = arith.constant dense<0.000000e+00> : vector<8x128xf32>
    %195 = tpu.matmul %194, %3, %cst_28 {dimension_numbers = #tpu.dot_dimension_numbers<[1], [0], [0], [1], [0, 0, 1, 1], [], []>} : vector<8x32xf32>, vector<32x128xf32>, vector<8x128xf32> -> vector<8x128xf32>
    %196 = vector.broadcast %5 : vector<1x128xf32> to vector<8x128xf32>
    %197 = arith.addf %195, %196 : vector<8x128xf32>
    %cst_29 = arith.constant dense<0.000000e+00> : vector<8x128xf32>
    %198 = tpu.matmul %175, %4, %cst_29 {dimension_numbers = #tpu.dot_dimension_numbers<[1], [0], [0], [1], [0, 0, 1, 1], [], []>} : vector<8x32xf32>, vector<32x128xf32>, vector<8x128xf32> -> vector<8x128xf32>
    %199 = arith.addf %197, %198 : vector<8x128xf32>
    %200 = vector.broadcast %8 : vector<1x128xf32> to vector<8x128xf32>
    %201 = arith.mulf %199, %200 : vector<8x128xf32>
    %202 = math.tanh %201 : vector<8x128xf32>
    %203 = vector.broadcast %9 : vector<1x128xf32> to vector<8x128xf32>
    %204 = arith.mulf %202, %203 : vector<8x128xf32>
    %205 = vector.broadcast %10 : vector<1x128xf32> to vector<8x128xf32>
    %206 = arith.addf %204, %205 : vector<8x128xf32>
    %207 = vector.extract_strided_slice %206 {offsets = [0, 0], sizes = [8, 32], strides = [1, 1]} : vector<8x128xf32> to vector<8x32xf32>
    %208 = vector.extract_strided_slice %206 {offsets = [0, 32], sizes = [8, 32], strides = [1, 1]} : vector<8x128xf32> to vector<8x32xf32>
    %209 = vector.extract_strided_slice %206 {offsets = [0, 64], sizes = [8, 32], strides = [1, 1]} : vector<8x128xf32> to vector<8x32xf32>
    %210 = vector.extract_strided_slice %206 {offsets = [0, 96], sizes = [8, 32], strides = [1, 1]} : vector<8x128xf32> to vector<8x32xf32>
    %211 = arith.mulf %208, %173 : vector<8x32xf32>
    %212 = arith.mulf %207, %209 : vector<8x32xf32>
    %213 = arith.addf %211, %212 : vector<8x32xf32>
    %214 = math.tanh %213 : vector<8x32xf32>
    %215 = arith.mulf %210, %214 : vector<8x32xf32>
    %216 = vector.extract_strided_slice %18 {offsets = [40, 0], sizes = [8, 128], strides = [1, 1]} : vector<128x128xf32> to vector<8x128xf32>
    %cst_30 = arith.constant dense<0.000000e+00> : vector<8x128xf32>
    %217 = tpu.matmul %194, %1, %cst_30 {dimension_numbers = #tpu.dot_dimension_numbers<[1], [0], [0], [1], [0, 0, 1, 1], [], []>} : vector<8x32xf32>, vector<32x128xf32>, vector<8x128xf32> -> vector<8x128xf32>
    %218 = arith.addf %216, %217 : vector<8x128xf32>
    %219 = vector.broadcast %8 : vector<1x128xf32> to vector<8x128xf32>
    %220 = arith.mulf %218, %219 : vector<8x128xf32>
    %221 = math.tanh %220 : vector<8x128xf32>
    %222 = vector.broadcast %9 : vector<1x128xf32> to vector<8x128xf32>
    %223 = arith.mulf %221, %222 : vector<8x128xf32>
    %224 = vector.broadcast %10 : vector<1x128xf32> to vector<8x128xf32>
    %225 = arith.addf %223, %224 : vector<8x128xf32>
    %226 = vector.extract_strided_slice %225 {offsets = [0, 0], sizes = [8, 32], strides = [1, 1]} : vector<8x128xf32> to vector<8x32xf32>
    %227 = vector.extract_strided_slice %225 {offsets = [0, 32], sizes = [8, 32], strides = [1, 1]} : vector<8x128xf32> to vector<8x32xf32>
    %228 = vector.extract_strided_slice %225 {offsets = [0, 64], sizes = [8, 32], strides = [1, 1]} : vector<8x128xf32> to vector<8x32xf32>
    %229 = vector.extract_strided_slice %225 {offsets = [0, 96], sizes = [8, 32], strides = [1, 1]} : vector<8x128xf32> to vector<8x32xf32>
    %230 = arith.mulf %227, %192 : vector<8x32xf32>
    %231 = arith.mulf %226, %228 : vector<8x32xf32>
    %232 = arith.addf %230, %231 : vector<8x32xf32>
    %233 = math.tanh %232 : vector<8x32xf32>
    %234 = arith.mulf %229, %233 : vector<8x32xf32>
    %cst_31 = arith.constant dense<0.000000e+00> : vector<8x128xf32>
    %235 = tpu.matmul %234, %3, %cst_31 {dimension_numbers = #tpu.dot_dimension_numbers<[1], [0], [0], [1], [0, 0, 1, 1], [], []>} : vector<8x32xf32>, vector<32x128xf32>, vector<8x128xf32> -> vector<8x128xf32>
    %236 = vector.broadcast %5 : vector<1x128xf32> to vector<8x128xf32>
    %237 = arith.addf %235, %236 : vector<8x128xf32>
    %cst_32 = arith.constant dense<0.000000e+00> : vector<8x128xf32>
    %238 = tpu.matmul %215, %4, %cst_32 {dimension_numbers = #tpu.dot_dimension_numbers<[1], [0], [0], [1], [0, 0, 1, 1], [], []>} : vector<8x32xf32>, vector<32x128xf32>, vector<8x128xf32> -> vector<8x128xf32>
    %239 = arith.addf %237, %238 : vector<8x128xf32>
    %240 = vector.broadcast %8 : vector<1x128xf32> to vector<8x128xf32>
    %241 = arith.mulf %239, %240 : vector<8x128xf32>
    %242 = math.tanh %241 : vector<8x128xf32>
    %243 = vector.broadcast %9 : vector<1x128xf32> to vector<8x128xf32>
    %244 = arith.mulf %242, %243 : vector<8x128xf32>
    %245 = vector.broadcast %10 : vector<1x128xf32> to vector<8x128xf32>
    %246 = arith.addf %244, %245 : vector<8x128xf32>
    %247 = vector.extract_strided_slice %246 {offsets = [0, 0], sizes = [8, 32], strides = [1, 1]} : vector<8x128xf32> to vector<8x32xf32>
    %248 = vector.extract_strided_slice %246 {offsets = [0, 32], sizes = [8, 32], strides = [1, 1]} : vector<8x128xf32> to vector<8x32xf32>
    %249 = vector.extract_strided_slice %246 {offsets = [0, 64], sizes = [8, 32], strides = [1, 1]} : vector<8x128xf32> to vector<8x32xf32>
    %250 = vector.extract_strided_slice %246 {offsets = [0, 96], sizes = [8, 32], strides = [1, 1]} : vector<8x128xf32> to vector<8x32xf32>
    %251 = arith.mulf %248, %213 : vector<8x32xf32>
    %252 = arith.mulf %247, %249 : vector<8x32xf32>
    %253 = arith.addf %251, %252 : vector<8x32xf32>
    %254 = math.tanh %253 : vector<8x32xf32>
    %255 = arith.mulf %250, %254 : vector<8x32xf32>
    %256 = vector.extract_strided_slice %18 {offsets = [48, 0], sizes = [8, 128], strides = [1, 1]} : vector<128x128xf32> to vector<8x128xf32>
    %cst_33 = arith.constant dense<0.000000e+00> : vector<8x128xf32>
    %257 = tpu.matmul %234, %1, %cst_33 {dimension_numbers = #tpu.dot_dimension_numbers<[1], [0], [0], [1], [0, 0, 1, 1], [], []>} : vector<8x32xf32>, vector<32x128xf32>, vector<8x128xf32> -> vector<8x128xf32>
    %258 = arith.addf %256, %257 : vector<8x128xf32>
    %259 = vector.broadcast %8 : vector<1x128xf32> to vector<8x128xf32>
    %260 = arith.mulf %258, %259 : vector<8x128xf32>
    %261 = math.tanh %260 : vector<8x128xf32>
    %262 = vector.broadcast %9 : vector<1x128xf32> to vector<8x128xf32>
    %263 = arith.mulf %261, %262 : vector<8x128xf32>
    %264 = vector.broadcast %10 : vector<1x128xf32> to vector<8x128xf32>
    %265 = arith.addf %263, %264 : vector<8x128xf32>
    %266 = vector.extract_strided_slice %265 {offsets = [0, 0], sizes = [8, 32], strides = [1, 1]} : vector<8x128xf32> to vector<8x32xf32>
    %267 = vector.extract_strided_slice %265 {offsets = [0, 32], sizes = [8, 32], strides = [1, 1]} : vector<8x128xf32> to vector<8x32xf32>
    %268 = vector.extract_strided_slice %265 {offsets = [0, 64], sizes = [8, 32], strides = [1, 1]} : vector<8x128xf32> to vector<8x32xf32>
    %269 = vector.extract_strided_slice %265 {offsets = [0, 96], sizes = [8, 32], strides = [1, 1]} : vector<8x128xf32> to vector<8x32xf32>
    %270 = arith.mulf %267, %232 : vector<8x32xf32>
    %271 = arith.mulf %266, %268 : vector<8x32xf32>
    %272 = arith.addf %270, %271 : vector<8x32xf32>
    %273 = math.tanh %272 : vector<8x32xf32>
    %274 = arith.mulf %269, %273 : vector<8x32xf32>
    %cst_34 = arith.constant dense<0.000000e+00> : vector<8x128xf32>
    %275 = tpu.matmul %274, %3, %cst_34 {dimension_numbers = #tpu.dot_dimension_numbers<[1], [0], [0], [1], [0, 0, 1, 1], [], []>} : vector<8x32xf32>, vector<32x128xf32>, vector<8x128xf32> -> vector<8x128xf32>
    %276 = vector.broadcast %5 : vector<1x128xf32> to vector<8x128xf32>
    %277 = arith.addf %275, %276 : vector<8x128xf32>
    %cst_35 = arith.constant dense<0.000000e+00> : vector<8x128xf32>
    %278 = tpu.matmul %255, %4, %cst_35 {dimension_numbers = #tpu.dot_dimension_numbers<[1], [0], [0], [1], [0, 0, 1, 1], [], []>} : vector<8x32xf32>, vector<32x128xf32>, vector<8x128xf32> -> vector<8x128xf32>
    %279 = arith.addf %277, %278 : vector<8x128xf32>
    %280 = vector.broadcast %8 : vector<1x128xf32> to vector<8x128xf32>
    %281 = arith.mulf %279, %280 : vector<8x128xf32>
    %282 = math.tanh %281 : vector<8x128xf32>
    %283 = vector.broadcast %9 : vector<1x128xf32> to vector<8x128xf32>
    %284 = arith.mulf %282, %283 : vector<8x128xf32>
    %285 = vector.broadcast %10 : vector<1x128xf32> to vector<8x128xf32>
    %286 = arith.addf %284, %285 : vector<8x128xf32>
    %287 = vector.extract_strided_slice %286 {offsets = [0, 0], sizes = [8, 32], strides = [1, 1]} : vector<8x128xf32> to vector<8x32xf32>
    %288 = vector.extract_strided_slice %286 {offsets = [0, 32], sizes = [8, 32], strides = [1, 1]} : vector<8x128xf32> to vector<8x32xf32>
    %289 = vector.extract_strided_slice %286 {offsets = [0, 64], sizes = [8, 32], strides = [1, 1]} : vector<8x128xf32> to vector<8x32xf32>
    %290 = vector.extract_strided_slice %286 {offsets = [0, 96], sizes = [8, 32], strides = [1, 1]} : vector<8x128xf32> to vector<8x32xf32>
    %291 = arith.mulf %288, %253 : vector<8x32xf32>
    %292 = arith.mulf %287, %289 : vector<8x32xf32>
    %293 = arith.addf %291, %292 : vector<8x32xf32>
    %294 = math.tanh %293 : vector<8x32xf32>
    %295 = arith.mulf %290, %294 : vector<8x32xf32>
    %296 = vector.extract_strided_slice %18 {offsets = [56, 0], sizes = [8, 128], strides = [1, 1]} : vector<128x128xf32> to vector<8x128xf32>
    %cst_36 = arith.constant dense<0.000000e+00> : vector<8x128xf32>
    %297 = tpu.matmul %274, %1, %cst_36 {dimension_numbers = #tpu.dot_dimension_numbers<[1], [0], [0], [1], [0, 0, 1, 1], [], []>} : vector<8x32xf32>, vector<32x128xf32>, vector<8x128xf32> -> vector<8x128xf32>
    %298 = arith.addf %296, %297 : vector<8x128xf32>
    %299 = vector.broadcast %8 : vector<1x128xf32> to vector<8x128xf32>
    %300 = arith.mulf %298, %299 : vector<8x128xf32>
    %301 = math.tanh %300 : vector<8x128xf32>
    %302 = vector.broadcast %9 : vector<1x128xf32> to vector<8x128xf32>
    %303 = arith.mulf %301, %302 : vector<8x128xf32>
    %304 = vector.broadcast %10 : vector<1x128xf32> to vector<8x128xf32>
    %305 = arith.addf %303, %304 : vector<8x128xf32>
    %306 = vector.extract_strided_slice %305 {offsets = [0, 0], sizes = [8, 32], strides = [1, 1]} : vector<8x128xf32> to vector<8x32xf32>
    %307 = vector.extract_strided_slice %305 {offsets = [0, 32], sizes = [8, 32], strides = [1, 1]} : vector<8x128xf32> to vector<8x32xf32>
    %308 = vector.extract_strided_slice %305 {offsets = [0, 64], sizes = [8, 32], strides = [1, 1]} : vector<8x128xf32> to vector<8x32xf32>
    %309 = vector.extract_strided_slice %305 {offsets = [0, 96], sizes = [8, 32], strides = [1, 1]} : vector<8x128xf32> to vector<8x32xf32>
    %310 = arith.mulf %307, %272 : vector<8x32xf32>
    %311 = arith.mulf %306, %308 : vector<8x32xf32>
    %312 = arith.addf %310, %311 : vector<8x32xf32>
    %313 = math.tanh %312 : vector<8x32xf32>
    %314 = arith.mulf %309, %313 : vector<8x32xf32>
    %cst_37 = arith.constant dense<0.000000e+00> : vector<8x128xf32>
    %315 = tpu.matmul %314, %3, %cst_37 {dimension_numbers = #tpu.dot_dimension_numbers<[1], [0], [0], [1], [0, 0, 1, 1], [], []>} : vector<8x32xf32>, vector<32x128xf32>, vector<8x128xf32> -> vector<8x128xf32>
    %316 = vector.broadcast %5 : vector<1x128xf32> to vector<8x128xf32>
    %317 = arith.addf %315, %316 : vector<8x128xf32>
    %cst_38 = arith.constant dense<0.000000e+00> : vector<8x128xf32>
    %318 = tpu.matmul %295, %4, %cst_38 {dimension_numbers = #tpu.dot_dimension_numbers<[1], [0], [0], [1], [0, 0, 1, 1], [], []>} : vector<8x32xf32>, vector<32x128xf32>, vector<8x128xf32> -> vector<8x128xf32>
    %319 = arith.addf %317, %318 : vector<8x128xf32>
    %320 = vector.broadcast %8 : vector<1x128xf32> to vector<8x128xf32>
    %321 = arith.mulf %319, %320 : vector<8x128xf32>
    %322 = math.tanh %321 : vector<8x128xf32>
    %323 = vector.broadcast %9 : vector<1x128xf32> to vector<8x128xf32>
    %324 = arith.mulf %322, %323 : vector<8x128xf32>
    %325 = vector.broadcast %10 : vector<1x128xf32> to vector<8x128xf32>
    %326 = arith.addf %324, %325 : vector<8x128xf32>
    %327 = vector.extract_strided_slice %326 {offsets = [0, 0], sizes = [8, 32], strides = [1, 1]} : vector<8x128xf32> to vector<8x32xf32>
    %328 = vector.extract_strided_slice %326 {offsets = [0, 32], sizes = [8, 32], strides = [1, 1]} : vector<8x128xf32> to vector<8x32xf32>
    %329 = vector.extract_strided_slice %326 {offsets = [0, 64], sizes = [8, 32], strides = [1, 1]} : vector<8x128xf32> to vector<8x32xf32>
    %330 = vector.extract_strided_slice %326 {offsets = [0, 96], sizes = [8, 32], strides = [1, 1]} : vector<8x128xf32> to vector<8x32xf32>
    %331 = arith.mulf %328, %293 : vector<8x32xf32>
    %332 = arith.mulf %327, %329 : vector<8x32xf32>
    %333 = arith.addf %331, %332 : vector<8x32xf32>
    %334 = math.tanh %333 : vector<8x32xf32>
    %335 = arith.mulf %330, %334 : vector<8x32xf32>
    %336 = vector.extract_strided_slice %18 {offsets = [64, 0], sizes = [8, 128], strides = [1, 1]} : vector<128x128xf32> to vector<8x128xf32>
    %cst_39 = arith.constant dense<0.000000e+00> : vector<8x128xf32>
    %337 = tpu.matmul %314, %1, %cst_39 {dimension_numbers = #tpu.dot_dimension_numbers<[1], [0], [0], [1], [0, 0, 1, 1], [], []>} : vector<8x32xf32>, vector<32x128xf32>, vector<8x128xf32> -> vector<8x128xf32>
    %338 = arith.addf %336, %337 : vector<8x128xf32>
    %339 = vector.broadcast %8 : vector<1x128xf32> to vector<8x128xf32>
    %340 = arith.mulf %338, %339 : vector<8x128xf32>
    %341 = math.tanh %340 : vector<8x128xf32>
    %342 = vector.broadcast %9 : vector<1x128xf32> to vector<8x128xf32>
    %343 = arith.mulf %341, %342 : vector<8x128xf32>
    %344 = vector.broadcast %10 : vector<1x128xf32> to vector<8x128xf32>
    %345 = arith.addf %343, %344 : vector<8x128xf32>
    %346 = vector.extract_strided_slice %345 {offsets = [0, 0], sizes = [8, 32], strides = [1, 1]} : vector<8x128xf32> to vector<8x32xf32>
    %347 = vector.extract_strided_slice %345 {offsets = [0, 32], sizes = [8, 32], strides = [1, 1]} : vector<8x128xf32> to vector<8x32xf32>
    %348 = vector.extract_strided_slice %345 {offsets = [0, 64], sizes = [8, 32], strides = [1, 1]} : vector<8x128xf32> to vector<8x32xf32>
    %349 = vector.extract_strided_slice %345 {offsets = [0, 96], sizes = [8, 32], strides = [1, 1]} : vector<8x128xf32> to vector<8x32xf32>
    %350 = arith.mulf %347, %312 : vector<8x32xf32>
    %351 = arith.mulf %346, %348 : vector<8x32xf32>
    %352 = arith.addf %350, %351 : vector<8x32xf32>
    %353 = math.tanh %352 : vector<8x32xf32>
    %354 = arith.mulf %349, %353 : vector<8x32xf32>
    %cst_40 = arith.constant dense<0.000000e+00> : vector<8x128xf32>
    %355 = tpu.matmul %354, %3, %cst_40 {dimension_numbers = #tpu.dot_dimension_numbers<[1], [0], [0], [1], [0, 0, 1, 1], [], []>} : vector<8x32xf32>, vector<32x128xf32>, vector<8x128xf32> -> vector<8x128xf32>
    %356 = vector.broadcast %5 : vector<1x128xf32> to vector<8x128xf32>
    %357 = arith.addf %355, %356 : vector<8x128xf32>
    %cst_41 = arith.constant dense<0.000000e+00> : vector<8x128xf32>
    %358 = tpu.matmul %335, %4, %cst_41 {dimension_numbers = #tpu.dot_dimension_numbers<[1], [0], [0], [1], [0, 0, 1, 1], [], []>} : vector<8x32xf32>, vector<32x128xf32>, vector<8x128xf32> -> vector<8x128xf32>
    %359 = arith.addf %357, %358 : vector<8x128xf32>
    %360 = vector.broadcast %8 : vector<1x128xf32> to vector<8x128xf32>
    %361 = arith.mulf %359, %360 : vector<8x128xf32>
    %362 = math.tanh %361 : vector<8x128xf32>
    %363 = vector.broadcast %9 : vector<1x128xf32> to vector<8x128xf32>
    %364 = arith.mulf %362, %363 : vector<8x128xf32>
    %365 = vector.broadcast %10 : vector<1x128xf32> to vector<8x128xf32>
    %366 = arith.addf %364, %365 : vector<8x128xf32>
    %367 = vector.extract_strided_slice %366 {offsets = [0, 0], sizes = [8, 32], strides = [1, 1]} : vector<8x128xf32> to vector<8x32xf32>
    %368 = vector.extract_strided_slice %366 {offsets = [0, 32], sizes = [8, 32], strides = [1, 1]} : vector<8x128xf32> to vector<8x32xf32>
    %369 = vector.extract_strided_slice %366 {offsets = [0, 64], sizes = [8, 32], strides = [1, 1]} : vector<8x128xf32> to vector<8x32xf32>
    %370 = vector.extract_strided_slice %366 {offsets = [0, 96], sizes = [8, 32], strides = [1, 1]} : vector<8x128xf32> to vector<8x32xf32>
    %371 = arith.mulf %368, %333 : vector<8x32xf32>
    %372 = arith.mulf %367, %369 : vector<8x32xf32>
    %373 = arith.addf %371, %372 : vector<8x32xf32>
    %374 = math.tanh %373 : vector<8x32xf32>
    %375 = arith.mulf %370, %374 : vector<8x32xf32>
    %376 = vector.extract_strided_slice %18 {offsets = [72, 0], sizes = [8, 128], strides = [1, 1]} : vector<128x128xf32> to vector<8x128xf32>
    %cst_42 = arith.constant dense<0.000000e+00> : vector<8x128xf32>
    %377 = tpu.matmul %354, %1, %cst_42 {dimension_numbers = #tpu.dot_dimension_numbers<[1], [0], [0], [1], [0, 0, 1, 1], [], []>} : vector<8x32xf32>, vector<32x128xf32>, vector<8x128xf32> -> vector<8x128xf32>
    %378 = arith.addf %376, %377 : vector<8x128xf32>
    %379 = vector.broadcast %8 : vector<1x128xf32> to vector<8x128xf32>
    %380 = arith.mulf %378, %379 : vector<8x128xf32>
    %381 = math.tanh %380 : vector<8x128xf32>
    %382 = vector.broadcast %9 : vector<1x128xf32> to vector<8x128xf32>
    %383 = arith.mulf %381, %382 : vector<8x128xf32>
    %384 = vector.broadcast %10 : vector<1x128xf32> to vector<8x128xf32>
    %385 = arith.addf %383, %384 : vector<8x128xf32>
    %386 = vector.extract_strided_slice %385 {offsets = [0, 0], sizes = [8, 32], strides = [1, 1]} : vector<8x128xf32> to vector<8x32xf32>
    %387 = vector.extract_strided_slice %385 {offsets = [0, 32], sizes = [8, 32], strides = [1, 1]} : vector<8x128xf32> to vector<8x32xf32>
    %388 = vector.extract_strided_slice %385 {offsets = [0, 64], sizes = [8, 32], strides = [1, 1]} : vector<8x128xf32> to vector<8x32xf32>
    %389 = vector.extract_strided_slice %385 {offsets = [0, 96], sizes = [8, 32], strides = [1, 1]} : vector<8x128xf32> to vector<8x32xf32>
    %390 = arith.mulf %387, %352 : vector<8x32xf32>
    %391 = arith.mulf %386, %388 : vector<8x32xf32>
    %392 = arith.addf %390, %391 : vector<8x32xf32>
    %393 = math.tanh %392 : vector<8x32xf32>
    %394 = arith.mulf %389, %393 : vector<8x32xf32>
    %cst_43 = arith.constant dense<0.000000e+00> : vector<8x128xf32>
    %395 = tpu.matmul %394, %3, %cst_43 {dimension_numbers = #tpu.dot_dimension_numbers<[1], [0], [0], [1], [0, 0, 1, 1], [], []>} : vector<8x32xf32>, vector<32x128xf32>, vector<8x128xf32> -> vector<8x128xf32>
    %396 = vector.broadcast %5 : vector<1x128xf32> to vector<8x128xf32>
    %397 = arith.addf %395, %396 : vector<8x128xf32>
    %cst_44 = arith.constant dense<0.000000e+00> : vector<8x128xf32>
    %398 = tpu.matmul %375, %4, %cst_44 {dimension_numbers = #tpu.dot_dimension_numbers<[1], [0], [0], [1], [0, 0, 1, 1], [], []>} : vector<8x32xf32>, vector<32x128xf32>, vector<8x128xf32> -> vector<8x128xf32>
    %399 = arith.addf %397, %398 : vector<8x128xf32>
    %400 = vector.broadcast %8 : vector<1x128xf32> to vector<8x128xf32>
    %401 = arith.mulf %399, %400 : vector<8x128xf32>
    %402 = math.tanh %401 : vector<8x128xf32>
    %403 = vector.broadcast %9 : vector<1x128xf32> to vector<8x128xf32>
    %404 = arith.mulf %402, %403 : vector<8x128xf32>
    %405 = vector.broadcast %10 : vector<1x128xf32> to vector<8x128xf32>
    %406 = arith.addf %404, %405 : vector<8x128xf32>
    %407 = vector.extract_strided_slice %406 {offsets = [0, 0], sizes = [8, 32], strides = [1, 1]} : vector<8x128xf32> to vector<8x32xf32>
    %408 = vector.extract_strided_slice %406 {offsets = [0, 32], sizes = [8, 32], strides = [1, 1]} : vector<8x128xf32> to vector<8x32xf32>
    %409 = vector.extract_strided_slice %406 {offsets = [0, 64], sizes = [8, 32], strides = [1, 1]} : vector<8x128xf32> to vector<8x32xf32>
    %410 = vector.extract_strided_slice %406 {offsets = [0, 96], sizes = [8, 32], strides = [1, 1]} : vector<8x128xf32> to vector<8x32xf32>
    %411 = arith.mulf %408, %373 : vector<8x32xf32>
    %412 = arith.mulf %407, %409 : vector<8x32xf32>
    %413 = arith.addf %411, %412 : vector<8x32xf32>
    %414 = math.tanh %413 : vector<8x32xf32>
    %415 = arith.mulf %410, %414 : vector<8x32xf32>
    %416 = vector.extract_strided_slice %18 {offsets = [80, 0], sizes = [8, 128], strides = [1, 1]} : vector<128x128xf32> to vector<8x128xf32>
    %cst_45 = arith.constant dense<0.000000e+00> : vector<8x128xf32>
    %417 = tpu.matmul %394, %1, %cst_45 {dimension_numbers = #tpu.dot_dimension_numbers<[1], [0], [0], [1], [0, 0, 1, 1], [], []>} : vector<8x32xf32>, vector<32x128xf32>, vector<8x128xf32> -> vector<8x128xf32>
    %418 = arith.addf %416, %417 : vector<8x128xf32>
    %419 = vector.broadcast %8 : vector<1x128xf32> to vector<8x128xf32>
    %420 = arith.mulf %418, %419 : vector<8x128xf32>
    %421 = math.tanh %420 : vector<8x128xf32>
    %422 = vector.broadcast %9 : vector<1x128xf32> to vector<8x128xf32>
    %423 = arith.mulf %421, %422 : vector<8x128xf32>
    %424 = vector.broadcast %10 : vector<1x128xf32> to vector<8x128xf32>
    %425 = arith.addf %423, %424 : vector<8x128xf32>
    %426 = vector.extract_strided_slice %425 {offsets = [0, 0], sizes = [8, 32], strides = [1, 1]} : vector<8x128xf32> to vector<8x32xf32>
    %427 = vector.extract_strided_slice %425 {offsets = [0, 32], sizes = [8, 32], strides = [1, 1]} : vector<8x128xf32> to vector<8x32xf32>
    %428 = vector.extract_strided_slice %425 {offsets = [0, 64], sizes = [8, 32], strides = [1, 1]} : vector<8x128xf32> to vector<8x32xf32>
    %429 = vector.extract_strided_slice %425 {offsets = [0, 96], sizes = [8, 32], strides = [1, 1]} : vector<8x128xf32> to vector<8x32xf32>
    %430 = arith.mulf %427, %392 : vector<8x32xf32>
    %431 = arith.mulf %426, %428 : vector<8x32xf32>
    %432 = arith.addf %430, %431 : vector<8x32xf32>
    %433 = math.tanh %432 : vector<8x32xf32>
    %434 = arith.mulf %429, %433 : vector<8x32xf32>
    %cst_46 = arith.constant dense<0.000000e+00> : vector<8x128xf32>
    %435 = tpu.matmul %434, %3, %cst_46 {dimension_numbers = #tpu.dot_dimension_numbers<[1], [0], [0], [1], [0, 0, 1, 1], [], []>} : vector<8x32xf32>, vector<32x128xf32>, vector<8x128xf32> -> vector<8x128xf32>
    %436 = vector.broadcast %5 : vector<1x128xf32> to vector<8x128xf32>
    %437 = arith.addf %435, %436 : vector<8x128xf32>
    %cst_47 = arith.constant dense<0.000000e+00> : vector<8x128xf32>
    %438 = tpu.matmul %415, %4, %cst_47 {dimension_numbers = #tpu.dot_dimension_numbers<[1], [0], [0], [1], [0, 0, 1, 1], [], []>} : vector<8x32xf32>, vector<32x128xf32>, vector<8x128xf32> -> vector<8x128xf32>
    %439 = arith.addf %437, %438 : vector<8x128xf32>
    %440 = vector.broadcast %8 : vector<1x128xf32> to vector<8x128xf32>
    %441 = arith.mulf %439, %440 : vector<8x128xf32>
    %442 = math.tanh %441 : vector<8x128xf32>
    %443 = vector.broadcast %9 : vector<1x128xf32> to vector<8x128xf32>
    %444 = arith.mulf %442, %443 : vector<8x128xf32>
    %445 = vector.broadcast %10 : vector<1x128xf32> to vector<8x128xf32>
    %446 = arith.addf %444, %445 : vector<8x128xf32>
    %447 = vector.extract_strided_slice %446 {offsets = [0, 0], sizes = [8, 32], strides = [1, 1]} : vector<8x128xf32> to vector<8x32xf32>
    %448 = vector.extract_strided_slice %446 {offsets = [0, 32], sizes = [8, 32], strides = [1, 1]} : vector<8x128xf32> to vector<8x32xf32>
    %449 = vector.extract_strided_slice %446 {offsets = [0, 64], sizes = [8, 32], strides = [1, 1]} : vector<8x128xf32> to vector<8x32xf32>
    %450 = vector.extract_strided_slice %446 {offsets = [0, 96], sizes = [8, 32], strides = [1, 1]} : vector<8x128xf32> to vector<8x32xf32>
    %451 = arith.mulf %448, %413 : vector<8x32xf32>
    %452 = arith.mulf %447, %449 : vector<8x32xf32>
    %453 = arith.addf %451, %452 : vector<8x32xf32>
    %454 = math.tanh %453 : vector<8x32xf32>
    %455 = arith.mulf %450, %454 : vector<8x32xf32>
    %456 = vector.extract_strided_slice %18 {offsets = [88, 0], sizes = [8, 128], strides = [1, 1]} : vector<128x128xf32> to vector<8x128xf32>
    %cst_48 = arith.constant dense<0.000000e+00> : vector<8x128xf32>
    %457 = tpu.matmul %434, %1, %cst_48 {dimension_numbers = #tpu.dot_dimension_numbers<[1], [0], [0], [1], [0, 0, 1, 1], [], []>} : vector<8x32xf32>, vector<32x128xf32>, vector<8x128xf32> -> vector<8x128xf32>
    %458 = arith.addf %456, %457 : vector<8x128xf32>
    %459 = vector.broadcast %8 : vector<1x128xf32> to vector<8x128xf32>
    %460 = arith.mulf %458, %459 : vector<8x128xf32>
    %461 = math.tanh %460 : vector<8x128xf32>
    %462 = vector.broadcast %9 : vector<1x128xf32> to vector<8x128xf32>
    %463 = arith.mulf %461, %462 : vector<8x128xf32>
    %464 = vector.broadcast %10 : vector<1x128xf32> to vector<8x128xf32>
    %465 = arith.addf %463, %464 : vector<8x128xf32>
    %466 = vector.extract_strided_slice %465 {offsets = [0, 0], sizes = [8, 32], strides = [1, 1]} : vector<8x128xf32> to vector<8x32xf32>
    %467 = vector.extract_strided_slice %465 {offsets = [0, 32], sizes = [8, 32], strides = [1, 1]} : vector<8x128xf32> to vector<8x32xf32>
    %468 = vector.extract_strided_slice %465 {offsets = [0, 64], sizes = [8, 32], strides = [1, 1]} : vector<8x128xf32> to vector<8x32xf32>
    %469 = vector.extract_strided_slice %465 {offsets = [0, 96], sizes = [8, 32], strides = [1, 1]} : vector<8x128xf32> to vector<8x32xf32>
    %470 = arith.mulf %467, %432 : vector<8x32xf32>
    %471 = arith.mulf %466, %468 : vector<8x32xf32>
    %472 = arith.addf %470, %471 : vector<8x32xf32>
    %473 = math.tanh %472 : vector<8x32xf32>
    %474 = arith.mulf %469, %473 : vector<8x32xf32>
    %cst_49 = arith.constant dense<0.000000e+00> : vector<8x128xf32>
    %475 = tpu.matmul %474, %3, %cst_49 {dimension_numbers = #tpu.dot_dimension_numbers<[1], [0], [0], [1], [0, 0, 1, 1], [], []>} : vector<8x32xf32>, vector<32x128xf32>, vector<8x128xf32> -> vector<8x128xf32>
    %476 = vector.broadcast %5 : vector<1x128xf32> to vector<8x128xf32>
    %477 = arith.addf %475, %476 : vector<8x128xf32>
    %cst_50 = arith.constant dense<0.000000e+00> : vector<8x128xf32>
    %478 = tpu.matmul %455, %4, %cst_50 {dimension_numbers = #tpu.dot_dimension_numbers<[1], [0], [0], [1], [0, 0, 1, 1], [], []>} : vector<8x32xf32>, vector<32x128xf32>, vector<8x128xf32> -> vector<8x128xf32>
    %479 = arith.addf %477, %478 : vector<8x128xf32>
    %480 = vector.broadcast %8 : vector<1x128xf32> to vector<8x128xf32>
    %481 = arith.mulf %479, %480 : vector<8x128xf32>
    %482 = math.tanh %481 : vector<8x128xf32>
    %483 = vector.broadcast %9 : vector<1x128xf32> to vector<8x128xf32>
    %484 = arith.mulf %482, %483 : vector<8x128xf32>
    %485 = vector.broadcast %10 : vector<1x128xf32> to vector<8x128xf32>
    %486 = arith.addf %484, %485 : vector<8x128xf32>
    %487 = vector.extract_strided_slice %486 {offsets = [0, 0], sizes = [8, 32], strides = [1, 1]} : vector<8x128xf32> to vector<8x32xf32>
    %488 = vector.extract_strided_slice %486 {offsets = [0, 32], sizes = [8, 32], strides = [1, 1]} : vector<8x128xf32> to vector<8x32xf32>
    %489 = vector.extract_strided_slice %486 {offsets = [0, 64], sizes = [8, 32], strides = [1, 1]} : vector<8x128xf32> to vector<8x32xf32>
    %490 = vector.extract_strided_slice %486 {offsets = [0, 96], sizes = [8, 32], strides = [1, 1]} : vector<8x128xf32> to vector<8x32xf32>
    %491 = arith.mulf %488, %453 : vector<8x32xf32>
    %492 = arith.mulf %487, %489 : vector<8x32xf32>
    %493 = arith.addf %491, %492 : vector<8x32xf32>
    %494 = math.tanh %493 : vector<8x32xf32>
    %495 = arith.mulf %490, %494 : vector<8x32xf32>
    %496 = vector.extract_strided_slice %18 {offsets = [96, 0], sizes = [8, 128], strides = [1, 1]} : vector<128x128xf32> to vector<8x128xf32>
    %cst_51 = arith.constant dense<0.000000e+00> : vector<8x128xf32>
    %497 = tpu.matmul %474, %1, %cst_51 {dimension_numbers = #tpu.dot_dimension_numbers<[1], [0], [0], [1], [0, 0, 1, 1], [], []>} : vector<8x32xf32>, vector<32x128xf32>, vector<8x128xf32> -> vector<8x128xf32>
    %498 = arith.addf %496, %497 : vector<8x128xf32>
    %499 = vector.broadcast %8 : vector<1x128xf32> to vector<8x128xf32>
    %500 = arith.mulf %498, %499 : vector<8x128xf32>
    %501 = math.tanh %500 : vector<8x128xf32>
    %502 = vector.broadcast %9 : vector<1x128xf32> to vector<8x128xf32>
    %503 = arith.mulf %501, %502 : vector<8x128xf32>
    %504 = vector.broadcast %10 : vector<1x128xf32> to vector<8x128xf32>
    %505 = arith.addf %503, %504 : vector<8x128xf32>
    %506 = vector.extract_strided_slice %505 {offsets = [0, 0], sizes = [8, 32], strides = [1, 1]} : vector<8x128xf32> to vector<8x32xf32>
    %507 = vector.extract_strided_slice %505 {offsets = [0, 32], sizes = [8, 32], strides = [1, 1]} : vector<8x128xf32> to vector<8x32xf32>
    %508 = vector.extract_strided_slice %505 {offsets = [0, 64], sizes = [8, 32], strides = [1, 1]} : vector<8x128xf32> to vector<8x32xf32>
    %509 = vector.extract_strided_slice %505 {offsets = [0, 96], sizes = [8, 32], strides = [1, 1]} : vector<8x128xf32> to vector<8x32xf32>
    %510 = arith.mulf %507, %472 : vector<8x32xf32>
    %511 = arith.mulf %506, %508 : vector<8x32xf32>
    %512 = arith.addf %510, %511 : vector<8x32xf32>
    %513 = math.tanh %512 : vector<8x32xf32>
    %514 = arith.mulf %509, %513 : vector<8x32xf32>
    %cst_52 = arith.constant dense<0.000000e+00> : vector<8x128xf32>
    %515 = tpu.matmul %514, %3, %cst_52 {dimension_numbers = #tpu.dot_dimension_numbers<[1], [0], [0], [1], [0, 0, 1, 1], [], []>} : vector<8x32xf32>, vector<32x128xf32>, vector<8x128xf32> -> vector<8x128xf32>
    %516 = vector.broadcast %5 : vector<1x128xf32> to vector<8x128xf32>
    %517 = arith.addf %515, %516 : vector<8x128xf32>
    %cst_53 = arith.constant dense<0.000000e+00> : vector<8x128xf32>
    %518 = tpu.matmul %495, %4, %cst_53 {dimension_numbers = #tpu.dot_dimension_numbers<[1], [0], [0], [1], [0, 0, 1, 1], [], []>} : vector<8x32xf32>, vector<32x128xf32>, vector<8x128xf32> -> vector<8x128xf32>
    %519 = arith.addf %517, %518 : vector<8x128xf32>
    %520 = vector.broadcast %8 : vector<1x128xf32> to vector<8x128xf32>
    %521 = arith.mulf %519, %520 : vector<8x128xf32>
    %522 = math.tanh %521 : vector<8x128xf32>
    %523 = vector.broadcast %9 : vector<1x128xf32> to vector<8x128xf32>
    %524 = arith.mulf %522, %523 : vector<8x128xf32>
    %525 = vector.broadcast %10 : vector<1x128xf32> to vector<8x128xf32>
    %526 = arith.addf %524, %525 : vector<8x128xf32>
    %527 = vector.extract_strided_slice %526 {offsets = [0, 0], sizes = [8, 32], strides = [1, 1]} : vector<8x128xf32> to vector<8x32xf32>
    %528 = vector.extract_strided_slice %526 {offsets = [0, 32], sizes = [8, 32], strides = [1, 1]} : vector<8x128xf32> to vector<8x32xf32>
    %529 = vector.extract_strided_slice %526 {offsets = [0, 64], sizes = [8, 32], strides = [1, 1]} : vector<8x128xf32> to vector<8x32xf32>
    %530 = vector.extract_strided_slice %526 {offsets = [0, 96], sizes = [8, 32], strides = [1, 1]} : vector<8x128xf32> to vector<8x32xf32>
    %531 = arith.mulf %528, %493 : vector<8x32xf32>
    %532 = arith.mulf %527, %529 : vector<8x32xf32>
    %533 = arith.addf %531, %532 : vector<8x32xf32>
    %534 = math.tanh %533 : vector<8x32xf32>
    %535 = arith.mulf %530, %534 : vector<8x32xf32>
    %536 = vector.extract_strided_slice %18 {offsets = [104, 0], sizes = [8, 128], strides = [1, 1]} : vector<128x128xf32> to vector<8x128xf32>
    %cst_54 = arith.constant dense<0.000000e+00> : vector<8x128xf32>
    %537 = tpu.matmul %514, %1, %cst_54 {dimension_numbers = #tpu.dot_dimension_numbers<[1], [0], [0], [1], [0, 0, 1, 1], [], []>} : vector<8x32xf32>, vector<32x128xf32>, vector<8x128xf32> -> vector<8x128xf32>
    %538 = arith.addf %536, %537 : vector<8x128xf32>
    %539 = vector.broadcast %8 : vector<1x128xf32> to vector<8x128xf32>
    %540 = arith.mulf %538, %539 : vector<8x128xf32>
    %541 = math.tanh %540 : vector<8x128xf32>
    %542 = vector.broadcast %9 : vector<1x128xf32> to vector<8x128xf32>
    %543 = arith.mulf %541, %542 : vector<8x128xf32>
    %544 = vector.broadcast %10 : vector<1x128xf32> to vector<8x128xf32>
    %545 = arith.addf %543, %544 : vector<8x128xf32>
    %546 = vector.extract_strided_slice %545 {offsets = [0, 0], sizes = [8, 32], strides = [1, 1]} : vector<8x128xf32> to vector<8x32xf32>
    %547 = vector.extract_strided_slice %545 {offsets = [0, 32], sizes = [8, 32], strides = [1, 1]} : vector<8x128xf32> to vector<8x32xf32>
    %548 = vector.extract_strided_slice %545 {offsets = [0, 64], sizes = [8, 32], strides = [1, 1]} : vector<8x128xf32> to vector<8x32xf32>
    %549 = vector.extract_strided_slice %545 {offsets = [0, 96], sizes = [8, 32], strides = [1, 1]} : vector<8x128xf32> to vector<8x32xf32>
    %550 = arith.mulf %547, %512 : vector<8x32xf32>
    %551 = arith.mulf %546, %548 : vector<8x32xf32>
    %552 = arith.addf %550, %551 : vector<8x32xf32>
    %553 = math.tanh %552 : vector<8x32xf32>
    %554 = arith.mulf %549, %553 : vector<8x32xf32>
    %cst_55 = arith.constant dense<0.000000e+00> : vector<8x128xf32>
    %555 = tpu.matmul %554, %3, %cst_55 {dimension_numbers = #tpu.dot_dimension_numbers<[1], [0], [0], [1], [0, 0, 1, 1], [], []>} : vector<8x32xf32>, vector<32x128xf32>, vector<8x128xf32> -> vector<8x128xf32>
    %556 = vector.broadcast %5 : vector<1x128xf32> to vector<8x128xf32>
    %557 = arith.addf %555, %556 : vector<8x128xf32>
    %cst_56 = arith.constant dense<0.000000e+00> : vector<8x128xf32>
    %558 = tpu.matmul %535, %4, %cst_56 {dimension_numbers = #tpu.dot_dimension_numbers<[1], [0], [0], [1], [0, 0, 1, 1], [], []>} : vector<8x32xf32>, vector<32x128xf32>, vector<8x128xf32> -> vector<8x128xf32>
    %559 = arith.addf %557, %558 : vector<8x128xf32>
    %560 = vector.broadcast %8 : vector<1x128xf32> to vector<8x128xf32>
    %561 = arith.mulf %559, %560 : vector<8x128xf32>
    %562 = math.tanh %561 : vector<8x128xf32>
    %563 = vector.broadcast %9 : vector<1x128xf32> to vector<8x128xf32>
    %564 = arith.mulf %562, %563 : vector<8x128xf32>
    %565 = vector.broadcast %10 : vector<1x128xf32> to vector<8x128xf32>
    %566 = arith.addf %564, %565 : vector<8x128xf32>
    %567 = vector.extract_strided_slice %566 {offsets = [0, 0], sizes = [8, 32], strides = [1, 1]} : vector<8x128xf32> to vector<8x32xf32>
    %568 = vector.extract_strided_slice %566 {offsets = [0, 32], sizes = [8, 32], strides = [1, 1]} : vector<8x128xf32> to vector<8x32xf32>
    %569 = vector.extract_strided_slice %566 {offsets = [0, 64], sizes = [8, 32], strides = [1, 1]} : vector<8x128xf32> to vector<8x32xf32>
    %570 = vector.extract_strided_slice %566 {offsets = [0, 96], sizes = [8, 32], strides = [1, 1]} : vector<8x128xf32> to vector<8x32xf32>
    %571 = arith.mulf %568, %533 : vector<8x32xf32>
    %572 = arith.mulf %567, %569 : vector<8x32xf32>
    %573 = arith.addf %571, %572 : vector<8x32xf32>
    %574 = math.tanh %573 : vector<8x32xf32>
    %575 = arith.mulf %570, %574 : vector<8x32xf32>
    %576 = vector.extract_strided_slice %18 {offsets = [112, 0], sizes = [8, 128], strides = [1, 1]} : vector<128x128xf32> to vector<8x128xf32>
    %cst_57 = arith.constant dense<0.000000e+00> : vector<8x128xf32>
    %577 = tpu.matmul %554, %1, %cst_57 {dimension_numbers = #tpu.dot_dimension_numbers<[1], [0], [0], [1], [0, 0, 1, 1], [], []>} : vector<8x32xf32>, vector<32x128xf32>, vector<8x128xf32> -> vector<8x128xf32>
    %578 = arith.addf %576, %577 : vector<8x128xf32>
    %579 = vector.broadcast %8 : vector<1x128xf32> to vector<8x128xf32>
    %580 = arith.mulf %578, %579 : vector<8x128xf32>
    %581 = math.tanh %580 : vector<8x128xf32>
    %582 = vector.broadcast %9 : vector<1x128xf32> to vector<8x128xf32>
    %583 = arith.mulf %581, %582 : vector<8x128xf32>
    %584 = vector.broadcast %10 : vector<1x128xf32> to vector<8x128xf32>
    %585 = arith.addf %583, %584 : vector<8x128xf32>
    %586 = vector.extract_strided_slice %585 {offsets = [0, 0], sizes = [8, 32], strides = [1, 1]} : vector<8x128xf32> to vector<8x32xf32>
    %587 = vector.extract_strided_slice %585 {offsets = [0, 32], sizes = [8, 32], strides = [1, 1]} : vector<8x128xf32> to vector<8x32xf32>
    %588 = vector.extract_strided_slice %585 {offsets = [0, 64], sizes = [8, 32], strides = [1, 1]} : vector<8x128xf32> to vector<8x32xf32>
    %589 = vector.extract_strided_slice %585 {offsets = [0, 96], sizes = [8, 32], strides = [1, 1]} : vector<8x128xf32> to vector<8x32xf32>
    %590 = arith.mulf %587, %552 : vector<8x32xf32>
    %591 = arith.mulf %586, %588 : vector<8x32xf32>
    %592 = arith.addf %590, %591 : vector<8x32xf32>
    %593 = math.tanh %592 : vector<8x32xf32>
    %594 = arith.mulf %589, %593 : vector<8x32xf32>
    %cst_58 = arith.constant dense<0.000000e+00> : vector<8x128xf32>
    %595 = tpu.matmul %594, %3, %cst_58 {dimension_numbers = #tpu.dot_dimension_numbers<[1], [0], [0], [1], [0, 0, 1, 1], [], []>} : vector<8x32xf32>, vector<32x128xf32>, vector<8x128xf32> -> vector<8x128xf32>
    %596 = vector.broadcast %5 : vector<1x128xf32> to vector<8x128xf32>
    %597 = arith.addf %595, %596 : vector<8x128xf32>
    %cst_59 = arith.constant dense<0.000000e+00> : vector<8x128xf32>
    %598 = tpu.matmul %575, %4, %cst_59 {dimension_numbers = #tpu.dot_dimension_numbers<[1], [0], [0], [1], [0, 0, 1, 1], [], []>} : vector<8x32xf32>, vector<32x128xf32>, vector<8x128xf32> -> vector<8x128xf32>
    %599 = arith.addf %597, %598 : vector<8x128xf32>
    %600 = vector.broadcast %8 : vector<1x128xf32> to vector<8x128xf32>
    %601 = arith.mulf %599, %600 : vector<8x128xf32>
    %602 = math.tanh %601 : vector<8x128xf32>
    %603 = vector.broadcast %9 : vector<1x128xf32> to vector<8x128xf32>
    %604 = arith.mulf %602, %603 : vector<8x128xf32>
    %605 = vector.broadcast %10 : vector<1x128xf32> to vector<8x128xf32>
    %606 = arith.addf %604, %605 : vector<8x128xf32>
    %607 = vector.extract_strided_slice %606 {offsets = [0, 0], sizes = [8, 32], strides = [1, 1]} : vector<8x128xf32> to vector<8x32xf32>
    %608 = vector.extract_strided_slice %606 {offsets = [0, 32], sizes = [8, 32], strides = [1, 1]} : vector<8x128xf32> to vector<8x32xf32>
    %609 = vector.extract_strided_slice %606 {offsets = [0, 64], sizes = [8, 32], strides = [1, 1]} : vector<8x128xf32> to vector<8x32xf32>
    %610 = vector.extract_strided_slice %606 {offsets = [0, 96], sizes = [8, 32], strides = [1, 1]} : vector<8x128xf32> to vector<8x32xf32>
    %611 = arith.mulf %608, %573 : vector<8x32xf32>
    %612 = arith.mulf %607, %609 : vector<8x32xf32>
    %613 = arith.addf %611, %612 : vector<8x32xf32>
    %614 = math.tanh %613 : vector<8x32xf32>
    %615 = arith.mulf %610, %614 : vector<8x32xf32>
    %616 = vector.extract_strided_slice %18 {offsets = [120, 0], sizes = [8, 128], strides = [1, 1]} : vector<128x128xf32> to vector<8x128xf32>
    %cst_60 = arith.constant dense<0.000000e+00> : vector<8x128xf32>
    %617 = tpu.matmul %594, %1, %cst_60 {dimension_numbers = #tpu.dot_dimension_numbers<[1], [0], [0], [1], [0, 0, 1, 1], [], []>} : vector<8x32xf32>, vector<32x128xf32>, vector<8x128xf32> -> vector<8x128xf32>
    %618 = arith.addf %616, %617 : vector<8x128xf32>
    %619 = vector.broadcast %8 : vector<1x128xf32> to vector<8x128xf32>
    %620 = arith.mulf %618, %619 : vector<8x128xf32>
    %621 = math.tanh %620 : vector<8x128xf32>
    %622 = vector.broadcast %9 : vector<1x128xf32> to vector<8x128xf32>
    %623 = arith.mulf %621, %622 : vector<8x128xf32>
    %624 = vector.broadcast %10 : vector<1x128xf32> to vector<8x128xf32>
    %625 = arith.addf %623, %624 : vector<8x128xf32>
    %626 = vector.extract_strided_slice %625 {offsets = [0, 0], sizes = [8, 32], strides = [1, 1]} : vector<8x128xf32> to vector<8x32xf32>
    %627 = vector.extract_strided_slice %625 {offsets = [0, 32], sizes = [8, 32], strides = [1, 1]} : vector<8x128xf32> to vector<8x32xf32>
    %628 = vector.extract_strided_slice %625 {offsets = [0, 64], sizes = [8, 32], strides = [1, 1]} : vector<8x128xf32> to vector<8x32xf32>
    %629 = vector.extract_strided_slice %625 {offsets = [0, 96], sizes = [8, 32], strides = [1, 1]} : vector<8x128xf32> to vector<8x32xf32>
    %630 = arith.mulf %627, %592 : vector<8x32xf32>
    %631 = arith.mulf %626, %628 : vector<8x32xf32>
    %632 = arith.addf %630, %631 : vector<8x32xf32>
    %633 = math.tanh %632 : vector<8x32xf32>
    %634 = arith.mulf %629, %633 : vector<8x32xf32>
    %cst_61 = arith.constant dense<0.000000e+00> : vector<8x128xf32>
    %635 = tpu.matmul %634, %3, %cst_61 {dimension_numbers = #tpu.dot_dimension_numbers<[1], [0], [0], [1], [0, 0, 1, 1], [], []>} : vector<8x32xf32>, vector<32x128xf32>, vector<8x128xf32> -> vector<8x128xf32>
    %636 = vector.broadcast %5 : vector<1x128xf32> to vector<8x128xf32>
    %637 = arith.addf %635, %636 : vector<8x128xf32>
    %cst_62 = arith.constant dense<0.000000e+00> : vector<8x128xf32>
    %638 = tpu.matmul %615, %4, %cst_62 {dimension_numbers = #tpu.dot_dimension_numbers<[1], [0], [0], [1], [0, 0, 1, 1], [], []>} : vector<8x32xf32>, vector<32x128xf32>, vector<8x128xf32> -> vector<8x128xf32>
    %639 = arith.addf %637, %638 : vector<8x128xf32>
    %640 = vector.broadcast %8 : vector<1x128xf32> to vector<8x128xf32>
    %641 = arith.mulf %639, %640 : vector<8x128xf32>
    %642 = math.tanh %641 : vector<8x128xf32>
    %643 = vector.broadcast %9 : vector<1x128xf32> to vector<8x128xf32>
    %644 = arith.mulf %642, %643 : vector<8x128xf32>
    %645 = vector.broadcast %10 : vector<1x128xf32> to vector<8x128xf32>
    %646 = arith.addf %644, %645 : vector<8x128xf32>
    %647 = vector.extract_strided_slice %646 {offsets = [0, 0], sizes = [8, 32], strides = [1, 1]} : vector<8x128xf32> to vector<8x32xf32>
    %648 = vector.extract_strided_slice %646 {offsets = [0, 32], sizes = [8, 32], strides = [1, 1]} : vector<8x128xf32> to vector<8x32xf32>
    %649 = vector.extract_strided_slice %646 {offsets = [0, 64], sizes = [8, 32], strides = [1, 1]} : vector<8x128xf32> to vector<8x32xf32>
    %650 = vector.extract_strided_slice %646 {offsets = [0, 96], sizes = [8, 32], strides = [1, 1]} : vector<8x128xf32> to vector<8x32xf32>
    %651 = arith.mulf %648, %613 : vector<8x32xf32>
    %652 = arith.mulf %647, %649 : vector<8x32xf32>
    %653 = arith.addf %651, %652 : vector<8x32xf32>
    %654 = math.tanh %653 : vector<8x32xf32>
    %655 = arith.mulf %650, %654 : vector<8x32xf32>
    %cst_63 = arith.constant dense<0.000000e+00> : vector<8x128xf32>
    %656 = tpu.matmul %655, %6, %cst_63 {dimension_numbers = #tpu.dot_dimension_numbers<[1], [0], [0], [1], [0, 0, 1, 1], [], []>} : vector<8x32xf32>, vector<32x128xf32>, vector<8x128xf32> -> vector<8x128xf32>
    %657 = vector.broadcast %7 : vector<1x128xf32> to vector<8x128xf32>
    %658 = arith.addf %656, %657 : vector<8x128xf32>
    %c0_64 = arith.constant 0 : index
    %c0_65 = arith.constant 0 : index
    %659 = vector.load %arg2[%c0_64, %c0_65] : memref<8x128xf32, #tpu.memory_space<vmem>>, vector<8x128xf32>
    tpu.vector_store %arg2[%c0_64, %c0_65], %658 {strides = array<i32>} : memref<8x128xf32, #tpu.memory_space<vmem>>, vector<8x128xf32>,
    return
  }
}

</mosaic_0001>

<llo_original>
// kernel: seq_glm_forward.1
$region0: #{seq_glm_forward.1}
  #allocation0 [shape = 'u32[]', space=smem, size = 0x4, offset = 0x4, fixed_abs, tag = 'smem constant byte address 0x4 - core index']
  #allocation1 [shape = 'u32[144,128]{1,0:T(1,128)}', space=vmem, size = 0x12000, scoped, tag = 'internal scratch']
  %s0 = inlined_call_operand.vmem [shape: f32[304,128], index: 0, kind: input, shape index: {}]
  %s1 = inlined_call_operand.vmem [shape: f32[128,16], index: 1, kind: input, shape index: {}]
  %s2 = inlined_call_operand.vmem [shape: f32[8,128], index: 2, kind: output, shape index: {}]
  %s3 = sld [smem:[#allocation0]]
  $region18: #{seq_glm_forward.1} parent=0
    _
  %s5 = ssub.s32 1, %s3
  %s6 = scalar_select 0, %s5, %s3
  // Predicated region
  $region2: #{seq_glm_forward.1} parent=0 // pred_check
    _
  $region3: #{seq_glm_forward.1} parent=0 // pred_check_branch
    %8 = sbr.rel (0) target = $region5
  $region4: #{seq_glm_forward.1} parent=0 // pred_region
    _
  $region5: #{seq_glm_forward.1} parent=0 // pred_fallthru
    _
  // Predicated region
  $region6: #{seq_glm_forward.1} parent=0 // pred_check
    _
  $region7: #{seq_glm_forward.1} parent=0 // pred_check_branch
    %10 = sbr.rel (0) target = $region9
  $region8: #{seq_glm_forward.1} parent=0 // pred_region
    _
  $region9: #{seq_glm_forward.1} parent=0 // pred_fallthru
    _
  %v11 = vld [vmem:[%s0] sm:$0xff]
  %v12 = vld [vmem:[%s0 + $0x8] sm:$0xff]
  %v13 = vld [vmem:[%s0 + $0x10] sm:$0xff]
  %v14 = vld [vmem:[%s0 + $0x18] sm:$0xff]
  %v15 = vld [vmem:[%s0 + $0x20] sm:$0xff]
  %v16 = vld [vmem:[%s0 + $0x28] sm:$0xff]
  %v17 = vld [vmem:[%s0 + $0x30] sm:$0x1]
  %v18 = vld [vmem:[%s0 + $0x38] sm:$0xff]
  %v19 = vld [vmem:[%s0 + $0x40] sm:$0xff]
  %v20 = vld [vmem:[%s0 + $0x48] sm:$0xff]
  %v21 = vld [vmem:[%s0 + $0x50] sm:$0xff]
  %v22 = vld [vmem:[%s0 + $0x58] sm:$0xff]
  %v23 = vld [vmem:[%s0 + $0x60] sm:$0xff]
  %v24 = vld [vmem:[%s0 + $0x68] sm:$0xff]
  %v25 = vld [vmem:[%s0 + $0x70] sm:$0xff]
  %v26 = vld [vmem:[%s0 + $0x78] sm:$0x1]
  %v27 = vld [vmem:[%s0 + $0x80] sm:$0xff]
  %v28 = vld [vmem:[%s0 + $0x88] sm:$0xff]
  %v29 = vld [vmem:[%s0 + $0x90] sm:$0xff]
  %v30 = vld [vmem:[%s0 + $0x98] sm:$0xff]
  %v31 = vld [vmem:[%s0 + $0xa0] sm:$0x1]
  %v32 = vld [vmem:[%s0 + $0xa8] sm:$0x1]
  %v33 = vld [vmem:[%s0 + $0xa9] sm:$0x1]
  %v34 = vld [vmem:[%s0 + $0xaa] sm:$0x1]
  %v35 = vld [vmem:[%s0 + $0xb0] sm:$0xff]
  %v36 = vld [vmem:[%s0 + $0xb8] sm:$0xff]
  %v37 = vld [vmem:[%s0 + $0xc0] sm:$0xff]
  %v38 = vld [vmem:[%s0 + $0xc8] sm:$0xff]
  %v39 = vld [vmem:[%s0 + $0xd0] sm:$0xff]
  %v40 = vld [vmem:[%s0 + $0xd8] sm:$0xff]
  %v41 = vld [vmem:[%s0 + $0xe0] sm:$0xff]
  %v42 = vld [vmem:[%s0 + $0xe8] sm:$0xff]
  %v43 = vld [vmem:[%s0 + $0xf0] sm:$0xff]
  %v44 = vld [vmem:[%s0 + $0xf8] sm:$0xff]
  %v45 = vld [vmem:[%s0 + $0x100] sm:$0xff]
  %v46 = vld [vmem:[%s0 + $0x108] sm:$0xff]
  %v47 = vld [vmem:[%s0 + $0x110] sm:$0xff]
  %v48 = vld [vmem:[%s0 + $0x118] sm:$0xff]
  %v49 = vld [vmem:[%s0 + $0x120] sm:$0xff]
  %v50 = vld [vmem:[%s0 + $0x128] sm:$0xff]
  %v51 = vld [vmem:[%s1] sm:$0xff]
  %v52 = vld [vmem:[%s1 + $0x8] sm:$0xff]
  %v53 = vld [vmem:[%s1 + $0x10] sm:$0xff]
  %v54 = vld [vmem:[%s1 + $0x18] sm:$0xff]
  %v55 = vld [vmem:[%s1 + $0x20] sm:$0xff]
  %v56 = vld [vmem:[%s1 + $0x28] sm:$0xff]
  %v57 = vld [vmem:[%s1 + $0x30] sm:$0xff]
  %v58 = vld [vmem:[%s1 + $0x38] sm:$0xff]
  %v59 = vld [vmem:[%s1 + $0x40] sm:$0xff]
  %v60 = vld [vmem:[%s1 + $0x48] sm:$0xff]
  %v61 = vld [vmem:[%s1 + $0x50] sm:$0xff]
  %v62 = vld [vmem:[%s1 + $0x58] sm:$0xff]
  %v63 = vld [vmem:[%s1 + $0x60] sm:$0xff]
  %v64 = vld [vmem:[%s1 + $0x68] sm:$0xff]
  %v65 = vld [vmem:[%s1 + $0x70] sm:$0xff]
  %v66 = vld [vmem:[%s1 + $0x78] sm:$0xff]
  %67 = vmatprep.subr.mxu0 0.0
  %68 = vmatpush1.msra.mxu0 %v51
  %69 = vmatprep.subr.mxu0 0.0
  %70 = vmatpush1.msra.mxu0 %v52
  %71 = vmatprep.subr.mxu0 0.0
  %72 = vmatpush1.msra.mxu0 %v53
  %73 = vmatprep.subr.mxu0 0.0
  %74 = vmatpush1.msra.mxu0 %v54
  %75 = vmatprep.subr.mxu0 0.0
  %76 = vmatpush1.msra.mxu0 %v55
  %77 = vmatprep.subr.mxu0 0.0
  %78 = vmatpush1.msra.mxu0 %v56
  %79 = vmatprep.subr.mxu0 0.0
  %80 = vmatpush1.msra.mxu0 %v57
  %81 = vmatprep.subr.mxu0 0.0
  %82 = vmatpush1.msra.mxu0 %v58
  %83 = vmatprep.subr.mxu0 0.0
  %84 = vmatpush1.msra.mxu0 %v59
  %85 = vmatprep.subr.mxu0 0.0
  %86 = vmatpush1.msra.mxu0 %v60
  %87 = vmatprep.subr.mxu0 0.0
  %88 = vmatpush1.msra.mxu0 %v61
  %89 = vmatprep.subr.mxu0 0.0
  %90 = vmatpush1.msra.mxu0 %v62
  %91 = vmatprep.subr.mxu0 0.0
  %92 = vmatpush1.msra.mxu0 %v63
  %93 = vmatprep.subr.mxu0 0.0
  %94 = vmatpush1.msra.mxu0 %v64
  %95 = vmatprep.subr.mxu0 0.0
  %96 = vmatpush1.msra.mxu0 %v65
  %97 = vmatprep.subr.mxu0 0.0
  %98 = vmatpush1.msra.mxu0 %v66
  %99 = vmatprep.subr.mxu0 0.0
  %100 = vmatpush1.msra.mxu0 0.0
  %101 = vmatprep.subr.mxu0 0.0
  %102 = vmatpush1.msra.mxu0 0.0
  %103 = vmatprep.subr.mxu0 0.0
  %104 = vmatpush1.msra.mxu0 0.0
  %105 = vmatprep.subr.mxu0 0.0
  %106 = vmatpush1.msra.mxu0 0.0
  %107 = vmatprep.subr.mxu0 0.0
  %108 = vmatpush1.msra.mxu0 0.0
  %109 = vmatprep.subr.mxu0 0.0
  %110 = vmatpush1.msra.mxu0 0.0
  %111 = vmatprep.subr.mxu0 0.0
  %112 = vmatpush1.msra.mxu0 0.0
  %113 = vmatprep.subr.mxu0 0.0
  %114 = vmatpush1.msra.mxu0 0.0
  %115 = vmatprep.subr.mxu0 0.0
  %116 = vmatpush1.msra.mxu0 0.0
  %117 = vmatprep.subr.mxu0 0.0
  %118 = vmatpush1.msra.mxu0 0.0
  %119 = vmatprep.subr.mxu0 0.0
  %120 = vmatpush1.msra.mxu0 0.0
  %121 = vmatprep.subr.mxu0 0.0
  %122 = vmatpush1.msra.mxu0 0.0
  %123 = vmatprep.subr.mxu0 0.0
  %124 = vmatpush1.msra.mxu0 0.0
  %125 = vmatprep.subr.mxu0 0.0
  %126 = vmatpush1.msra.mxu0 0.0
  %127 = vmatprep.subr.mxu0 0.0
  %128 = vmatpush1.msra.mxu0 0.0
  %129 = vmatprep.subr.mxu0 0.0
  %130 = vmatpush1.msra.mxu0 0.0
  %131 = vmatprep.mubr.f32.mxu0 0.0
  %132 = vmatmul.mubr.f32.gmra.mrb[0].mxu0 %v35
  %v133 = vpop.f32.mrb[0].mxu0
  %v134 = vadd.f32 0.0, %v133
  %v135 = vpop.f32.mrb[0].mxu0
  %136 = vmatprep.mubr.f32.mxu0 0.0
  %137 = vmatmul.mubr.f32.gmra.mrb[0].mxu0 %v36
  %v138 = vpop.f32.mrb[0].mxu0
  %v139 = vadd.f32 0.0, %v138
  %v140 = vpop.f32.mrb[0].mxu0
  %141 = vmatprep.mubr.f32.mxu0 0.0
  %142 = vmatmul.mubr.f32.gmra.mrb[0].mxu0 %v37
  %v143 = vpop.f32.mrb[0].mxu0
  %v144 = vadd.f32 0.0, %v143
  %v145 = vpop.f32.mrb[0].mxu0
  %146 = vmatprep.mubr.f32.mxu0 0.0
  %147 = vmatmul.mubr.f32.gmra.mrb[0].mxu0 %v38
  %v148 = vpop.f32.mrb[0].mxu0
  %v149 = vadd.f32 0.0, %v148
  %v150 = vpop.f32.mrb[0].mxu0
  %151 = vmatprep.mubr.f32.mxu0 0.0
  %152 = vmatmul.mubr.f32.gmra.mrb[0].mxu0 %v39
  %v153 = vpop.f32.mrb[0].mxu0
  %v154 = vadd.f32 0.0, %v153
  %v155 = vpop.f32.mrb[0].mxu0
  %156 = vmatprep.mubr.f32.mxu0 0.0
  %157 = vmatmul.mubr.f32.gmra.mrb[0].mxu0 %v40
  %v158 = vpop.f32.mrb[0].mxu0
  %v159 = vadd.f32 0.0, %v158
  %v160 = vpop.f32.mrb[0].mxu0
  %161 = vmatprep.mubr.f32.mxu0 0.0
  %162 = vmatmul.mubr.f32.gmra.mrb[0].mxu0 %v41
  %v163 = vpop.f32.mrb[0].mxu0
  %v164 = vadd.f32 0.0, %v163
  %v165 = vpop.f32.mrb[0].mxu0
  %166 = vmatprep.mubr.f32.mxu0 0.0
  %167 = vmatmul.mubr.f32.gmra.mrb[0].mxu0 %v42
  %v168 = vpop.f32.mrb[0].mxu0
  %v169 = vadd.f32 0.0, %v168
  %v170 = vpop.f32.mrb[0].mxu0
  %171 = vmatprep.mubr.f32.mxu0 0.0
  %172 = vmatmul.mubr.f32.gmra.mrb[0].mxu0 %v43
  %v173 = vpop.f32.mrb[0].mxu0
  %v174 = vadd.f32 0.0, %v173
  %v175 = vpop.f32.mrb[0].mxu0
  %176 = vmatprep.mubr.f32.mxu0 0.0
  %177 = vmatmul.mubr.f32.gmra.mrb[0].mxu0 %v44
  %v178 = vpop.f32.mrb[0].mxu0
  %v179 = vadd.f32 0.0, %v178
  %v180 = vpop.f32.mrb[0].mxu0
  %181 = vmatprep.mubr.f32.mxu0 0.0
  %182 = vmatmul.mubr.f32.gmra.mrb[0].mxu0 %v45
  %v183 = vpop.f32.mrb[0].mxu0
  %v184 = vadd.f32 0.0, %v183
  %v185 = vpop.f32.mrb[0].mxu0
  %186 = vmatprep.mubr.f32.mxu0 0.0
  %187 = vmatmul.mubr.f32.gmra.mrb[0].mxu0 %v46
  %v188 = vpop.f32.mrb[0].mxu0
  %v189 = vadd.f32 0.0, %v188
  %v190 = vpop.f32.mrb[0].mxu0
  %191 = vmatprep.mubr.f32.mxu0 0.0
  %192 = vmatmul.mubr.f32.gmra.mrb[0].mxu0 %v47
  %v193 = vpop.f32.mrb[0].mxu0
  %v194 = vadd.f32 0.0, %v193
  %v195 = vpop.f32.mrb[0].mxu0
  %196 = vmatprep.mubr.f32.mxu0 0.0
  %197 = vmatmul.mubr.f32.gmra.mrb[0].mxu0 %v48
  %v198 = vpop.f32.mrb[0].mxu0
  %v199 = vadd.f32 0.0, %v198
  %v200 = vpop.f32.mrb[0].mxu0
  %201 = vmatprep.mubr.f32.mxu0 0.0
  %202 = vmatmul.mubr.f32.gmra.mrb[0].mxu0 %v49
  %v203 = vpop.f32.mrb[0].mxu0
  %v204 = vadd.f32 0.0, %v203
  %v205 = vpop.f32.mrb[0].mxu0
  %206 = vmatprep.mubr.f32.mxu0 0.0
  %207 = vmatmul.mubr.f32.gmra.mrb[0].mxu0 %v50
  %v208 = vpop.f32.mrb[0].mxu0
  %v209 = vadd.f32 0.0, %v208
  %v210 = vpop.f32.mrb[0].mxu0
  %211 = vdwg.mxu0
  %v212 = vmax.f32 %v134, 0.0
  %v213 = vmax.f32 %v139, 0.0
  %v214 = vmax.f32 %v144, 0.0
  %v215 = vmax.f32 %v149, 0.0
  %v216 = vmax.f32 %v154, 0.0
  %v217 = vmax.f32 %v159, 0.0
  %v218 = vmax.f32 %v164, 0.0
  %v219 = vmax.f32 %v169, 0.0
  %v220 = vmax.f32 %v174, 0.0
  %v221 = vmax.f32 %v179, 0.0
  %v222 = vmax.f32 %v184, 0.0
  %v223 = vmax.f32 %v189, 0.0
  %v224 = vmax.f32 %v194, 0.0
  %v225 = vmax.f32 %v199, 0.0
  %v226 = vmax.f32 %v204, 0.0
  %v227 = vmax.f32 %v209, 0.0
  %v228 = vlaneseq
  %v229 = vshrl.u32 %v228, 7
  %v230 = vsub.s32 0, %v229
  %v231 = vrot.slane %v17, %v230
  %vm232 = vcmask 130048
  %v234 = vsel %vm232, %v212, 0
  %v237 = vsel %vm232, %v213, 0
  %v240 = vsel %vm232, %v214, 0
  %v243 = vsel %vm232, %v215, 0
  %v246 = vsel %vm232, %v216, 0
  %v249 = vsel %vm232, %v217, 0
  %v252 = vsel %vm232, %v218, 0
  %v255 = vsel %vm232, %v219, 0
  %v258 = vsel %vm232, %v220, 0
  %v261 = vsel %vm232, %v221, 0
  %v264 = vsel %vm232, %v222, 0
  %v267 = vsel %vm232, %v223, 0
  %v270 = vsel %vm232, %v224, 0
  %v273 = vsel %vm232, %v225, 0
  %v276 = vsel %vm232, %v226, 0
  %v279 = vsel %vm232, %v227, 0
  %281 = vmatprep.subr.mxu0 0.0
  %282 = vmatpush1.msra.mxu0 %v11
  %283 = vmatprep.subr.mxu0 0.0
  %284 = vmatpush1.msra.mxu0 %v12
  %285 = vmatprep.subr.mxu0 0.0
  %286 = vmatpush1.msra.mxu0 0.0
  %287 = vmatprep.subr.mxu0 0.0
  %288 = vmatpush1.msra.mxu0 0.0
  %289 = vmatprep.subr.mxu0 0.0
  %290 = vmatpush1.msra.mxu0 0.0
  %291 = vmatprep.subr.mxu0 0.0
  %292 = vmatpush1.msra.mxu0 0.0
  %293 = vmatprep.subr.mxu0 0.0
  %294 = vmatpush1.msra.mxu0 0.0
  %295 = vmatprep.subr.mxu0 0.0
  %296 = vmatpush1.msra.mxu0 0.0
  %297 = vmatprep.subr.mxu0 0.0
  %298 = vmatpush1.msra.mxu0 0.0
  %299 = vmatprep.subr.mxu0 0.0
  %300 = vmatpush1.msra.mxu0 0.0
  %301 = vmatprep.subr.mxu0 0.0
  %302 = vmatpush1.msra.mxu0 0.0
  %303 = vmatprep.subr.mxu0 0.0
  %304 = vmatpush1.msra.mxu0 0.0
  %305 = vmatprep.subr.mxu0 0.0
  %306 = vmatpush1.msra.mxu0 0.0
  %307 = vmatprep.subr.mxu0 0.0
  %308 = vmatpush1.msra.mxu0 0.0
  %309 = vmatprep.subr.mxu0 0.0
  %310 = vmatpush1.msra.mxu0 0.0
  %311 = vmatprep.subr.mxu0 0.0
  %312 = vmatpush1.msra.mxu0 0.0
  %313 = vmatprep.subr.mxu0 0.0
  %314 = vmatpush1.msra.mxu0 0.0
  %315 = vmatprep.subr.mxu0 0.0
  %316 = vmatpush1.msra.mxu0 0.0
  %317 = vmatprep.subr.mxu0 0.0
  %318 = vmatpush1.msra.mxu0 0.0
  %319 = vmatprep.subr.mxu0 0.0
  %320 = vmatpush1.msra.mxu0 0.0
  %321 = vmatprep.subr.mxu0 0.0
  %322 = vmatpush1.msra.mxu0 0.0
  %323 = vmatprep.subr.mxu0 0.0
  %324 = vmatpush1.msra.mxu0 0.0
  %325 = vmatprep.subr.mxu0 0.0
  %326 = vmatpush1.msra.mxu0 0.0
  %327 = vmatprep.subr.mxu0 0.0
  %328 = vmatpush1.msra.mxu0 0.0
  %329 = vmatprep.subr.mxu0 0.0
  %330 = vmatpush1.msra.mxu0 0.0
  %331 = vmatprep.subr.mxu0 0.0
  %332 = vmatpush1.msra.mxu0 0.0
  %333 = vmatprep.subr.mxu0 0.0
  %334 = vmatpush1.msra.mxu0 0.0
  %335 = vmatprep.subr.mxu0 0.0
  %336 = vmatpush1.msra.mxu0 0.0
  %337 = vmatprep.subr.mxu0 0.0
  %338 = vmatpush1.msra.mxu0 0.0
  %339 = vmatprep.subr.mxu0 0.0
  %340 = vmatpush1.msra.mxu0 0.0
  %341 = vmatprep.subr.mxu0 0.0
  %342 = vmatpush1.msra.mxu0 0.0
  %343 = vmatprep.subr.mxu0 0.0
  %344 = vmatpush1.msra.mxu0 0.0
  %345 = vmatprep.mubr.f32.mxu0 0.0
  %346 = vmatmul.mubr.f32.gmra.mrb[0].mxu0 %v234
  %v347 = vpop.f32.mrb[0].mxu0
  %v348 = vadd.f32 %v231, %v347
  %v349 = vpop.f32.mrb[0].mxu0
  %350 = vmatprep.mubr.f32.mxu0 0.0
  %351 = vmatmul.mubr.f32.gmra.mrb[0].mxu0 %v237
  %v352 = vpop.f32.mrb[0].mxu0
  %v353 = vadd.f32 %v231, %v352
  %v354 = vpop.f32.mrb[0].mxu0
  %355 = vmatprep.mubr.f32.mxu0 0.0
  %356 = vmatmul.mubr.f32.gmra.mrb[0].mxu0 %v240
  %v357 = vpop.f32.mrb[0].mxu0
  %v358 = vadd.f32 %v231, %v357
  %v359 = vpop.f32.mrb[0].mxu0
  %360 = vmatprep.mubr.f32.mxu0 0.0
  %361 = vmatmul.mubr.f32.gmra.mrb[0].mxu0 %v243
  %v362 = vpop.f32.mrb[0].mxu0
  %v363 = vadd.f32 %v231, %v362
  %v364 = vpop.f32.mrb[0].mxu0
  %365 = vmatprep.mubr.f32.mxu0 0.0
  %366 = vmatmul.mubr.f32.gmra.mrb[0].mxu0 %v246
  %v367 = vpop.f32.mrb[0].mxu0
  %v368 = vadd.f32 %v231, %v367
  %v369 = vpop.f32.mrb[0].mxu0
  %370 = vmatprep.mubr.f32.mxu0 0.0
  %371 = vmatmul.mubr.f32.gmra.mrb[0].mxu0 %v249
  %v372 = vpop.f32.mrb[0].mxu0
  %v373 = vadd.f32 %v231, %v372
  %v374 = vpop.f32.mrb[0].mxu0
  %375 = vmatprep.mubr.f32.mxu0 0.0
  %376 = vmatmul.mubr.f32.gmra.mrb[0].mxu0 %v252
  %v377 = vpop.f32.mrb[0].mxu0
  %v378 = vadd.f32 %v231, %v377
  %v379 = vpop.f32.mrb[0].mxu0
  %380 = vmatprep.mubr.f32.mxu0 0.0
  %381 = vmatmul.mubr.f32.gmra.mrb[0].mxu0 %v255
  %v382 = vpop.f32.mrb[0].mxu0
  %v383 = vadd.f32 %v231, %v382
  %v384 = vpop.f32.mrb[0].mxu0
  %385 = vmatprep.mubr.f32.mxu0 0.0
  %386 = vmatmul.mubr.f32.gmra.mrb[0].mxu0 %v258
  %v387 = vpop.f32.mrb[0].mxu0
  %v388 = vadd.f32 %v231, %v387
  %v389 = vpop.f32.mrb[0].mxu0
  %390 = vmatprep.mubr.f32.mxu0 0.0
  %391 = vmatmul.mubr.f32.gmra.mrb[0].mxu0 %v261
  %v392 = vpop.f32.mrb[0].mxu0
  %v393 = vadd.f32 %v231, %v392
  %v394 = vpop.f32.mrb[0].mxu0
  %395 = vmatprep.mubr.f32.mxu0 0.0
  %396 = vmatmul.mubr.f32.gmra.mrb[0].mxu0 %v264
  %v397 = vpop.f32.mrb[0].mxu0
  %v398 = vadd.f32 %v231, %v397
  %v399 = vpop.f32.mrb[0].mxu0
  %400 = vmatprep.mubr.f32.mxu0 0.0
  %401 = vmatmul.mubr.f32.gmra.mrb[0].mxu0 %v267
  %v402 = vpop.f32.mrb[0].mxu0
  %v403 = vadd.f32 %v231, %v402
  %v404 = vpop.f32.mrb[0].mxu0
  %405 = vmatprep.mubr.f32.mxu0 0.0
  %406 = vmatmul.mubr.f32.gmra.mrb[0].mxu0 %v270
  %v407 = vpop.f32.mrb[0].mxu0
  %v408 = vadd.f32 %v231, %v407
  %v409 = vpop.f32.mrb[0].mxu0
  %410 = vmatprep.mubr.f32.mxu0 0.0
  %411 = vmatmul.mubr.f32.gmra.mrb[0].mxu0 %v273
  %v412 = vpop.f32.mrb[0].mxu0
  %v413 = vadd.f32 %v231, %v412
  %v414 = vpop.f32.mrb[0].mxu0
  %415 = vmatprep.mubr.f32.mxu0 0.0
  %416 = vmatmul.mubr.f32.gmra.mrb[0].mxu0 %v276
  %v417 = vpop.f32.mrb[0].mxu0
  %v418 = vadd.f32 %v231, %v417
  %v419 = vpop.f32.mrb[0].mxu0
  %420 = vmatprep.mubr.f32.mxu0 0.0
  %421 = vmatmul.mubr.f32.gmra.mrb[0].mxu0 %v279
  %v422 = vpop.f32.mrb[0].mxu0
  %v423 = vadd.f32 %v231, %v422
  %v424 = vpop.f32.mrb[0].mxu0
  %425 = vdwg.mxu0
  %v426 = vlaneseq
  %v427 = vshrl.u32 %v426, 7
  %v428 = vsub.s32 0, %v427
  %v429 = vrot.slane %v32, %v428
  %v430 = vmul.f32 %v348, %v429
  %v431 = vtanh.pop %v430
  %v432 = vlaneseq
  %v433 = vshrl.u32 %v432, 7
  %v434 = vsub.s32 0, %v433
  %v435 = vrot.slane %v33, %v434
  %v436 = vmul.f32 %v431, %v435
  %v437 = vlaneseq
  %v438 = vshrl.u32 %v437, 7
  %v439 = vsub.s32 0, %v438
  %v440 = vrot.slane %v34, %v439
  %v441 = vadd.f32 %v436, %v440
  %v442 = vmul.f32 %v441, 0.0
  %444 = vrot.lane.b32.xlu0 %v441, 64
  %v445 = vpop.permute.xlu0 %444
  %v447 = vmul.f32 %v441, %v445
  %449 = vrot.lane.b32.xlu0 %v447, 32
  %v450 = vpop.permute.xlu0 %449
  %v452 = vadd.f32 %v442, %v450
  %v453 = vtanh.pop %v452
  %455 = vrot.lane.b32.xlu0 %v453, 64
  %v456 = vpop.permute.xlu0 %455
  %v458 = vmul.f32 %v441, %v456
  %v459 = vlaneseq
  %v460 = vshrl.u32 %v459, 7
  %v461 = vsub.s32 0, %v460
  %v462 = vrot.slane %v26, %v461
  %464 = vrot.lane.b32.xlu0 %v458, 32
  %v465 = vpop.permute.xlu0 %464
  %vm466 = vcmask 261120
  %v467 = vsel %vm466, %v465, 0
  %469 = vmatprep.subr.mxu0 0.0
  %470 = vmatpush1.msra.mxu0 %v18
  %471 = vmatprep.subr.mxu0 0.0
  %472 = vmatpush1.msra.mxu0 %v19
  %473 = vmatprep.subr.mxu0 0.0
  %474 = vmatpush1.msra.mxu0 %v20
  %475 = vmatprep.subr.mxu0 0.0
  %476 = vmatpush1.msra.mxu0 %v21
  %477 = vmatprep.subr.mxu0 0.0
  %478 = vmatpush1.msra.mxu0 0.0
  %479 = vmatprep.subr.mxu0 0.0
  %480 = vmatpush1.msra.mxu0 0.0
  %481 = vmatprep.subr.mxu0 0.0
  %482 = vmatpush1.msra.mxu0 0.0
  %483 = vmatprep.subr.mxu0 0.0
  %484 = vmatpush1.msra.mxu0 0.0
  %485 = vmatprep.subr.mxu0 0.0
  %486 = vmatpush1.msra.mxu0 0.0
  %487 = vmatprep.subr.mxu0 0.0
  %488 = vmatpush1.msra.mxu0 0.0
  %489 = vmatprep.subr.mxu0 0.0
  %490 = vmatpush1.msra.mxu0 0.0
  %491 = vmatprep.subr.mxu0 0.0
  %492 = vmatpush1.msra.mxu0 0.0
  %493 = vmatprep.subr.mxu0 0.0
  %494 = vmatpush1.msra.mxu0 0.0
  %495 = vmatprep.subr.mxu0 0.0
  %496 = vmatpush1.msra.mxu0 0.0
  %497 = vmatprep.subr.mxu0 0.0
  %498 = vmatpush1.msra.mxu0 0.0
  %499 = vmatprep.subr.mxu0 0.0
  %500 = vmatpush1.msra.mxu0 0.0
  %501 = vmatprep.subr.mxu0 0.0
  %502 = vmatpush1.msra.mxu0 0.0
  %503 = vmatprep.subr.mxu0 0.0
  %504 = vmatpush1.msra.mxu0 0.0
  %505 = vmatprep.subr.mxu0 0.0
  %506 = vmatpush1.msra.mxu0 0.0
  %507 = vmatprep.subr.mxu0 0.0
  %508 = vmatpush1.msra.mxu0 0.0
  %509 = vmatprep.subr.mxu0 0.0
  %510 = vmatpush1.msra.mxu0 0.0
  %511 = vmatprep.subr.mxu0 0.0
  %512 = vmatpush1.msra.mxu0 0.0
  %513 = vmatprep.subr.mxu0 0.0
  %514 = vmatpush1.msra.mxu0 0.0
  %515 = vmatprep.subr.mxu0 0.0
  %516 = vmatpush1.msra.mxu0 0.0
  %517 = vmatprep.subr.mxu0 0.0
  %518 = vmatpush1.msra.mxu0 0.0
  %519 = vmatprep.subr.mxu0 0.0
  %520 = vmatpush1.msra.mxu0 0.0
  %521 = vmatprep.subr.mxu0 0.0
  %522 = vmatpush1.msra.mxu0 0.0
  %523 = vmatprep.subr.mxu0 0.0
  %524 = vmatpush1.msra.mxu0 0.0
  %525 = vmatprep.subr.mxu0 0.0
  %526 = vmatpush1.msra.mxu0 0.0
  %527 = vmatprep.subr.mxu0 0.0
  %528 = vmatpush1.msra.mxu0 0.0
  %529 = vmatprep.subr.mxu0 0.0
  %530 = vmatpush1.msra.mxu0 0.0
  %531 = vmatprep.subr.mxu0 0.0
  %532 = vmatpush1.msra.mxu0 0.0
  %533 = vmatprep.mubr.f32.mxu0 0.0
  %534 = vmatmul.mubr.f32.gmra.mrb[0].mxu0 %v467
  %v535 = vpop.f32.mrb[0].mxu0
  %v536 = vadd.f32 %v462, %v535
  %v537 = vpop.f32.mrb[0].mxu0
  %538 = vdwg.mxu0
  %v539 = vmul.f32 %v536, %v429
  %v540 = vtanh.pop %v539
  %v541 = vmul.f32 %v540, %v435
  %v542 = vadd.f32 %v541, %v440
  %v543 = vmul.f32 %v542, 0.0
  %545 = vrot.lane.b32.xlu0 %v542, 64
  %v546 = vpop.permute.xlu0 %545
  %v548 = vmul.f32 %v542, %v546
  %550 = vrot.lane.b32.xlu0 %v548, 32
  %v551 = vpop.permute.xlu0 %550
  %v553 = vadd.f32 %v543, %v551
  %v554 = vtanh.pop %v553
  %556 = vrot.lane.b32.xlu0 %v554, 64
  %v557 = vpop.permute.xlu0 %556
  %v559 = vmul.f32 %v542, %v557
  %560 = vmatprep.subr.mxu0 0.0
  %561 = vmatpush1.msra.mxu0 %v13
  %562 = vmatprep.subr.mxu0 0.0
  %563 = vmatpush1.msra.mxu0 %v14
  %564 = vmatprep.subr.mxu0 0.0
  %565 = vmatpush1.msra.mxu0 %v15
  %566 = vmatprep.subr.mxu0 0.0
  %567 = vmatpush1.msra.mxu0 %v16
  %568 = vmatprep.subr.mxu0 0.0
  %569 = vmatpush1.msra.mxu0 0.0
  %570 = vmatprep.subr.mxu0 0.0
  %571 = vmatpush1.msra.mxu0 0.0
  %572 = vmatprep.subr.mxu0 0.0
  %573 = vmatpush1.msra.mxu0 0.0
  %574 = vmatprep.subr.mxu0 0.0
  %575 = vmatpush1.msra.mxu0 0.0
  %576 = vmatprep.subr.mxu0 0.0
  %577 = vmatpush1.msra.mxu0 0.0
  %578 = vmatprep.subr.mxu0 0.0
  %579 = vmatpush1.msra.mxu0 0.0
  %580 = vmatprep.subr.mxu0 0.0
  %581 = vmatpush1.msra.mxu0 0.0
  %582 = vmatprep.subr.mxu0 0.0
  %583 = vmatpush1.msra.mxu0 0.0
  %584 = vmatprep.subr.mxu0 0.0
  %585 = vmatpush1.msra.mxu0 0.0
  %586 = vmatprep.subr.mxu0 0.0
  %587 = vmatpush1.msra.mxu0 0.0
  %588 = vmatprep.subr.mxu0 0.0
  %589 = vmatpush1.msra.mxu0 0.0
  %590 = vmatprep.subr.mxu0 0.0
  %591 = vmatpush1.msra.mxu0 0.0
  %592 = vmatprep.subr.mxu0 0.0
  %593 = vmatpush1.msra.mxu0 0.0
  %594 = vmatprep.subr.mxu0 0.0
  %595 = vmatpush1.msra.mxu0 0.0
  %596 = vmatprep.subr.mxu0 0.0
  %597 = vmatpush1.msra.mxu0 0.0
  %598 = vmatprep.subr.mxu0 0.0
  %599 = vmatpush1.msra.mxu0 0.0
  %600 = vmatprep.subr.mxu0 0.0
  %601 = vmatpush1.msra.mxu0 0.0
  %602 = vmatprep.subr.mxu0 0.0
  %603 = vmatpush1.msra.mxu0 0.0
  %604 = vmatprep.subr.mxu0 0.0
  %605 = vmatpush1.msra.mxu0 0.0
  %606 = vmatprep.subr.mxu0 0.0
  %607 = vmatpush1.msra.mxu0 0.0
  %608 = vmatprep.subr.mxu0 0.0
  %609 = vmatpush1.msra.mxu0 0.0
  %610 = vmatprep.subr.mxu0 0.0
  %611 = vmatpush1.msra.mxu0 0.0
  %612 = vmatprep.subr.mxu0 0.0
  %613 = vmatpush1.msra.mxu0 0.0
  %614 = vmatprep.subr.mxu0 0.0
  %615 = vmatpush1.msra.mxu0 0.0
  %616 = vmatprep.subr.mxu0 0.0
  %617 = vmatpush1.msra.mxu0 0.0
  %618 = vmatprep.subr.mxu0 0.0
  %619 = vmatpush1.msra.mxu0 0.0
  %620 = vmatprep.subr.mxu0 0.0
  %621 = vmatpush1.msra.mxu0 0.0
  %622 = vmatprep.subr.mxu0 0.0
  %623 = vmatpush1.msra.mxu0 0.0
  %624 = vmatprep.mubr.f32.mxu0 0.0
  %625 = vmatmul.mubr.f32.gmra.mrb[0].mxu0 %v467
  %v626 = vpop.f32.mrb[0].mxu0
  %v627 = vadd.f32 0.0, %v626
  %v628 = vpop.f32.mrb[0].mxu0
  %629 = vdwg.mxu0
  %v630 = vadd.f32 %v353, %v627
  %v631 = vmul.f32 %v630, %v429
  %v632 = vtanh.pop %v631
  %v633 = vmul.f32 %v632, %v435
  %v634 = vadd.f32 %v633, %v440
  %v635 = vmul.f32 %v634, %v452
  %637 = vrot.lane.b32.xlu0 %v634, 64
  %v638 = vpop.permute.xlu0 %637
  %v640 = vmul.f32 %v634, %v638
  %642 = vrot.lane.b32.xlu0 %v640, 32
  %v643 = vpop.permute.xlu0 %642
  %v645 = vadd.f32 %v635, %v643
  %v646 = vtanh.pop %v645
  %648 = vrot.lane.b32.xlu0 %v646, 64
  %v649 = vpop.permute.xlu0 %648
  %v651 = vmul.f32 %v634, %v649
  %653 = vrot.lane.b32.xlu0 %v651, 32
  %v654 = vpop.permute.xlu0 %653
  %v655 = vsel %vm466, %v654, 0
  %657 = vmatprep.subr.mxu0 0.0
  %658 = vmatpush1.msra.mxu0 %v18
  %659 = vmatprep.subr.mxu0 0.0
  %660 = vmatpush1.msra.mxu0 %v19
  %661 = vmatprep.subr.mxu0 0.0
  %662 = vmatpush1.msra.mxu0 %v20
  %663 = vmatprep.subr.mxu0 0.0
  %664 = vmatpush1.msra.mxu0 %v21
  %665 = vmatprep.subr.mxu0 0.0
  %666 = vmatpush1.msra.mxu0 0.0
  %667 = vmatprep.subr.mxu0 0.0
  %668 = vmatpush1.msra.mxu0 0.0
  %669 = vmatprep.subr.mxu0 0.0
  %670 = vmatpush1.msra.mxu0 0.0
  %671 = vmatprep.subr.mxu0 0.0
  %672 = vmatpush1.msra.mxu0 0.0
  %673 = vmatprep.subr.mxu0 0.0
  %674 = vmatpush1.msra.mxu0 0.0
  %675 = vmatprep.subr.mxu0 0.0
  %676 = vmatpush1.msra.mxu0 0.0
  %677 = vmatprep.subr.mxu0 0.0
  %678 = vmatpush1.msra.mxu0 0.0
  %679 = vmatprep.subr.mxu0 0.0
  %680 = vmatpush1.msra.mxu0 0.0
  %681 = vmatprep.subr.mxu0 0.0
  %682 = vmatpush1.msra.mxu0 0.0
  %683 = vmatprep.subr.mxu0 0.0
  %684 = vmatpush1.msra.mxu0 0.0
  %685 = vmatprep.subr.mxu0 0.0
  %686 = vmatpush1.msra.mxu0 0.0
  %687 = vmatprep.subr.mxu0 0.0
  %688 = vmatpush1.msra.mxu0 0.0
  %689 = vmatprep.subr.mxu0 0.0
  %690 = vmatpush1.msra.mxu0 0.0
  %691 = vmatprep.subr.mxu0 0.0
  %692 = vmatpush1.msra.mxu0 0.0
  %693 = vmatprep.subr.mxu0 0.0
  %694 = vmatpush1.msra.mxu0 0.0
  %695 = vmatprep.subr.mxu0 0.0
  %696 = vmatpush1.msra.mxu0 0.0
  %697 = vmatprep.subr.mxu0 0.0
  %698 = vmatpush1.msra.mxu0 0.0
  %699 = vmatprep.subr.mxu0 0.0
  %700 = vmatpush1.msra.mxu0 0.0
  %701 = vmatprep.subr.mxu0 0.0
  %702 = vmatpush1.msra.mxu0 0.0
  %703 = vmatprep.subr.mxu0 0.0
  %704 = vmatpush1.msra.mxu0 0.0
  %705 = vmatprep.subr.mxu0 0.0
  %706 = vmatpush1.msra.mxu0 0.0
  %707 = vmatprep.subr.mxu0 0.0
  %708 = vmatpush1.msra.mxu0 0.0
  %709 = vmatprep.subr.mxu0 0.0
  %710 = vmatpush1.msra.mxu0 0.0
  %711 = vmatprep.subr.mxu0 0.0
  %712 = vmatpush1.msra.mxu0 0.0
  %713 = vmatprep.subr.mxu0 0.0
  %714 = vmatpush1.msra.mxu0 0.0
  %715 = vmatprep.subr.mxu0 0.0
  %716 = vmatpush1.msra.mxu0 0.0
  %717 = vmatprep.subr.mxu0 0.0
  %718 = vmatpush1.msra.mxu0 0.0
  %719 = vmatprep.subr.mxu0 0.0
  %720 = vmatpush1.msra.mxu0 0.0
  %721 = vmatprep.mubr.f32.mxu0 0.0
  %722 = vmatmul.mubr.f32.gmra.mrb[0].mxu0 %v655
  %v723 = vpop.f32.mrb[0].mxu0
  %v724 = vadd.f32 %v462, %v723
  %v725 = vpop.f32.mrb[0].mxu0
  %726 = vdwg.mxu0
  %728 = vrot.lane.b32.xlu0 %v559, 32
  %v729 = vpop.permute.xlu0 %728
  %v730 = vsel %vm466, %v729, 0
  %732 = vmatprep.subr.mxu0 0.0
  %733 = vmatpush1.msra.mxu0 %v22
  %734 = vmatprep.subr.mxu0 0.0
  %735 = vmatpush1.msra.mxu0 %v23
  %736 = vmatprep.subr.mxu0 0.0
  %737 = vmatpush1.msra.mxu0 %v24
  %738 = vmatprep.subr.mxu0 0.0
  %739 = vmatpush1.msra.mxu0 %v25
  %740 = vmatprep.subr.mxu0 0.0
  %741 = vmatpush1.msra.mxu0 0.0
  %742 = vmatprep.subr.mxu0 0.0
  %743 = vmatpush1.msra.mxu0 0.0
  %744 = vmatprep.subr.mxu0 0.0
  %745 = vmatpush1.msra.mxu0 0.0
  %746 = vmatprep.subr.mxu0 0.0
  %747 = vmatpush1.msra.mxu0 0.0
  %748 = vmatprep.subr.mxu0 0.0
  %749 = vmatpush1.msra.mxu0 0.0
  %750 = vmatprep.subr.mxu0 0.0
  %751 = vmatpush1.msra.mxu0 0.0
  %752 = vmatprep.subr.mxu0 0.0
  %753 = vmatpush1.msra.mxu0 0.0
  %754 = vmatprep.subr.mxu0 0.0
  %755 = vmatpush1.msra.mxu0 0.0
  %756 = vmatprep.subr.mxu0 0.0
  %757 = vmatpush1.msra.mxu0 0.0
  %758 = vmatprep.subr.mxu0 0.0
  %759 = vmatpush1.msra.mxu0 0.0
  %760 = vmatprep.subr.mxu0 0.0
  %761 = vmatpush1.msra.mxu0 0.0
  %762 = vmatprep.subr.mxu0 0.0
  %763 = vmatpush1.msra.mxu0 0.0
  %764 = vmatprep.subr.mxu0 0.0
  %765 = vmatpush1.msra.mxu0 0.0
  %766 = vmatprep.subr.mxu0 0.0
  %767 = vmatpush1.msra.mxu0 0.0
  %768 = vmatprep.subr.mxu0 0.0
  %769 = vmatpush1.msra.mxu0 0.0
  %770 = vmatprep.subr.mxu0 0.0
  %771 = vmatpush1.msra.mxu0 0.0
  %772 = vmatprep.subr.mxu0 0.0
  %773 = vmatpush1.msra.mxu0 0.0
  %774 = vmatprep.subr.mxu0 0.0
  %775 = vmatpush1.msra.mxu0 0.0
  %776 = vmatprep.subr.mxu0 0.0
  %777 = vmatpush1.msra.mxu0 0.0
  %778 = vmatprep.subr.mxu0 0.0
  %779 = vmatpush1.msra.mxu0 0.0
  %780 = vmatprep.subr.mxu0 0.0
  %781 = vmatpush1.msra.mxu0 0.0
  %782 = vmatprep.subr.mxu0 0.0
  %783 = vmatpush1.msra.mxu0 0.0
  %784 = vmatprep.subr.mxu0 0.0
  %785 = vmatpush1.msra.mxu0 0.0
  %786 = vmatprep.subr.mxu0 0.0
  %787 = vmatpush1.msra.mxu0 0.0
  %788 = vmatprep.subr.mxu0 0.0
  %789 = vmatpush1.msra.mxu0 0.0
  %790 = vmatprep.subr.mxu0 0.0
  %791 = vmatpush1.msra.mxu0 0.0
  %792 = vmatprep.subr.mxu0 0.0
  %793 = vmatpush1.msra.mxu0 0.0
  %794 = vmatprep.subr.mxu0 0.0
  %795 = vmatpush1.msra.mxu0 0.0
  %796 = vmatprep.mubr.f32.mxu0 0.0
  %797 = vmatmul.mubr.f32.gmra.mrb[0].mxu0 %v730
  %v798 = vpop.f32.mrb[0].mxu0
  %v799 = vadd.f32 0.0, %v798
  %v800 = vpop.f32.mrb[0].mxu0
  %801 = vdwg.mxu0
  %v802 = vadd.f32 %v724, %v799
  %v803 = vmul.f32 %v802, %v429
  %v804 = vtanh.pop %v803
  %v805 = vmul.f32 %v804, %v435
  %v806 = vadd.f32 %v805, %v440
  %v807 = vmul.f32 %v806, %v553
  %809 = vrot.lane.b32.xlu0 %v806, 64
  %v810 = vpop.permute.xlu0 %809
  %v812 = vmul.f32 %v806, %v810
  %814 = vrot.lane.b32.xlu0 %v812, 32
  %v815 = vpop.permute.xlu0 %814
  %v817 = vadd.f32 %v807, %v815
  %v818 = vtanh.pop %v817
  %820 = vrot.lane.b32.xlu0 %v818, 64
  %v821 = vpop.permute.xlu0 %820
  %v823 = vmul.f32 %v806, %v821
  %824 = vmatprep.subr.mxu0 0.0
  %825 = vmatpush1.msra.mxu0 %v13
  %826 = vmatprep.subr.mxu0 0.0
  %827 = vmatpush1.msra.mxu0 %v14
  %828 = vmatprep.subr.mxu0 0.0
  %829 = vmatpush1.msra.mxu0 %v15
  %830 = vmatprep.subr.mxu0 0.0
  %831 = vmatpush1.msra.mxu0 %v16
  %832 = vmatprep.subr.mxu0 0.0
  %833 = vmatpush1.msra.mxu0 0.0
  %834 = vmatprep.subr.mxu0 0.0
  %835 = vmatpush1.msra.mxu0 0.0
  %836 = vmatprep.subr.mxu0 0.0
  %837 = vmatpush1.msra.mxu0 0.0
  %838 = vmatprep.subr.mxu0 0.0
  %839 = vmatpush1.msra.mxu0 0.0
  %840 = vmatprep.subr.mxu0 0.0
  %841 = vmatpush1.msra.mxu0 0.0
  %842 = vmatprep.subr.mxu0 0.0
  %843 = vmatpush1.msra.mxu0 0.0
  %844 = vmatprep.subr.mxu0 0.0
  %845 = vmatpush1.msra.mxu0 0.0
  %846 = vmatprep.subr.mxu0 0.0
  %847 = vmatpush1.msra.mxu0 0.0
  %848 = vmatprep.subr.mxu0 0.0
  %849 = vmatpush1.msra.mxu0 0.0
  %850 = vmatprep.subr.mxu0 0.0
  %851 = vmatpush1.msra.mxu0 0.0
  %852 = vmatprep.subr.mxu0 0.0
  %853 = vmatpush1.msra.mxu0 0.0
  %854 = vmatprep.subr.mxu0 0.0
  %855 = vmatpush1.msra.mxu0 0.0
  %856 = vmatprep.subr.mxu0 0.0
  %857 = vmatpush1.msra.mxu0 0.0
  %858 = vmatprep.subr.mxu0 0.0
  %859 = vmatpush1.msra.mxu0 0.0
  %860 = vmatprep.subr.mxu0 0.0
  %861 = vmatpush1.msra.mxu0 0.0
  %862 = vmatprep.subr.mxu0 0.0
  %863 = vmatpush1.msra.mxu0 0.0
  %864 = vmatprep.subr.mxu0 0.0
  %865 = vmatpush1.msra.mxu0 0.0
  %866 = vmatprep.subr.mxu0 0.0
  %867 = vmatpush1.msra.mxu0 0.0
  %868 = vmatprep.subr.mxu0 0.0
  %869 = vmatpush1.msra.mxu0 0.0
  %870 = vmatprep.subr.mxu0 0.0
  %871 = vmatpush1.msra.mxu0 0.0
  %872 = vmatprep.subr.mxu0 0.0
  %873 = vmatpush1.msra.mxu0 0.0
  %874 = vmatprep.subr.mxu0 0.0
  %875 = vmatpush1.msra.mxu0 0.0
  %876 = vmatprep.subr.mxu0 0.0
  %877 = vmatpush1.msra.mxu0 0.0
  %878 = vmatprep.subr.mxu0 0.0
  %879 = vmatpush1.msra.mxu0 0.0
  %880 = vmatprep.subr.mxu0 0.0
  %881 = vmatpush1.msra.mxu0 0.0
  %882 = vmatprep.subr.mxu0 0.0
  %883 = vmatpush1.msra.mxu0 0.0
  %884 = vmatprep.subr.mxu0 0.0
  %885 = vmatpush1.msra.mxu0 0.0
  %886 = vmatprep.subr.mxu0 0.0
  %887 = vmatpush1.msra.mxu0 0.0
  %888 = vmatprep.mubr.f32.mxu0 0.0
  %889 = vmatmul.mubr.f32.gmra.mrb[0].mxu0 %v655
  %v890 = vpop.f32.mrb[0].mxu0
  %v891 = vadd.f32 0.0, %v890
  %v892 = vpop.f32.mrb[0].mxu0
  %893 = vdwg.mxu0
  %v894 = vadd.f32 %v358, %v891
  %v895 = vmul.f32 %v894, %v429
  %v896 = vtanh.pop %v895
  %v897 = vmul.f32 %v896, %v435
  %v898 = vadd.f32 %v897, %v440
  %v899 = vmul.f32 %v898, %v645
  %901 = vrot.lane.b32.xlu0 %v898, 64
  %v902 = vpop.permute.xlu0 %901
  %v904 = vmul.f32 %v898, %v902
  %906 = vrot.lane.b32.xlu0 %v904, 32
  %v907 = vpop.permute.xlu0 %906
  %v909 = vadd.f32 %v899, %v907
  %v910 = vtanh.pop %v909
  %912 = vrot.lane.b32.xlu0 %v910, 64
  %v913 = vpop.permute.xlu0 %912
  %v915 = vmul.f32 %v898, %v913
  %917 = vrot.lane.b32.xlu0 %v915, 32
  %v918 = vpop.permute.xlu0 %917
  %v919 = vsel %vm466, %v918, 0
  %921 = vmatprep.subr.mxu0 0.0
  %922 = vmatpush1.msra.mxu0 %v18
  %923 = vmatprep.subr.mxu0 0.0
  %924 = vmatpush1.msra.mxu0 %v19
  %925 = vmatprep.subr.mxu0 0.0
  %926 = vmatpush1.msra.mxu0 %v20
  %927 = vmatprep.subr.mxu0 0.0
  %928 = vmatpush1.msra.mxu0 %v21
  %929 = vmatprep.subr.mxu0 0.0
  %930 = vmatpush1.msra.mxu0 0.0
  %931 = vmatprep.subr.mxu0 0.0
  %932 = vmatpush1.msra.mxu0 0.0
  %933 = vmatprep.subr.mxu0 0.0
  %934 = vmatpush1.msra.mxu0 0.0
  %935 = vmatprep.subr.mxu0 0.0
  %936 = vmatpush1.msra.mxu0 0.0
  %937 = vmatprep.subr.mxu0 0.0
  %938 = vmatpush1.msra.mxu0 0.0
  %939 = vmatprep.subr.mxu0 0.0
  %940 = vmatpush1.msra.mxu0 0.0
  %941 = vmatprep.subr.mxu0 0.0
  %942 = vmatpush1.msra.mxu0 0.0
  %943 = vmatprep.subr.mxu0 0.0
  %944 = vmatpush1.msra.mxu0 0.0
  %945 = vmatprep.subr.mxu0 0.0
  %946 = vmatpush1.msra.mxu0 0.0
  %947 = vmatprep.subr.mxu0 0.0
  %948 = vmatpush1.msra.mxu0 0.0
  %949 = vmatprep.subr.mxu0 0.0
  %950 = vmatpush1.msra.mxu0 0.0
  %951 = vmatprep.subr.mxu0 0.0
  %952 = vmatpush1.msra.mxu0 0.0
  %953 = vmatprep.subr.mxu0 0.0
  %954 = vmatpush1.msra.mxu0 0.0
  %955 = vmatprep.subr.mxu0 0.0
  %956 = vmatpush1.msra.mxu0 0.0
  %957 = vmatprep.subr.mxu0 0.0
  %958 = vmatpush1.msra.mxu0 0.0
  %959 = vmatprep.subr.mxu0 0.0
  %960 = vmatpush1.msra.mxu0 0.0
  %961 = vmatprep.subr.mxu0 0.0
  %962 = vmatpush1.msra.mxu0 0.0
  %963 = vmatprep.subr.mxu0 0.0
  %964 = vmatpush1.msra.mxu0 0.0
  %965 = vmatprep.subr.mxu0 0.0
  %966 = vmatpush1.msra.mxu0 0.0
  %967 = vmatprep.subr.mxu0 0.0
  %968 = vmatpush1.msra.mxu0 0.0
  %969 = vmatprep.subr.mxu0 0.0
  %970 = vmatpush1.msra.mxu0 0.0
  %971 = vmatprep.subr.mxu0 0.0
  %972 = vmatpush1.msra.mxu0 0.0
  %973 = vmatprep.subr.mxu0 0.0
  %974 = vmatpush1.msra.mxu0 0.0
  %975 = vmatprep.subr.mxu0 0.0
  %976 = vmatpush1.msra.mxu0 0.0
  %977 = vmatprep.subr.mxu0 0.0
  %978 = vmatpush1.msra.mxu0 0.0
  %979 = vmatprep.subr.mxu0 0.0
  %980 = vmatpush1.msra.mxu0 0.0
  %981 = vmatprep.subr.mxu0 0.0
  %982 = vmatpush1.msra.mxu0 0.0
  %983 = vmatprep.subr.mxu0 0.0
  %984 = vmatpush1.msra.mxu0 0.0
  %985 = vmatprep.mubr.f32.mxu0 0.0
  %986 = vmatmul.mubr.f32.gmra.mrb[0].mxu0 %v919
  %v987 = vpop.f32.mrb[0].mxu0
  %v988 = vadd.f32 %v462, %v987
  %v989 = vpop.f32.mrb[0].mxu0
  %990 = vdwg.mxu0
  %992 = vrot.lane.b32.xlu0 %v823, 32
  %v993 = vpop.permute.xlu0 %992
  %v994 = vsel %vm466, %v993, 0
  %996 = vmatprep.subr.mxu0 0.0
  %997 = vmatpush1.msra.mxu0 %v22
  %998 = vmatprep.subr.mxu0 0.0
  %999 = vmatpush1.msra.mxu0 %v23
  %1000 = vmatprep.subr.mxu0 0.0
  %1001 = vmatpush1.msra.mxu0 %v24
  %1002 = vmatprep.subr.mxu0 0.0
  %1003 = vmatpush1.msra.mxu0 %v25
  %1004 = vmatprep.subr.mxu0 0.0
  %1005 = vmatpush1.msra.mxu0 0.0
  %1006 = vmatprep.subr.mxu0 0.0
  %1007 = vmatpush1.msra.mxu0 0.0
  %1008 = vmatprep.subr.mxu0 0.0
  %1009 = vmatpush1.msra.mxu0 0.0
  %1010 = vmatprep.subr.mxu0 0.0
  %1011 = vmatpush1.msra.mxu0 0.0
  %1012 = vmatprep.subr.mxu0 0.0
  %1013 = vmatpush1.msra.mxu0 0.0
  %1014 = vmatprep.subr.mxu0 0.0
  %1015 = vmatpush1.msra.mxu0 0.0
  %1016 = vmatprep.subr.mxu0 0.0
  %1017 = vmatpush1.msra.mxu0 0.0
  %1018 = vmatprep.subr.mxu0 0.0
  %1019 = vmatpush1.msra.mxu0 0.0
  %1020 = vmatprep.subr.mxu0 0.0
  %1021 = vmatpush1.msra.mxu0 0.0
  %1022 = vmatprep.subr.mxu0 0.0
  %1023 = vmatpush1.msra.mxu0 0.0
  %1024 = vmatprep.subr.mxu0 0.0
  %1025 = vmatpush1.msra.mxu0 0.0
  %1026 = vmatprep.subr.mxu0 0.0
  %1027 = vmatpush1.msra.mxu0 0.0
  %1028 = vmatprep.subr.mxu0 0.0
  %1029 = vmatpush1.msra.mxu0 0.0
  %1030 = vmatprep.subr.mxu0 0.0
  %1031 = vmatpush1.msra.mxu0 0.0
  %1032 = vmatprep.subr.mxu0 0.0
  %1033 = vmatpush1.msra.mxu0 0.0
  %1034 = vmatprep.subr.mxu0 0.0
  %1035 = vmatpush1.msra.mxu0 0.0
  %1036 = vmatprep.subr.mxu0 0.0
  %1037 = vmatpush1.msra.mxu0 0.0
  %1038 = vmatprep.subr.mxu0 0.0
  %1039 = vmatpush1.msra.mxu0 0.0
  %1040 = vmatprep.subr.mxu0 0.0
  %1041 = vmatpush1.msra.mxu0 0.0
  %1042 = vmatprep.subr.mxu0 0.0
  %1043 = vmatpush1.msra.mxu0 0.0
  %1044 = vmatprep.subr.mxu0 0.0
  %1045 = vmatpush1.msra.mxu0 0.0
  %1046 = vmatprep.subr.mxu0 0.0
  %1047 = vmatpush1.msra.mxu0 0.0
  %1048 = vmatprep.subr.mxu0 0.0
  %1049 = vmatpush1.msra.mxu0 0.0
  %1050 = vmatprep.subr.mxu0 0.0
  %1051 = vmatpush1.msra.mxu0 0.0
  %1052 = vmatprep.subr.mxu0 0.0
  %1053 = vmatpush1.msra.mxu0 0.0
  %1054 = vmatprep.subr.mxu0 0.0
  %1055 = vmatpush1.msra.mxu0 0.0
  %1056 = vmatprep.subr.mxu0 0.0
  %1057 = vmatpush1.msra.mxu0 0.0
  %1058 = vmatprep.subr.mxu0 0.0
  %1059 = vmatpush1.msra.mxu0 0.0
  %1060 = vmatprep.mubr.f32.mxu0 0.0
  %1061 = vmatmul.mubr.f32.gmra.mrb[0].mxu0 %v994
  %v1062 = vpop.f32.mrb[0].mxu0
  %v1063 = vadd.f32 0.0, %v1062
  %v1064 = vpop.f32.mrb[0].mxu0
  %1065 = vdwg.mxu0
  %v1066 = vadd.f32 %v988, %v1063
  %v1067 = vmul.f32 %v1066, %v429
  %v1068 = vtanh.pop %v1067
  %v1069 = vmul.f32 %v1068, %v435
  %v1070 = vadd.f32 %v1069, %v440
  %v1071 = vmul.f32 %v1070, %v817
  %1073 = vrot.lane.b32.xlu0 %v1070, 64
  %v1074 = vpop.permute.xlu0 %1073
  %v1076 = vmul.f32 %v1070, %v1074
  %1078 = vrot.lane.b32.xlu0 %v1076, 32
  %v1079 = vpop.permute.xlu0 %1078
  %v1081 = vadd.f32 %v1071, %v1079
  %v1082 = vtanh.pop %v1081
  %1084 = vrot.lane.b32.xlu0 %v1082, 64
  %v1085 = vpop.permute.xlu0 %1084
  %v1087 = vmul.f32 %v1070, %v1085
  %1088 = vmatprep.subr.mxu0 0.0
  %1089 = vmatpush1.msra.mxu0 %v13
  %1090 = vmatprep.subr.mxu0 0.0
  %1091 = vmatpush1.msra.mxu0 %v14
  %1092 = vmatprep.subr.mxu0 0.0
  %1093 = vmatpush1.msra.mxu0 %v15
  %1094 = vmatprep.subr.mxu0 0.0
  %1095 = vmatpush1.msra.mxu0 %v16
  %1096 = vmatprep.subr.mxu0 0.0
  %1097 = vmatpush1.msra.mxu0 0.0
  %1098 = vmatprep.subr.mxu0 0.0
  %1099 = vmatpush1.msra.mxu0 0.0
  %1100 = vmatprep.subr.mxu0 0.0
  %1101 = vmatpush1.msra.mxu0 0.0
  %1102 = vmatprep.subr.mxu0 0.0
  %1103 = vmatpush1.msra.mxu0 0.0
  %1104 = vmatprep.subr.mxu0 0.0
  %1105 = vmatpush1.msra.mxu0 0.0
  %1106 = vmatprep.subr.mxu0 0.0
  %1107 = vmatpush1.msra.mxu0 0.0
  %1108 = vmatprep.subr.mxu0 0.0
  %1109 = vmatpush1.msra.mxu0 0.0
  %1110 = vmatprep.subr.mxu0 0.0
  %1111 = vmatpush1.msra.mxu0 0.0
  %1112 = vmatprep.subr.mxu0 0.0
  %1113 = vmatpush1.msra.mxu0 0.0
  %1114 = vmatprep.subr.mxu0 0.0
  %1115 = vmatpush1.msra.mxu0 0.0
  %1116 = vmatprep.subr.mxu0 0.0
  %1117 = vmatpush1.msra.mxu0 0.0
  %1118 = vmatprep.subr.mxu0 0.0
  %1119 = vmatpush1.msra.mxu0 0.0
  %1120 = vmatprep.subr.mxu0 0.0
  %1121 = vmatpush1.msra.mxu0 0.0
  %1122 = vmatprep.subr.mxu0 0.0
  %1123 = vmatpush1.msra.mxu0 0.0
  %1124 = vmatprep.subr.mxu0 0.0
  %1125 = vmatpush1.msra.mxu0 0.0
  %1126 = vmatprep.subr.mxu0 0.0
  %1127 = vmatpush1.msra.mxu0 0.0
  %1128 = vmatprep.subr.mxu0 0.0
  %1129 = vmatpush1.msra.mxu0 0.0
  %1130 = vmatprep.subr.mxu0 0.0
  %1131 = vmatpush1.msra.mxu0 0.0
  %1132 = vmatprep.subr.mxu0 0.0
  %1133 = vmatpush1.msra.mxu0 0.0
  %1134 = vmatprep.subr.mxu0 0.0
  %1135 = vmatpush1.msra.mxu0 0.0
  %1136 = vmatprep.subr.mxu0 0.0
  %1137 = vmatpush1.msra.mxu0 0.0
  %1138 = vmatprep.subr.mxu0 0.0
  %1139 = vmatpush1.msra.mxu0 0.0
  %1140 = vmatprep.subr.mxu0 0.0
  %1141 = vmatpush1.msra.mxu0 0.0
  %1142 = vmatprep.subr.mxu0 0.0
  %1143 = vmatpush1.msra.mxu0 0.0
  %1144 = vmatprep.subr.mxu0 0.0
  %1145 = vmatpush1.msra.mxu0 0.0
  %1146 = vmatprep.subr.mxu0 0.0
  %1147 = vmatpush1.msra.mxu0 0.0
  %1148 = vmatprep.subr.mxu0 0.0
  %1149 = vmatpush1.msra.mxu0 0.0
  %1150 = vmatprep.subr.mxu0 0.0
  %1151 = vmatpush1.msra.mxu0 0.0
  %1152 = vmatprep.mubr.f32.mxu0 0.0
  %1153 = vmatmul.mubr.f32.gmra.mrb[0].mxu0 %v919
  %v1154 = vpop.f32.mrb[0].mxu0
  %v1155 = vadd.f32 0.0, %v1154
  %v1156 = vpop.f32.mrb[0].mxu0
  %1157 = vdwg.mxu0
  %v1158 = vadd.f32 %v363, %v1155
  %v1159 = vmul.f32 %v1158, %v429
  %v1160 = vtanh.pop %v1159
  %v1161 = vmul.f32 %v1160, %v435
  %v1162 = vadd.f32 %v1161, %v440
  %v1163 = vmul.f32 %v1162, %v909
  %1165 = vrot.lane.b32.xlu0 %v1162, 64
  %v1166 = vpop.permute.xlu0 %1165
  %v1168 = vmul.f32 %v1162, %v1166
  %1170 = vrot.lane.b32.xlu0 %v1168, 32
  %v1171 = vpop.permute.xlu0 %1170
  %v1173 = vadd.f32 %v1163, %v1171
  %v1174 = vtanh.pop %v1173
  %1176 = vrot.lane.b32.xlu0 %v1174, 64
  %v1177 = vpop.permute.xlu0 %1176
  %v1179 = vmul.f32 %v1162, %v1177
  %1181 = vrot.lane.b32.xlu0 %v1179, 32
  %v1182 = vpop.permute.xlu0 %1181
  %v1183 = vsel %vm466, %v1182, 0
  %1185 = vmatprep.subr.mxu0 0.0
  %1186 = vmatpush1.msra.mxu0 %v18
  %1187 = vmatprep.subr.mxu0 0.0
  %1188 = vmatpush1.msra.mxu0 %v19
  %1189 = vmatprep.subr.mxu0 0.0
  %1190 = vmatpush1.msra.mxu0 %v20
  %1191 = vmatprep.subr.mxu0 0.0
  %1192 = vmatpush1.msra.mxu0 %v21
  %1193 = vmatprep.subr.mxu0 0.0
  %1194 = vmatpush1.msra.mxu0 0.0
  %1195 = vmatprep.subr.mxu0 0.0
  %1196 = vmatpush1.msra.mxu0 0.0
  %1197 = vmatprep.subr.mxu0 0.0
  %1198 = vmatpush1.msra.mxu0 0.0
  %1199 = vmatprep.subr.mxu0 0.0
  %1200 = vmatpush1.msra.mxu0 0.0
  %1201 = vmatprep.subr.mxu0 0.0
  %1202 = vmatpush1.msra.mxu0 0.0
  %1203 = vmatprep.subr.mxu0 0.0
  %1204 = vmatpush1.msra.mxu0 0.0
  %1205 = vmatprep.subr.mxu0 0.0
  %1206 = vmatpush1.msra.mxu0 0.0
  %1207 = vmatprep.subr.mxu0 0.0
  %1208 = vmatpush1.msra.mxu0 0.0
  %1209 = vmatprep.subr.mxu0 0.0
  %1210 = vmatpush1.msra.mxu0 0.0
  %1211 = vmatprep.subr.mxu0 0.0
  %1212 = vmatpush1.msra.mxu0 0.0
  %1213 = vmatprep.subr.mxu0 0.0
  %1214 = vmatpush1.msra.mxu0 0.0
  %1215 = vmatprep.subr.mxu0 0.0
  %1216 = vmatpush1.msra.mxu0 0.0
  %1217 = vmatprep.subr.mxu0 0.0
  %1218 = vmatpush1.msra.mxu0 0.0
  %1219 = vmatprep.subr.mxu0 0.0
  %1220 = vmatpush1.msra.mxu0 0.0
  %1221 = vmatprep.subr.mxu0 0.0
  %1222 = vmatpush1.msra.mxu0 0.0
  %1223 = vmatprep.subr.mxu0 0.0
  %1224 = vmatpush1.msra.mxu0 0.0
  %1225 = vmatprep.subr.mxu0 0.0
  %1226 = vmatpush1.msra.mxu0 0.0
  %1227 = vmatprep.subr.mxu0 0.0
  %1228 = vmatpush1.msra.mxu0 0.0
  %1229 = vmatprep.subr.mxu0 0.0
  %1230 = vmatpush1.msra.mxu0 0.0
  %1231 = vmatprep.subr.mxu0 0.0
  %1232 = vmatpush1.msra.mxu0 0.0
  %1233 = vmatprep.subr.mxu0 0.0
  %1234 = vmatpush1.msra.mxu0 0.0
  %1235 = vmatprep.subr.mxu0 0.0
  %1236 = vmatpush1.msra.mxu0 0.0
  %1237 = vmatprep.subr.mxu0 0.0
  %1238 = vmatpush1.msra.mxu0 0.0
  %1239 = vmatprep.subr.mxu0 0.0
  %1240 = vmatpush1.msra.mxu0 0.0
  %1241 = vmatprep.subr.mxu0 0.0
  %1242 = vmatpush1.msra.mxu0 0.0
  %1243 = vmatprep.subr.mxu0 0.0
  %1244 = vmatpush1.msra.mxu0 0.0
  %1245 = vmatprep.subr.mxu0 0.0
  %1246 = vmatpush1.msra.mxu0 0.0
  %1247 = vmatprep.subr.mxu0 0.0
  %1248 = vmatpush1.msra.mxu0 0.0
  %1249 = vmatprep.mubr.f32.mxu0 0.0
  %1250 = vmatmul.mubr.f32.gmra.mrb[0].mxu0 %v1183
  %v1251 = vpop.f32.mrb[0].mxu0
  %v1252 = vadd.f32 %v462, %v1251
  %v1253 = vpop.f32.mrb[0].mxu0
  %1254 = vdwg.mxu0
  %1256 = vrot.lane.b32.xlu0 %v1087, 32
  %v1257 = vpop.permute.xlu0 %1256
  %v1258 = vsel %vm466, %v1257, 0
  %1260 = vmatprep.subr.mxu0 0.0
  %1261 = vmatpush1.msra.mxu0 %v22
  %1262 = vmatprep.subr.mxu0 0.0
  %1263 = vmatpush1.msra.mxu0 %v23
  %1264 = vmatprep.subr.mxu0 0.0
  %1265 = vmatpush1.msra.mxu0 %v24
  %1266 = vmatprep.subr.mxu0 0.0
  %1267 = vmatpush1.msra.mxu0 %v25
  %1268 = vmatprep.subr.mxu0 0.0
  %1269 = vmatpush1.msra.mxu0 0.0
  %1270 = vmatprep.subr.mxu0 0.0
  %1271 = vmatpush1.msra.mxu0 0.0
  %1272 = vmatprep.subr.mxu0 0.0
  %1273 = vmatpush1.msra.mxu0 0.0
  %1274 = vmatprep.subr.mxu0 0.0
  %1275 = vmatpush1.msra.mxu0 0.0
  %1276 = vmatprep.subr.mxu0 0.0
  %1277 = vmatpush1.msra.mxu0 0.0
  %1278 = vmatprep.subr.mxu0 0.0
  %1279 = vmatpush1.msra.mxu0 0.0
  %1280 = vmatprep.subr.mxu0 0.0
  %1281 = vmatpush1.msra.mxu0 0.0
  %1282 = vmatprep.subr.mxu0 0.0
  %1283 = vmatpush1.msra.mxu0 0.0
  %1284 = vmatprep.subr.mxu0 0.0
  %1285 = vmatpush1.msra.mxu0 0.0
  %1286 = vmatprep.subr.mxu0 0.0
  %1287 = vmatpush1.msra.mxu0 0.0
  %1288 = vmatprep.subr.mxu0 0.0
  %1289 = vmatpush1.msra.mxu0 0.0
  %1290 = vmatprep.subr.mxu0 0.0
  %1291 = vmatpush1.msra.mxu0 0.0
  %1292 = vmatprep.subr.mxu0 0.0
  %1293 = vmatpush1.msra.mxu0 0.0
  %1294 = vmatprep.subr.mxu0 0.0
  %1295 = vmatpush1.msra.mxu0 0.0
  %1296 = vmatprep.subr.mxu0 0.0
  %1297 = vmatpush1.msra.mxu0 0.0
  %1298 = vmatprep.subr.mxu0 0.0
  %1299 = vmatpush1.msra.mxu0 0.0
  %1300 = vmatprep.subr.mxu0 0.0
  %1301 = vmatpush1.msra.mxu0 0.0
  %1302 = vmatprep.subr.mxu0 0.0
  %1303 = vmatpush1.msra.mxu0 0.0
  %1304 = vmatprep.subr.mxu0 0.0
  %1305 = vmatpush1.msra.mxu0 0.0
  %1306 = vmatprep.subr.mxu0 0.0
  %1307 = vmatpush1.msra.mxu0 0.0
  %1308 = vmatprep.subr.mxu0 0.0
  %1309 = vmatpush1.msra.mxu0 0.0
  %1310 = vmatprep.subr.mxu0 0.0
  %1311 = vmatpush1.msra.mxu0 0.0
  %1312 = vmatprep.subr.mxu0 0.0
  %1313 = vmatpush1.msra.mxu0 0.0
  %1314 = vmatprep.subr.mxu0 0.0
  %1315 = vmatpush1.msra.mxu0 0.0
  %1316 = vmatprep.subr.mxu0 0.0
  %1317 = vmatpush1.msra.mxu0 0.0
  %1318 = vmatprep.subr.mxu0 0.0
  %1319 = vmatpush1.msra.mxu0 0.0
  %1320 = vmatprep.subr.mxu0 0.0
  %1321 = vmatpush1.msra.mxu0 0.0
  %1322 = vmatprep.subr.mxu0 0.0
  %1323 = vmatpush1.msra.mxu0 0.0
  %1324 = vmatprep.mubr.f32.mxu0 0.0
  %1325 = vmatmul.mubr.f32.gmra.mrb[0].mxu0 %v1258
  %v1326 = vpop.f32.mrb[0].mxu0
  %v1327 = vadd.f32 0.0, %v1326
  %v1328 = vpop.f32.mrb[0].mxu0
  %1329 = vdwg.mxu0
  %v1330 = vadd.f32 %v1252, %v1327
  %v1331 = vmul.f32 %v1330, %v429
  %v1332 = vtanh.pop %v1331
  %v1333 = vmul.f32 %v1332, %v435
  %v1334 = vadd.f32 %v1333, %v440
  %v1335 = vmul.f32 %v1334, %v1081
  %1337 = vrot.lane.b32.xlu0 %v1334, 64
  %v1338 = vpop.permute.xlu0 %1337
  %v1340 = vmul.f32 %v1334, %v1338
  %1342 = vrot.lane.b32.xlu0 %v1340, 32
  %v1343 = vpop.permute.xlu0 %1342
  %v1345 = vadd.f32 %v1335, %v1343
  %v1346 = vtanh.pop %v1345
  %1348 = vrot.lane.b32.xlu0 %v1346, 64
  %v1349 = vpop.permute.xlu0 %1348
  %v1351 = vmul.f32 %v1334, %v1349
  %1352 = vmatprep.subr.mxu0 0.0
  %1353 = vmatpush1.msra.mxu0 %v13
  %1354 = vmatprep.subr.mxu0 0.0
  %1355 = vmatpush1.msra.mxu0 %v14
  %1356 = vmatprep.subr.mxu0 0.0
  %1357 = vmatpush1.msra.mxu0 %v15
  %1358 = vmatprep.subr.mxu0 0.0
  %1359 = vmatpush1.msra.mxu0 %v16
  %1360 = vmatprep.subr.mxu0 0.0
  %1361 = vmatpush1.msra.mxu0 0.0
  %1362 = vmatprep.subr.mxu0 0.0
  %1363 = vmatpush1.msra.mxu0 0.0
  %1364 = vmatprep.subr.mxu0 0.0
  %1365 = vmatpush1.msra.mxu0 0.0
  %1366 = vmatprep.subr.mxu0 0.0
  %1367 = vmatpush1.msra.mxu0 0.0
  %1368 = vmatprep.subr.mxu0 0.0
  %1369 = vmatpush1.msra.mxu0 0.0
  %1370 = vmatprep.subr.mxu0 0.0
  %1371 = vmatpush1.msra.mxu0 0.0
  %1372 = vmatprep.subr.mxu0 0.0
  %1373 = vmatpush1.msra.mxu0 0.0
  %1374 = vmatprep.subr.mxu0 0.0
  %1375 = vmatpush1.msra.mxu0 0.0
  %1376 = vmatprep.subr.mxu0 0.0
  %1377 = vmatpush1.msra.mxu0 0.0
  %1378 = vmatprep.subr.mxu0 0.0
  %1379 = vmatpush1.msra.mxu0 0.0
  %1380 = vmatprep.subr.mxu0 0.0
  %1381 = vmatpush1.msra.mxu0 0.0
  %1382 = vmatprep.subr.mxu0 0.0
  %1383 = vmatpush1.msra.mxu0 0.0
  %1384 = vmatprep.subr.mxu0 0.0
  %1385 = vmatpush1.msra.mxu0 0.0
  %1386 = vmatprep.subr.mxu0 0.0
  %1387 = vmatpush1.msra.mxu0 0.0
  %1388 = vmatprep.subr.mxu0 0.0
  %1389 = vmatpush1.msra.mxu0 0.0
  %1390 = vmatprep.subr.mxu0 0.0
  %1391 = vmatpush1.msra.mxu0 0.0
  %1392 = vmatprep.subr.mxu0 0.0
  %1393 = vmatpush1.msra.mxu0 0.0
  %1394 = vmatprep.subr.mxu0 0.0
  %1395 = vmatpush1.msra.mxu0 0.0
  %1396 = vmatprep.subr.mxu0 0.0
  %1397 = vmatpush1.msra.mxu0 0.0
  %1398 = vmatprep.subr.mxu0 0.0
  %1399 = vmatpush1.msra.mxu0 0.0
  %1400 = vmatprep.subr.mxu0 0.0
  %1401 = vmatpush1.msra.mxu0 0.0
  %1402 = vmatprep.subr.mxu0 0.0
  %1403 = vmatpush1.msra.mxu0 0.0
  %1404 = vmatprep.subr.mxu0 0.0
  %1405 = vmatpush1.msra.mxu0 0.0
  %1406 = vmatprep.subr.mxu0 0.0
  %1407 = vmatpush1.msra.mxu0 0.0
  %1408 = vmatprep.subr.mxu0 0.0
  %1409 = vmatpush1.msra.mxu0 0.0
  %1410 = vmatprep.subr.mxu0 0.0
  %1411 = vmatpush1.msra.mxu0 0.0
  %1412 = vmatprep.subr.mxu0 0.0
  %1413 = vmatpush1.msra.mxu0 0.0
  %1414 = vmatprep.subr.mxu0 0.0
  %1415 = vmatpush1.msra.mxu0 0.0
  %1416 = vmatprep.mubr.f32.mxu0 0.0
  %1417 = vmatmul.mubr.f32.gmra.mrb[0].mxu0 %v1183
  %v1418 = vpop.f32.mrb[0].mxu0
  %v1419 = vadd.f32 0.0, %v1418
  %v1420 = vpop.f32.mrb[0].mxu0
  %1421 = vdwg.mxu0
  %v1422 = vadd.f32 %v368, %v1419
  %v1423 = vmul.f32 %v1422, %v429
  %v1424 = vtanh.pop %v1423
  %v1425 = vmul.f32 %v1424, %v435
  %v1426 = vadd.f32 %v1425, %v440
  %v1427 = vmul.f32 %v1426, %v1173
  %1429 = vrot.lane.b32.xlu0 %v1426, 64
  %v1430 = vpop.permute.xlu0 %1429
  %v1432 = vmul.f32 %v1426, %v1430
  %1434 = vrot.lane.b32.xlu0 %v1432, 32
  %v1435 = vpop.permute.xlu0 %1434
  %v1437 = vadd.f32 %v1427, %v1435
  %v1438 = vtanh.pop %v1437
  %1440 = vrot.lane.b32.xlu0 %v1438, 64
  %v1441 = vpop.permute.xlu0 %1440
  %v1443 = vmul.f32 %v1426, %v1441
  %1445 = vrot.lane.b32.xlu0 %v1443, 32
  %v1446 = vpop.permute.xlu0 %1445
  %v1447 = vsel %vm466, %v1446, 0
  %1449 = vmatprep.subr.mxu0 0.0
  %1450 = vmatpush1.msra.mxu0 %v18
  %1451 = vmatprep.subr.mxu0 0.0
  %1452 = vmatpush1.msra.mxu0 %v19
  %1453 = vmatprep.subr.mxu0 0.0
  %1454 = vmatpush1.msra.mxu0 %v20
  %1455 = vmatprep.subr.mxu0 0.0
  %1456 = vmatpush1.msra.mxu0 %v21
  %1457 = vmatprep.subr.mxu0 0.0
  %1458 = vmatpush1.msra.mxu0 0.0
  %1459 = vmatprep.subr.mxu0 0.0
  %1460 = vmatpush1.msra.mxu0 0.0
  %1461 = vmatprep.subr.mxu0 0.0
  %1462 = vmatpush1.msra.mxu0 0.0
  %1463 = vmatprep.subr.mxu0 0.0
  %1464 = vmatpush1.msra.mxu0 0.0
  %1465 = vmatprep.subr.mxu0 0.0
  %1466 = vmatpush1.msra.mxu0 0.0
  %1467 = vmatprep.subr.mxu0 0.0
  %1468 = vmatpush1.msra.mxu0 0.0
  %1469 = vmatprep.subr.mxu0 0.0
  %1470 = vmatpush1.msra.mxu0 0.0
  %1471 = vmatprep.subr.mxu0 0.0
  %1472 = vmatpush1.msra.mxu0 0.0
  %1473 = vmatprep.subr.mxu0 0.0
  %1474 = vmatpush1.msra.mxu0 0.0
  %1475 = vmatprep.subr.mxu0 0.0
  %1476 = vmatpush1.msra.mxu0 0.0
  %1477 = vmatprep.subr.mxu0 0.0
  %1478 = vmatpush1.msra.mxu0 0.0
  %1479 = vmatprep.subr.mxu0 0.0
  %1480 = vmatpush1.msra.mxu0 0.0
  %1481 = vmatprep.subr.mxu0 0.0
  %1482 = vmatpush1.msra.mxu0 0.0
  %1483 = vmatprep.subr.mxu0 0.0
  %1484 = vmatpush1.msra.mxu0 0.0
  %1485 = vmatprep.subr.mxu0 0.0
  %1486 = vmatpush1.msra.mxu0 0.0
  %1487 = vmatprep.subr.mxu0 0.0
  %1488 = vmatpush1.msra.mxu0 0.0
  %1489 = vmatprep.subr.mxu0 0.0
  %1490 = vmatpush1.msra.mxu0 0.0
  %1491 = vmatprep.subr.mxu0 0.0
  %1492 = vmatpush1.msra.mxu0 0.0
  %1493 = vmatprep.subr.mxu0 0.0
  %1494 = vmatpush1.msra.mxu0 0.0
  %1495 = vmatprep.subr.mxu0 0.0
  %1496 = vmatpush1.msra.mxu0 0.0
  %1497 = vmatprep.subr.mxu0 0.0
  %1498 = vmatpush1.msra.mxu0 0.0
  %1499 = vmatprep.subr.mxu0 0.0
  %1500 = vmatpush1.msra.mxu0 0.0
  %1501 = vmatprep.subr.mxu0 0.0
  %1502 = vmatpush1.msra.mxu0 0.0
  %1503 = vmatprep.subr.mxu0 0.0
  %1504 = vmatpush1.msra.mxu0 0.0
  %1505 = vmatprep.subr.mxu0 0.0
  %1506 = vmatpush1.msra.mxu0 0.0
  %1507 = vmatprep.subr.mxu0 0.0
  %1508 = vmatpush1.msra.mxu0 0.0
  %1509 = vmatprep.subr.mxu0 0.0
  %1510 = vmatpush1.msra.mxu0 0.0
  %1511 = vmatprep.subr.mxu0 0.0
  %1512 = vmatpush1.msra.mxu0 0.0
  %1513 = vmatprep.mubr.f32.mxu0 0.0
  %1514 = vmatmul.mubr.f32.gmra.mrb[0].mxu0 %v1447
  %v1515 = vpop.f32.mrb[0].mxu0
  %v1516 = vadd.f32 %v462, %v1515
  %v1517 = vpop.f32.mrb[0].mxu0
  %1518 = vdwg.mxu0
  %1520 = vrot.lane.b32.xlu0 %v1351, 32
  %v1521 = vpop.permute.xlu0 %1520
  %v1522 = vsel %vm466, %v1521, 0
  %1524 = vmatprep.subr.mxu0 0.0
  %1525 = vmatpush1.msra.mxu0 %v22
  %1526 = vmatprep.subr.mxu0 0.0
  %1527 = vmatpush1.msra.mxu0 %v23
  %1528 = vmatprep.subr.mxu0 0.0
  %1529 = vmatpush1.msra.mxu0 %v24
  %1530 = vmatprep.subr.mxu0 0.0
  %1531 = vmatpush1.msra.mxu0 %v25
  %1532 = vmatprep.subr.mxu0 0.0
  %1533 = vmatpush1.msra.mxu0 0.0
  %1534 = vmatprep.subr.mxu0 0.0
  %1535 = vmatpush1.msra.mxu0 0.0
  %1536 = vmatprep.subr.mxu0 0.0
  %1537 = vmatpush1.msra.mxu0 0.0
  %1538 = vmatprep.subr.mxu0 0.0
  %1539 = vmatpush1.msra.mxu0 0.0
  %1540 = vmatprep.subr.mxu0 0.0
  %1541 = vmatpush1.msra.mxu0 0.0
  %1542 = vmatprep.subr.mxu0 0.0
  %1543 = vmatpush1.msra.mxu0 0.0
  %1544 = vmatprep.subr.mxu0 0.0
  %1545 = vmatpush1.msra.mxu0 0.0
  %1546 = vmatprep.subr.mxu0 0.0
  %1547 = vmatpush1.msra.mxu0 0.0
  %1548 = vmatprep.subr.mxu0 0.0
  %1549 = vmatpush1.msra.mxu0 0.0
  %1550 = vmatprep.subr.mxu0 0.0
  %1551 = vmatpush1.msra.mxu0 0.0
  %1552 = vmatprep.subr.mxu0 0.0
  %1553 = vmatpush1.msra.mxu0 0.0
  %1554 = vmatprep.subr.mxu0 0.0
  %1555 = vmatpush1.msra.mxu0 0.0
  %1556 = vmatprep.subr.mxu0 0.0
  %1557 = vmatpush1.msra.mxu0 0.0
  %1558 = vmatprep.subr.mxu0 0.0
  %1559 = vmatpush1.msra.mxu0 0.0
  %1560 = vmatprep.subr.mxu0 0.0
  %1561 = vmatpush1.msra.mxu0 0.0
  %1562 = vmatprep.subr.mxu0 0.0
  %1563 = vmatpush1.msra.mxu0 0.0
  %1564 = vmatprep.subr.mxu0 0.0
  %1565 = vmatpush1.msra.mxu0 0.0
  %1566 = vmatprep.subr.mxu0 0.0
  %1567 = vmatpush1.msra.mxu0 0.0
  %1568 = vmatprep.subr.mxu0 0.0
  %1569 = vmatpush1.msra.mxu0 0.0
  %1570 = vmatprep.subr.mxu0 0.0
  %1571 = vmatpush1.msra.mxu0 0.0
  %1572 = vmatprep.subr.mxu0 0.0
  %1573 = vmatpush1.msra.mxu0 0.0
  %1574 = vmatprep.subr.mxu0 0.0
  %1575 = vmatpush1.msra.mxu0 0.0
  %1576 = vmatprep.subr.mxu0 0.0
  %1577 = vmatpush1.msra.mxu0 0.0
  %1578 = vmatprep.subr.mxu0 0.0
  %1579 = vmatpush1.msra.mxu0 0.0
  %1580 = vmatprep.subr.mxu0 0.0
  %1581 = vmatpush1.msra.mxu0 0.0
  %1582 = vmatprep.subr.mxu0 0.0
  %1583 = vmatpush1.msra.mxu0 0.0
  %1584 = vmatprep.subr.mxu0 0.0
  %1585 = vmatpush1.msra.mxu0 0.0
  %1586 = vmatprep.subr.mxu0 0.0
  %1587 = vmatpush1.msra.mxu0 0.0
  %1588 = vmatprep.mubr.f32.mxu0 0.0
  %1589 = vmatmul.mubr.f32.gmra.mrb[0].mxu0 %v1522
  %v1590 = vpop.f32.mrb[0].mxu0
  %v1591 = vadd.f32 0.0, %v1590
  %v1592 = vpop.f32.mrb[0].mxu0
  %1593 = vdwg.mxu0
  %v1594 = vadd.f32 %v1516, %v1591
  %v1595 = vmul.f32 %v1594, %v429
  %v1596 = vtanh.pop %v1595
  %v1597 = vmul.f32 %v1596, %v435
  %v1598 = vadd.f32 %v1597, %v440
  %v1599 = vmul.f32 %v1598, %v1345
  %1601 = vrot.lane.b32.xlu0 %v1598, 64
  %v1602 = vpop.permute.xlu0 %1601
  %v1604 = vmul.f32 %v1598, %v1602
  %1606 = vrot.lane.b32.xlu0 %v1604, 32
  %v1607 = vpop.permute.xlu0 %1606
  %v1609 = vadd.f32 %v1599, %v1607
  %v1610 = vtanh.pop %v1609
  %1612 = vrot.lane.b32.xlu0 %v1610, 64
  %v1613 = vpop.permute.xlu0 %1612
  %v1615 = vmul.f32 %v1598, %v1613
  %1616 = vmatprep.subr.mxu0 0.0
  %1617 = vmatpush1.msra.mxu0 %v13
  %1618 = vmatprep.subr.mxu0 0.0
  %1619 = vmatpush1.msra.mxu0 %v14
  %1620 = vmatprep.subr.mxu0 0.0
  %1621 = vmatpush1.msra.mxu0 %v15
  %1622 = vmatprep.subr.mxu0 0.0
  %1623 = vmatpush1.msra.mxu0 %v16
  %1624 = vmatprep.subr.mxu0 0.0
  %1625 = vmatpush1.msra.mxu0 0.0
  %1626 = vmatprep.subr.mxu0 0.0
  %1627 = vmatpush1.msra.mxu0 0.0
  %1628 = vmatprep.subr.mxu0 0.0
  %1629 = vmatpush1.msra.mxu0 0.0
  %1630 = vmatprep.subr.mxu0 0.0
  %1631 = vmatpush1.msra.mxu0 0.0
  %1632 = vmatprep.subr.mxu0 0.0
  %1633 = vmatpush1.msra.mxu0 0.0
  %1634 = vmatprep.subr.mxu0 0.0
  %1635 = vmatpush1.msra.mxu0 0.0
  %1636 = vmatprep.subr.mxu0 0.0
  %1637 = vmatpush1.msra.mxu0 0.0
  %1638 = vmatprep.subr.mxu0 0.0
  %1639 = vmatpush1.msra.mxu0 0.0
  %1640 = vmatprep.subr.mxu0 0.0
  %1641 = vmatpush1.msra.mxu0 0.0
  %1642 = vmatprep.subr.mxu0 0.0
  %1643 = vmatpush1.msra.mxu0 0.0
  %1644 = vmatprep.subr.mxu0 0.0
  %1645 = vmatpush1.msra.mxu0 0.0
  %1646 = vmatprep.subr.mxu0 0.0
  %1647 = vmatpush1.msra.mxu0 0.0
  %1648 = vmatprep.subr.mxu0 0.0
  %1649 = vmatpush1.msra.mxu0 0.0
  %1650 = vmatprep.subr.mxu0 0.0
  %1651 = vmatpush1.msra.mxu0 0.0
  %1652 = vmatprep.subr.mxu0 0.0
  %1653 = vmatpush1.msra.mxu0 0.0
  %1654 = vmatprep.subr.mxu0 0.0
  %1655 = vmatpush1.msra.mxu0 0.0
  %1656 = vmatprep.subr.mxu0 0.0
  %1657 = vmatpush1.msra.mxu0 0.0
  %1658 = vmatprep.subr.mxu0 0.0
  %1659 = vmatpush1.msra.mxu0 0.0
  %1660 = vmatprep.subr.mxu0 0.0
  %1661 = vmatpush1.msra.mxu0 0.0
  %1662 = vmatprep.subr.mxu0 0.0
  %1663 = vmatpush1.msra.mxu0 0.0
  %1664 = vmatprep.subr.mxu0 0.0
  %1665 = vmatpush1.msra.mxu0 0.0
  %1666 = vmatprep.subr.mxu0 0.0
  %1667 = vmatpush1.msra.mxu0 0.0
  %1668 = vmatprep.subr.mxu0 0.0
  %1669 = vmatpush1.msra.mxu0 0.0
  %1670 = vmatprep.subr.mxu0 0.0
  %1671 = vmatpush1.msra.mxu0 0.0
  %1672 = vmatprep.subr.mxu0 0.0
  %1673 = vmatpush1.msra.mxu0 0.0
  %1674 = vmatprep.subr.mxu0 0.0
  %1675 = vmatpush1.msra.mxu0 0.0
  %1676 = vmatprep.subr.mxu0 0.0
  %1677 = vmatpush1.msra.mxu0 0.0
  %1678 = vmatprep.subr.mxu0 0.0
  %1679 = vmatpush1.msra.mxu0 0.0
  %1680 = vmatprep.mubr.f32.mxu0 0.0
  %1681 = vmatmul.mubr.f32.gmra.mrb[0].mxu0 %v1447
  %v1682 = vpop.f32.mrb[0].mxu0
  %v1683 = vadd.f32 0.0, %v1682
  %v1684 = vpop.f32.mrb[0].mxu0
  %1685 = vdwg.mxu0
  %v1686 = vadd.f32 %v373, %v1683
  %v1687 = vmul.f32 %v1686, %v429
  %v1688 = vtanh.pop %v1687
  %v1689 = vmul.f32 %v1688, %v435
  %v1690 = vadd.f32 %v1689, %v440
  %v1691 = vmul.f32 %v1690, %v1437
  %1693 = vrot.lane.b32.xlu0 %v1690, 64
  %v1694 = vpop.permute.xlu0 %1693
  %v1696 = vmul.f32 %v1690, %v1694
  %1698 = vrot.lane.b32.xlu0 %v1696, 32
  %v1699 = vpop.permute.xlu0 %1698
  %v1701 = vadd.f32 %v1691, %v1699
  %v1702 = vtanh.pop %v1701
  %1704 = vrot.lane.b32.xlu0 %v1702, 64
  %v1705 = vpop.permute.xlu0 %1704
  %v1707 = vmul.f32 %v1690, %v1705
  %1709 = vrot.lane.b32.xlu0 %v1707, 32
  %v1710 = vpop.permute.xlu0 %1709
  %v1711 = vsel %vm466, %v1710, 0
  %1713 = vmatprep.subr.mxu0 0.0
  %1714 = vmatpush1.msra.mxu0 %v18
  %1715 = vmatprep.subr.mxu0 0.0
  %1716 = vmatpush1.msra.mxu0 %v19
  %1717 = vmatprep.subr.mxu0 0.0
  %1718 = vmatpush1.msra.mxu0 %v20
  %1719 = vmatprep.subr.mxu0 0.0
  %1720 = vmatpush1.msra.mxu0 %v21
  %1721 = vmatprep.subr.mxu0 0.0
  %1722 = vmatpush1.msra.mxu0 0.0
  %1723 = vmatprep.subr.mxu0 0.0
  %1724 = vmatpush1.msra.mxu0 0.0
  %1725 = vmatprep.subr.mxu0 0.0
  %1726 = vmatpush1.msra.mxu0 0.0
  %1727 = vmatprep.subr.mxu0 0.0
  %1728 = vmatpush1.msra.mxu0 0.0
  %1729 = vmatprep.subr.mxu0 0.0
  %1730 = vmatpush1.msra.mxu0 0.0
  %1731 = vmatprep.subr.mxu0 0.0
  %1732 = vmatpush1.msra.mxu0 0.0
  %1733 = vmatprep.subr.mxu0 0.0
  %1734 = vmatpush1.msra.mxu0 0.0
  %1735 = vmatprep.subr.mxu0 0.0
  %1736 = vmatpush1.msra.mxu0 0.0
  %1737 = vmatprep.subr.mxu0 0.0
  %1738 = vmatpush1.msra.mxu0 0.0
  %1739 = vmatprep.subr.mxu0 0.0
  %1740 = vmatpush1.msra.mxu0 0.0
  %1741 = vmatprep.subr.mxu0 0.0
  %1742 = vmatpush1.msra.mxu0 0.0
  %1743 = vmatprep.subr.mxu0 0.0
  %1744 = vmatpush1.msra.mxu0 0.0
  %1745 = vmatprep.subr.mxu0 0.0
  %1746 = vmatpush1.msra.mxu0 0.0
  %1747 = vmatprep.subr.mxu0 0.0
  %1748 = vmatpush1.msra.mxu0 0.0
  %1749 = vmatprep.subr.mxu0 0.0
  %1750 = vmatpush1.msra.mxu0 0.0
  %1751 = vmatprep.subr.mxu0 0.0
  %1752 = vmatpush1.msra.mxu0 0.0
  %1753 = vmatprep.subr.mxu0 0.0
  %1754 = vmatpush1.msra.mxu0 0.0
  %1755 = vmatprep.subr.mxu0 0.0
  %1756 = vmatpush1.msra.mxu0 0.0
  %1757 = vmatprep.subr.mxu0 0.0
  %1758 = vmatpush1.msra.mxu0 0.0
  %1759 = vmatprep.subr.mxu0 0.0
  %1760 = vmatpush1.msra.mxu0 0.0
  %1761 = vmatprep.subr.mxu0 0.0
  %1762 = vmatpush1.msra.mxu0 0.0
  %1763 = vmatprep.subr.mxu0 0.0
  %1764 = vmatpush1.msra.mxu0 0.0
  %1765 = vmatprep.subr.mxu0 0.0
  %1766 = vmatpush1.msra.mxu0 0.0
  %1767 = vmatprep.subr.mxu0 0.0
  %1768 = vmatpush1.msra.mxu0 0.0
  %1769 = vmatprep.subr.mxu0 0.0
  %1770 = vmatpush1.msra.mxu0 0.0
  %1771 = vmatprep.subr.mxu0 0.0
  %1772 = vmatpush1.msra.mxu0 0.0
  %1773 = vmatprep.subr.mxu0 0.0
  %1774 = vmatpush1.msra.mxu0 0.0
  %1775 = vmatprep.subr.mxu0 0.0
  %1776 = vmatpush1.msra.mxu0 0.0
  %1777 = vmatprep.mubr.f32.mxu0 0.0
  %1778 = vmatmul.mubr.f32.gmra.mrb[0].mxu0 %v1711
  %v1779 = vpop.f32.mrb[0].mxu0
  %v1780 = vadd.f32 %v462, %v1779
  %v1781 = vpop.f32.mrb[0].mxu0
  %1782 = vdwg.mxu0
  %1784 = vrot.lane.b32.xlu0 %v1615, 32
  %v1785 = vpop.permute.xlu0 %1784
  %v1786 = vsel %vm466, %v1785, 0
  %1788 = vmatprep.subr.mxu0 0.0
  %1789 = vmatpush1.msra.mxu0 %v22
  %1790 = vmatprep.subr.mxu0 0.0
  %1791 = vmatpush1.msra.mxu0 %v23
  %1792 = vmatprep.subr.mxu0 0.0
  %1793 = vmatpush1.msra.mxu0 %v24
  %1794 = vmatprep.subr.mxu0 0.0
  %1795 = vmatpush1.msra.mxu0 %v25
  %1796 = vmatprep.subr.mxu0 0.0
  %1797 = vmatpush1.msra.mxu0 0.0
  %1798 = vmatprep.subr.mxu0 0.0
  %1799 = vmatpush1.msra.mxu0 0.0
  %1800 = vmatprep.subr.mxu0 0.0
  %1801 = vmatpush1.msra.mxu0 0.0
  %1802 = vmatprep.subr.mxu0 0.0
  %1803 = vmatpush1.msra.mxu0 0.0
  %1804 = vmatprep.subr.mxu0 0.0
  %1805 = vmatpush1.msra.mxu0 0.0
  %1806 = vmatprep.subr.mxu0 0.0
  %1807 = vmatpush1.msra.mxu0 0.0
  %1808 = vmatprep.subr.mxu0 0.0
  %1809 = vmatpush1.msra.mxu0 0.0
  %1810 = vmatprep.subr.mxu0 0.0
  %1811 = vmatpush1.msra.mxu0 0.0
  %1812 = vmatprep.subr.mxu0 0.0
  %1813 = vmatpush1.msra.mxu0 0.0
  %1814 = vmatprep.subr.mxu0 0.0
  %1815 = vmatpush1.msra.mxu0 0.0
  %1816 = vmatprep.subr.mxu0 0.0
  %1817 = vmatpush1.msra.mxu0 0.0
  %1818 = vmatprep.subr.mxu0 0.0
  %1819 = vmatpush1.msra.mxu0 0.0
  %1820 = vmatprep.subr.mxu0 0.0
  %1821 = vmatpush1.msra.mxu0 0.0
  %1822 = vmatprep.subr.mxu0 0.0
  %1823 = vmatpush1.msra.mxu0 0.0
  %1824 = vmatprep.subr.mxu0 0.0
  %1825 = vmatpush1.msra.mxu0 0.0
  %1826 = vmatprep.subr.mxu0 0.0
  %1827 = vmatpush1.msra.mxu0 0.0
  %1828 = vmatprep.subr.mxu0 0.0
  %1829 = vmatpush1.msra.mxu0 0.0
  %1830 = vmatprep.subr.mxu0 0.0
  %1831 = vmatpush1.msra.mxu0 0.0
  %1832 = vmatprep.subr.mxu0 0.0
  %1833 = vmatpush1.msra.mxu0 0.0
  %1834 = vmatprep.subr.mxu0 0.0
  %1835 = vmatpush1.msra.mxu0 0.0
  %1836 = vmatprep.subr.mxu0 0.0
  %1837 = vmatpush1.msra.mxu0 0.0
  %1838 = vmatprep.subr.mxu0 0.0
  %1839 = vmatpush1.msra.mxu0 0.0
  %1840 = vmatprep.subr.mxu0 0.0
  %1841 = vmatpush1.msra.mxu0 0.0
  %1842 = vmatprep.subr.mxu0 0.0
  %1843 = vmatpush1.msra.mxu0 0.0
  %1844 = vmatprep.subr.mxu0 0.0
  %1845 = vmatpush1.msra.mxu0 0.0
  %1846 = vmatprep.subr.mxu0 0.0
  %1847 = vmatpush1.msra.mxu0 0.0
  %1848 = vmatprep.subr.mxu0 0.0
  %1849 = vmatpush1.msra.mxu0 0.0
  %1850 = vmatprep.subr.mxu0 0.0
  %1851 = vmatpush1.msra.mxu0 0.0
  %1852 = vmatprep.mubr.f32.mxu0 0.0
  %1853 = vmatmul.mubr.f32.gmra.mrb[0].mxu0 %v1786
  %v1854 = vpop.f32.mrb[0].mxu0
  %v1855 = vadd.f32 0.0, %v1854
  %v1856 = vpop.f32.mrb[0].mxu0
  %1857 = vdwg.mxu0
  %v1858 = vadd.f32 %v1780, %v1855
  %v1859 = vmul.f32 %v1858, %v429
  %v1860 = vtanh.pop %v1859
  %v1861 = vmul.f32 %v1860, %v435
  %v1862 = vadd.f32 %v1861, %v440
  %v1863 = vmul.f32 %v1862, %v1609
  %1865 = vrot.lane.b32.xlu0 %v1862, 64
  %v1866 = vpop.permute.xlu0 %1865
  %v1868 = vmul.f32 %v1862, %v1866
  %1870 = vrot.lane.b32.xlu0 %v1868, 32
  %v1871 = vpop.permute.xlu0 %1870
  %v1873 = vadd.f32 %v1863, %v1871
  %v1874 = vtanh.pop %v1873
  %1876 = vrot.lane.b32.xlu0 %v1874, 64
  %v1877 = vpop.permute.xlu0 %1876
  %v1879 = vmul.f32 %v1862, %v1877
  %1880 = vmatprep.subr.mxu0 0.0
  %1881 = vmatpush1.msra.mxu0 %v13
  %1882 = vmatprep.subr.mxu0 0.0
  %1883 = vmatpush1.msra.mxu0 %v14
  %1884 = vmatprep.subr.mxu0 0.0
  %1885 = vmatpush1.msra.mxu0 %v15
  %1886 = vmatprep.subr.mxu0 0.0
  %1887 = vmatpush1.msra.mxu0 %v16
  %1888 = vmatprep.subr.mxu0 0.0
  %1889 = vmatpush1.msra.mxu0 0.0
  %1890 = vmatprep.subr.mxu0 0.0
  %1891 = vmatpush1.msra.mxu0 0.0
  %1892 = vmatprep.subr.mxu0 0.0
  %1893 = vmatpush1.msra.mxu0 0.0
  %1894 = vmatprep.subr.mxu0 0.0
  %1895 = vmatpush1.msra.mxu0 0.0
  %1896 = vmatprep.subr.mxu0 0.0
  %1897 = vmatpush1.msra.mxu0 0.0
  %1898 = vmatprep.subr.mxu0 0.0
  %1899 = vmatpush1.msra.mxu0 0.0
  %1900 = vmatprep.subr.mxu0 0.0
  %1901 = vmatpush1.msra.mxu0 0.0
  %1902 = vmatprep.subr.mxu0 0.0
  %1903 = vmatpush1.msra.mxu0 0.0
  %1904 = vmatprep.subr.mxu0 0.0
  %1905 = vmatpush1.msra.mxu0 0.0
  %1906 = vmatprep.subr.mxu0 0.0
  %1907 = vmatpush1.msra.mxu0 0.0
  %1908 = vmatprep.subr.mxu0 0.0
  %1909 = vmatpush1.msra.mxu0 0.0
  %1910 = vmatprep.subr.mxu0 0.0
  %1911 = vmatpush1.msra.mxu0 0.0
  %1912 = vmatprep.subr.mxu0 0.0
  %1913 = vmatpush1.msra.mxu0 0.0
  %1914 = vmatprep.subr.mxu0 0.0
  %1915 = vmatpush1.msra.mxu0 0.0
  %1916 = vmatprep.subr.mxu0 0.0
  %1917 = vmatpush1.msra.mxu0 0.0
  %1918 = vmatprep.subr.mxu0 0.0
  %1919 = vmatpush1.msra.mxu0 0.0
  %1920 = vmatprep.subr.mxu0 0.0
  %1921 = vmatpush1.msra.mxu0 0.0
  %1922 = vmatprep.subr.mxu0 0.0
  %1923 = vmatpush1.msra.mxu0 0.0
  %1924 = vmatprep.subr.mxu0 0.0
  %1925 = vmatpush1.msra.mxu0 0.0
  %1926 = vmatprep.subr.mxu0 0.0
  %1927 = vmatpush1.msra.mxu0 0.0
  %1928 = vmatprep.subr.mxu0 0.0
  %1929 = vmatpush1.msra.mxu0 0.0
  %1930 = vmatprep.subr.mxu0 0.0
  %1931 = vmatpush1.msra.mxu0 0.0
  %1932 = vmatprep.subr.mxu0 0.0
  %1933 = vmatpush1.msra.mxu0 0.0
  %1934 = vmatprep.subr.mxu0 0.0
  %1935 = vmatpush1.msra.mxu0 0.0
  %1936 = vmatprep.subr.mxu0 0.0
  %1937 = vmatpush1.msra.mxu0 0.0
  %1938 = vmatprep.subr.mxu0 0.0
  %1939 = vmatpush1.msra.mxu0 0.0
  %1940 = vmatprep.subr.mxu0 0.0
  %1941 = vmatpush1.msra.mxu0 0.0
  %1942 = vmatprep.subr.mxu0 0.0
  %1943 = vmatpush1.msra.mxu0 0.0
  %1944 = vmatprep.mubr.f32.mxu0 0.0
  %1945 = vmatmul.mubr.f32.gmra.mrb[0].mxu0 %v1711
  %v1946 = vpop.f32.mrb[0].mxu0
  %v1947 = vadd.f32 0.0, %v1946
  %v1948 = vpop.f32.mrb[0].mxu0
  %1949 = vdwg.mxu0
  %v1950 = vadd.f32 %v378, %v1947
  %v1951 = vmul.f32 %v1950, %v429
  %v1952 = vtanh.pop %v1951
  %v1953 = vmul.f32 %v1952, %v435
  %v1954 = vadd.f32 %v1953, %v440
  %v1955 = vmul.f32 %v1954, %v1701
  %1957 = vrot.lane.b32.xlu0 %v1954, 64
  %v1958 = vpop.permute.xlu0 %1957
  %v1960 = vmul.f32 %v1954, %v1958
  %1962 = vrot.lane.b32.xlu0 %v1960, 32
  %v1963 = vpop.permute.xlu0 %1962
  %v1965 = vadd.f32 %v1955, %v1963
  %v1966 = vtanh.pop %v1965
  %1968 = vrot.lane.b32.xlu0 %v1966, 64
  %v1969 = vpop.permute.xlu0 %1968
  %v1971 = vmul.f32 %v1954, %v1969
  %1973 = vrot.lane.b32.xlu0 %v1971, 32
  %v1974 = vpop.permute.xlu0 %1973
  %v1975 = vsel %vm466, %v1974, 0
  %1977 = vmatprep.subr.mxu0 0.0
  %1978 = vmatpush1.msra.mxu0 %v18
  %1979 = vmatprep.subr.mxu0 0.0
  %1980 = vmatpush1.msra.mxu0 %v19
  %1981 = vmatprep.subr.mxu0 0.0
  %1982 = vmatpush1.msra.mxu0 %v20
  %1983 = vmatprep.subr.mxu0 0.0
  %1984 = vmatpush1.msra.mxu0 %v21
  %1985 = vmatprep.subr.mxu0 0.0
  %1986 = vmatpush1.msra.mxu0 0.0
  %1987 = vmatprep.subr.mxu0 0.0
  %1988 = vmatpush1.msra.mxu0 0.0
  %1989 = vmatprep.subr.mxu0 0.0
  %1990 = vmatpush1.msra.mxu0 0.0
  %1991 = vmatprep.subr.mxu0 0.0
  %1992 = vmatpush1.msra.mxu0 0.0
  %1993 = vmatprep.subr.mxu0 0.0
  %1994 = vmatpush1.msra.mxu0 0.0
  %1995 = vmatprep.subr.mxu0 0.0
  %1996 = vmatpush1.msra.mxu0 0.0
  %1997 = vmatprep.subr.mxu0 0.0
  %1998 = vmatpush1.msra.mxu0 0.0
  %1999 = vmatprep.subr.mxu0 0.0
  %2000 = vmatpush1.msra.mxu0 0.0
  %2001 = vmatprep.subr.mxu0 0.0
  %2002 = vmatpush1.msra.mxu0 0.0
  %2003 = vmatprep.subr.mxu0 0.0
  %2004 = vmatpush1.msra.mxu0 0.0
  %2005 = vmatprep.subr.mxu0 0.0
  %2006 = vmatpush1.msra.mxu0 0.0
  %2007 = vmatprep.subr.mxu0 0.0
  %2008 = vmatpush1.msra.mxu0 0.0
  %2009 = vmatprep.subr.mxu0 0.0
  %2010 = vmatpush1.msra.mxu0 0.0
  %2011 = vmatprep.subr.mxu0 0.0
  %2012 = vmatpush1.msra.mxu0 0.0
  %2013 = vmatprep.subr.mxu0 0.0
  %2014 = vmatpush1.msra.mxu0 0.0
  %2015 = vmatprep.subr.mxu0 0.0
  %2016 = vmatpush1.msra.mxu0 0.0
  %2017 = vmatprep.subr.mxu0 0.0
  %2018 = vmatpush1.msra.mxu0 0.0
  %2019 = vmatprep.subr.mxu0 0.0
  %2020 = vmatpush1.msra.mxu0 0.0
  %2021 = vmatprep.subr.mxu0 0.0
  %2022 = vmatpush1.msra.mxu0 0.0
  %2023 = vmatprep.subr.mxu0 0.0
  %2024 = vmatpush1.msra.mxu0 0.0
  %2025 = vmatprep.subr.mxu0 0.0
  %2026 = vmatpush1.msra.mxu0 0.0
  %2027 = vmatprep.subr.mxu0 0.0
  %2028 = vmatpush1.msra.mxu0 0.0
  %2029 = vmatprep.subr.mxu0 0.0
  %2030 = vmatpush1.msra.mxu0 0.0
  %2031 = vmatprep.subr.mxu0 0.0
  %2032 = vmatpush1.msra.mxu0 0.0
  %2033 = vmatprep.subr.mxu0 0.0
  %2034 = vmatpush1.msra.mxu0 0.0
  %2035 = vmatprep.subr.mxu0 0.0
  %2036 = vmatpush1.msra.mxu0 0.0
  %2037 = vmatprep.subr.mxu0 0.0
  %2038 = vmatpush1.msra.mxu0 0.0
  %2039 = vmatprep.subr.mxu0 0.0
  %2040 = vmatpush1.msra.mxu0 0.0
  %2041 = vmatprep.mubr.f32.mxu0 0.0
  %2042 = vmatmul.mubr.f32.gmra.mrb[0].mxu0 %v1975
  %v2043 = vpop.f32.mrb[0].mxu0
  %v2044 = vadd.f32 %v462, %v2043
  %v2045 = vpop.f32.mrb[0].mxu0
  %2046 = vdwg.mxu0
  %2048 = vrot.lane.b32.xlu0 %v1879, 32
  %v2049 = vpop.permute.xlu0 %2048
  %v2050 = vsel %vm466, %v2049, 0
  %2052 = vmatprep.subr.mxu0 0.0
  %2053 = vmatpush1.msra.mxu0 %v22
  %2054 = vmatprep.subr.mxu0 0.0
  %2055 = vmatpush1.msra.mxu0 %v23
  %2056 = vmatprep.subr.mxu0 0.0
  %2057 = vmatpush1.msra.mxu0 %v24
  %2058 = vmatprep.subr.mxu0 0.0
  %2059 = vmatpush1.msra.mxu0 %v25
  %2060 = vmatprep.subr.mxu0 0.0
  %2061 = vmatpush1.msra.mxu0 0.0
  %2062 = vmatprep.subr.mxu0 0.0
  %2063 = vmatpush1.msra.mxu0 0.0
  %2064 = vmatprep.subr.mxu0 0.0
  %2065 = vmatpush1.msra.mxu0 0.0
  %2066 = vmatprep.subr.mxu0 0.0
  %2067 = vmatpush1.msra.mxu0 0.0
  %2068 = vmatprep.subr.mxu0 0.0
  %2069 = vmatpush1.msra.mxu0 0.0
  %2070 = vmatprep.subr.mxu0 0.0
  %2071 = vmatpush1.msra.mxu0 0.0
  %2072 = vmatprep.subr.mxu0 0.0
  %2073 = vmatpush1.msra.mxu0 0.0
  %2074 = vmatprep.subr.mxu0 0.0
  %2075 = vmatpush1.msra.mxu0 0.0
  %2076 = vmatprep.subr.mxu0 0.0
  %2077 = vmatpush1.msra.mxu0 0.0
  %2078 = vmatprep.subr.mxu0 0.0
  %2079 = vmatpush1.msra.mxu0 0.0
  %2080 = vmatprep.subr.mxu0 0.0
  %2081 = vmatpush1.msra.mxu0 0.0
  %2082 = vmatprep.subr.mxu0 0.0
  %2083 = vmatpush1.msra.mxu0 0.0
  %2084 = vmatprep.subr.mxu0 0.0
  %2085 = vmatpush1.msra.mxu0 0.0
  %2086 = vmatprep.subr.mxu0 0.0
  %2087 = vmatpush1.msra.mxu0 0.0
  %2088 = vmatprep.subr.mxu0 0.0
  %2089 = vmatpush1.msra.mxu0 0.0
  %2090 = vmatprep.subr.mxu0 0.0
  %2091 = vmatpush1.msra.mxu0 0.0
  %2092 = vmatprep.subr.mxu0 0.0
  %2093 = vmatpush1.msra.mxu0 0.0
  %2094 = vmatprep.subr.mxu0 0.0
  %2095 = vmatpush1.msra.mxu0 0.0
  %2096 = vmatprep.subr.mxu0 0.0
  %2097 = vmatpush1.msra.mxu0 0.0
  %2098 = vmatprep.subr.mxu0 0.0
  %2099 = vmatpush1.msra.mxu0 0.0
  %2100 = vmatprep.subr.mxu0 0.0
  %2101 = vmatpush1.msra.mxu0 0.0
  %2102 = vmatprep.subr.mxu0 0.0
  %2103 = vmatpush1.msra.mxu0 0.0
  %2104 = vmatprep.subr.mxu0 0.0
  %2105 = vmatpush1.msra.mxu0 0.0
  %2106 = vmatprep.subr.mxu0 0.0
  %2107 = vmatpush1.msra.mxu0 0.0
  %2108 = vmatprep.subr.mxu0 0.0
  %2109 = vmatpush1.msra.mxu0 0.0
  %2110 = vmatprep.subr.mxu0 0.0
  %2111 = vmatpush1.msra.mxu0 0.0
  %2112 = vmatprep.subr.mxu0 0.0
  %2113 = vmatpush1.msra.mxu0 0.0
  %2114 = vmatprep.subr.mxu0 0.0
  %2115 = vmatpush1.msra.mxu0 0.0
  %2116 = vmatprep.mubr.f32.mxu0 0.0
  %2117 = vmatmul.mubr.f32.gmra.mrb[0].mxu0 %v2050
  %v2118 = vpop.f32.mrb[0].mxu0
  %v2119 = vadd.f32 0.0, %v2118
  %v2120 = vpop.f32.mrb[0].mxu0
  %2121 = vdwg.mxu0
  %v2122 = vadd.f32 %v2044, %v2119
  %v2123 = vmul.f32 %v2122, %v429
  %v2124 = vtanh.pop %v2123
  %v2125 = vmul.f32 %v2124, %v435
  %v2126 = vadd.f32 %v2125, %v440
  %v2127 = vmul.f32 %v2126, %v1873
  %2129 = vrot.lane.b32.xlu0 %v2126, 64
  %v2130 = vpop.permute.xlu0 %2129
  %v2132 = vmul.f32 %v2126, %v2130
  %2134 = vrot.lane.b32.xlu0 %v2132, 32
  %v2135 = vpop.permute.xlu0 %2134
  %v2137 = vadd.f32 %v2127, %v2135
  %v2138 = vtanh.pop %v2137
  %2140 = vrot.lane.b32.xlu0 %v2138, 64
  %v2141 = vpop.permute.xlu0 %2140
  %v2143 = vmul.f32 %v2126, %v2141
  %2144 = vmatprep.subr.mxu0 0.0
  %2145 = vmatpush1.msra.mxu0 %v13
  %2146 = vmatprep.subr.mxu0 0.0
  %2147 = vmatpush1.msra.mxu0 %v14
  %2148 = vmatprep.subr.mxu0 0.0
  %2149 = vmatpush1.msra.mxu0 %v15
  %2150 = vmatprep.subr.mxu0 0.0
  %2151 = vmatpush1.msra.mxu0 %v16
  %2152 = vmatprep.subr.mxu0 0.0
  %2153 = vmatpush1.msra.mxu0 0.0
  %2154 = vmatprep.subr.mxu0 0.0
  %2155 = vmatpush1.msra.mxu0 0.0
  %2156 = vmatprep.subr.mxu0 0.0
  %2157 = vmatpush1.msra.mxu0 0.0
  %2158 = vmatprep.subr.mxu0 0.0
  %2159 = vmatpush1.msra.mxu0 0.0
  %2160 = vmatprep.subr.mxu0 0.0
  %2161 = vmatpush1.msra.mxu0 0.0
  %2162 = vmatprep.subr.mxu0 0.0
  %2163 = vmatpush1.msra.mxu0 0.0
  %2164 = vmatprep.subr.mxu0 0.0
  %2165 = vmatpush1.msra.mxu0 0.0
  %2166 = vmatprep.subr.mxu0 0.0
  %2167 = vmatpush1.msra.mxu0 0.0
  %2168 = vmatprep.subr.mxu0 0.0
  %2169 = vmatpush1.msra.mxu0 0.0
  %2170 = vmatprep.subr.mxu0 0.0
  %2171 = vmatpush1.msra.mxu0 0.0
  %2172 = vmatprep.subr.mxu0 0.0
  %2173 = vmatpush1.msra.mxu0 0.0
  %2174 = vmatprep.subr.mxu0 0.0
  %2175 = vmatpush1.msra.mxu0 0.0
  %2176 = vmatprep.subr.mxu0 0.0
  %2177 = vmatpush1.msra.mxu0 0.0
  %2178 = vmatprep.subr.mxu0 0.0
  %2179 = vmatpush1.msra.mxu0 0.0
  %2180 = vmatprep.subr.mxu0 0.0
  %2181 = vmatpush1.msra.mxu0 0.0
  %2182 = vmatprep.subr.mxu0 0.0
  %2183 = vmatpush1.msra.mxu0 0.0
  %2184 = vmatprep.subr.mxu0 0.0
  %2185 = vmatpush1.msra.mxu0 0.0
  %2186 = vmatprep.subr.mxu0 0.0
  %2187 = vmatpush1.msra.mxu0 0.0
  %2188 = vmatprep.subr.mxu0 0.0
  %2189 = vmatpush1.msra.mxu0 0.0
  %2190 = vmatprep.subr.mxu0 0.0
  %2191 = vmatpush1.msra.mxu0 0.0
  %2192 = vmatprep.subr.mxu0 0.0
  %2193 = vmatpush1.msra.mxu0 0.0
  %2194 = vmatprep.subr.mxu0 0.0
  %2195 = vmatpush1.msra.mxu0 0.0
  %2196 = vmatprep.subr.mxu0 0.0
  %2197 = vmatpush1.msra.mxu0 0.0
  %2198 = vmatprep.subr.mxu0 0.0
  %2199 = vmatpush1.msra.mxu0 0.0
  %2200 = vmatprep.subr.mxu0 0.0
  %2201 = vmatpush1.msra.mxu0 0.0
  %2202 = vmatprep.subr.mxu0 0.0
  %2203 = vmatpush1.msra.mxu0 0.0
  %2204 = vmatprep.subr.mxu0 0.0
  %2205 = vmatpush1.msra.mxu0 0.0
  %2206 = vmatprep.subr.mxu0 0.0
  %2207 = vmatpush1.msra.mxu0 0.0
  %2208 = vmatprep.mubr.f32.mxu0 0.0
  %2209 = vmatmul.mubr.f32.gmra.mrb[0].mxu0 %v1975
  %v2210 = vpop.f32.mrb[0].mxu0
  %v2211 = vadd.f32 0.0, %v2210
  %v2212 = vpop.f32.mrb[0].mxu0
  %2213 = vdwg.mxu0
  %v2214 = vadd.f32 %v383, %v2211
  %v2215 = vmul.f32 %v2214, %v429
  %v2216 = vtanh.pop %v2215
  %v2217 = vmul.f32 %v2216, %v435
  %v2218 = vadd.f32 %v2217, %v440
  %v2219 = vmul.f32 %v2218, %v1965
  %2221 = vrot.lane.b32.xlu0 %v2218, 64
  %v2222 = vpop.permute.xlu0 %2221
  %v2224 = vmul.f32 %v2218, %v2222
  %2226 = vrot.lane.b32.xlu0 %v2224, 32
  %v2227 = vpop.permute.xlu0 %2226
  %v2229 = vadd.f32 %v2219, %v2227
  %v2230 = vtanh.pop %v2229
  %2232 = vrot.lane.b32.xlu0 %v2230, 64
  %v2233 = vpop.permute.xlu0 %2232
  %v2235 = vmul.f32 %v2218, %v2233
  %2237 = vrot.lane.b32.xlu0 %v2235, 32
  %v2238 = vpop.permute.xlu0 %2237
  %v2239 = vsel %vm466, %v2238, 0
  %2241 = vmatprep.subr.mxu0 0.0
  %2242 = vmatpush1.msra.mxu0 %v18
  %2243 = vmatprep.subr.mxu0 0.0
  %2244 = vmatpush1.msra.mxu0 %v19
  %2245 = vmatprep.subr.mxu0 0.0
  %2246 = vmatpush1.msra.mxu0 %v20
  %2247 = vmatprep.subr.mxu0 0.0
  %2248 = vmatpush1.msra.mxu0 %v21
  %2249 = vmatprep.subr.mxu0 0.0
  %2250 = vmatpush1.msra.mxu0 0.0
  %2251 = vmatprep.subr.mxu0 0.0
  %2252 = vmatpush1.msra.mxu0 0.0
  %2253 = vmatprep.subr.mxu0 0.0
  %2254 = vmatpush1.msra.mxu0 0.0
  %2255 = vmatprep.subr.mxu0 0.0
  %2256 = vmatpush1.msra.mxu0 0.0
  %2257 = vmatprep.subr.mxu0 0.0
  %2258 = vmatpush1.msra.mxu0 0.0
  %2259 = vmatprep.subr.mxu0 0.0
  %2260 = vmatpush1.msra.mxu0 0.0
  %2261 = vmatprep.subr.mxu0 0.0
  %2262 = vmatpush1.msra.mxu0 0.0
  %2263 = vmatprep.subr.mxu0 0.0
  %2264 = vmatpush1.msra.mxu0 0.0
  %2265 = vmatprep.subr.mxu0 0.0
  %2266 = vmatpush1.msra.mxu0 0.0
  %2267 = vmatprep.subr.mxu0 0.0
  %2268 = vmatpush1.msra.mxu0 0.0
  %2269 = vmatprep.subr.mxu0 0.0
  %2270 = vmatpush1.msra.mxu0 0.0
  %2271 = vmatprep.subr.mxu0 0.0
  %2272 = vmatpush1.msra.mxu0 0.0
  %2273 = vmatprep.subr.mxu0 0.0
  %2274 = vmatpush1.msra.mxu0 0.0
  %2275 = vmatprep.subr.mxu0 0.0
  %2276 = vmatpush1.msra.mxu0 0.0
  %2277 = vmatprep.subr.mxu0 0.0
  %2278 = vmatpush1.msra.mxu0 0.0
  %2279 = vmatprep.subr.mxu0 0.0
  %2280 = vmatpush1.msra.mxu0 0.0
  %2281 = vmatprep.subr.mxu0 0.0
  %2282 = vmatpush1.msra.mxu0 0.0
  %2283 = vmatprep.subr.mxu0 0.0
  %2284 = vmatpush1.msra.mxu0 0.0
  %2285 = vmatprep.subr.mxu0 0.0
  %2286 = vmatpush1.msra.mxu0 0.0
  %2287 = vmatprep.subr.mxu0 0.0
  %2288 = vmatpush1.msra.mxu0 0.0
  %2289 = vmatprep.subr.mxu0 0.0
  %2290 = vmatpush1.msra.mxu0 0.0
  %2291 = vmatprep.subr.mxu0 0.0
  %2292 = vmatpush1.msra.mxu0 0.0
  %2293 = vmatprep.subr.mxu0 0.0
  %2294 = vmatpush1.msra.mxu0 0.0
  %2295 = vmatprep.subr.mxu0 0.0
  %2296 = vmatpush1.msra.mxu0 0.0
  %2297 = vmatprep.subr.mxu0 0.0
  %2298 = vmatpush1.msra.mxu0 0.0
  %2299 = vmatprep.subr.mxu0 0.0
  %2300 = vmatpush1.msra.mxu0 0.0
  %2301 = vmatprep.subr.mxu0 0.0
  %2302 = vmatpush1.msra.mxu0 0.0
  %2303 = vmatprep.subr.mxu0 0.0
  %2304 = vmatpush1.msra.mxu0 0.0
  %2305 = vmatprep.mubr.f32.mxu0 0.0
  %2306 = vmatmul.mubr.f32.gmra.mrb[0].mxu0 %v2239
  %v2307 = vpop.f32.mrb[0].mxu0
  %v2308 = vadd.f32 %v462, %v2307
  %v2309 = vpop.f32.mrb[0].mxu0
  %2310 = vdwg.mxu0
  %2312 = vrot.lane.b32.xlu0 %v2143, 32
  %v2313 = vpop.permute.xlu0 %2312
  %v2314 = vsel %vm466, %v2313, 0
  %2316 = vmatprep.subr.mxu0 0.0
  %2317 = vmatpush1.msra.mxu0 %v22
  %2318 = vmatprep.subr.mxu0 0.0
  %2319 = vmatpush1.msra.mxu0 %v23
  %2320 = vmatprep.subr.mxu0 0.0
  %2321 = vmatpush1.msra.mxu0 %v24
  %2322 = vmatprep.subr.mxu0 0.0
  %2323 = vmatpush1.msra.mxu0 %v25
  %2324 = vmatprep.subr.mxu0 0.0
  %2325 = vmatpush1.msra.mxu0 0.0
  %2326 = vmatprep.subr.mxu0 0.0
  %2327 = vmatpush1.msra.mxu0 0.0
  %2328 = vmatprep.subr.mxu0 0.0
  %2329 = vmatpush1.msra.mxu0 0.0
  %2330 = vmatprep.subr.mxu0 0.0
  %2331 = vmatpush1.msra.mxu0 0.0
  %2332 = vmatprep.subr.mxu0 0.0
  %2333 = vmatpush1.msra.mxu0 0.0
  %2334 = vmatprep.subr.mxu0 0.0
  %2335 = vmatpush1.msra.mxu0 0.0
  %2336 = vmatprep.subr.mxu0 0.0
  %2337 = vmatpush1.msra.mxu0 0.0
  %2338 = vmatprep.subr.mxu0 0.0
  %2339 = vmatpush1.msra.mxu0 0.0
  %2340 = vmatprep.subr.mxu0 0.0
  %2341 = vmatpush1.msra.mxu0 0.0
  %2342 = vmatprep.subr.mxu0 0.0
  %2343 = vmatpush1.msra.mxu0 0.0
  %2344 = vmatprep.subr.mxu0 0.0
  %2345 = vmatpush1.msra.mxu0 0.0
  %2346 = vmatprep.subr.mxu0 0.0
  %2347 = vmatpush1.msra.mxu0 0.0
  %2348 = vmatprep.subr.mxu0 0.0
  %2349 = vmatpush1.msra.mxu0 0.0
  %2350 = vmatprep.subr.mxu0 0.0
  %2351 = vmatpush1.msra.mxu0 0.0
  %2352 = vmatprep.subr.mxu0 0.0
  %2353 = vmatpush1.msra.mxu0 0.0
  %2354 = vmatprep.subr.mxu0 0.0
  %2355 = vmatpush1.msra.mxu0 0.0
  %2356 = vmatprep.subr.mxu0 0.0
  %2357 = vmatpush1.msra.mxu0 0.0
  %2358 = vmatprep.subr.mxu0 0.0
  %2359 = vmatpush1.msra.mxu0 0.0
  %2360 = vmatprep.subr.mxu0 0.0
  %2361 = vmatpush1.msra.mxu0 0.0
  %2362 = vmatprep.subr.mxu0 0.0
  %2363 = vmatpush1.msra.mxu0 0.0
  %2364 = vmatprep.subr.mxu0 0.0
  %2365 = vmatpush1.msra.mxu0 0.0
  %2366 = vmatprep.subr.mxu0 0.0
  %2367 = vmatpush1.msra.mxu0 0.0
  %2368 = vmatprep.subr.mxu0 0.0
  %2369 = vmatpush1.msra.mxu0 0.0
  %2370 = vmatprep.subr.mxu0 0.0
  %2371 = vmatpush1.msra.mxu0 0.0
  %2372 = vmatprep.subr.mxu0 0.0
  %2373 = vmatpush1.msra.mxu0 0.0
  %2374 = vmatprep.subr.mxu0 0.0
  %2375 = vmatpush1.msra.mxu0 0.0
  %2376 = vmatprep.subr.mxu0 0.0
  %2377 = vmatpush1.msra.mxu0 0.0
  %2378 = vmatprep.subr.mxu0 0.0
  %2379 = vmatpush1.msra.mxu0 0.0
  %2380 = vmatprep.mubr.f32.mxu0 0.0
  %2381 = vmatmul.mubr.f32.gmra.mrb[0].mxu0 %v2314
  %v2382 = vpop.f32.mrb[0].mxu0
  %v2383 = vadd.f32 0.0, %v2382
  %v2384 = vpop.f32.mrb[0].mxu0
  %2385 = vdwg.mxu0
  %v2386 = vadd.f32 %v2308, %v2383
  %v2387 = vmul.f32 %v2386, %v429
  %v2388 = vtanh.pop %v2387
  %v2389 = vmul.f32 %v2388, %v435
  %v2390 = vadd.f32 %v2389, %v440
  %v2391 = vmul.f32 %v2390, %v2137
  %2393 = vrot.lane.b32.xlu0 %v2390, 64
  %v2394 = vpop.permute.xlu0 %2393
  %v2396 = vmul.f32 %v2390, %v2394
  %2398 = vrot.lane.b32.xlu0 %v2396, 32
  %v2399 = vpop.permute.xlu0 %2398
  %v2401 = vadd.f32 %v2391, %v2399
  %v2402 = vtanh.pop %v2401
  %2404 = vrot.lane.b32.xlu0 %v2402, 64
  %v2405 = vpop.permute.xlu0 %2404
  %v2407 = vmul.f32 %v2390, %v2405
  %2408 = vmatprep.subr.mxu0 0.0
  %2409 = vmatpush1.msra.mxu0 %v13
  %2410 = vmatprep.subr.mxu0 0.0
  %2411 = vmatpush1.msra.mxu0 %v14
  %2412 = vmatprep.subr.mxu0 0.0
  %2413 = vmatpush1.msra.mxu0 %v15
  %2414 = vmatprep.subr.mxu0 0.0
  %2415 = vmatpush1.msra.mxu0 %v16
  %2416 = vmatprep.subr.mxu0 0.0
  %2417 = vmatpush1.msra.mxu0 0.0
  %2418 = vmatprep.subr.mxu0 0.0
  %2419 = vmatpush1.msra.mxu0 0.0
  %2420 = vmatprep.subr.mxu0 0.0
  %2421 = vmatpush1.msra.mxu0 0.0
  %2422 = vmatprep.subr.mxu0 0.0
  %2423 = vmatpush1.msra.mxu0 0.0
  %2424 = vmatprep.subr.mxu0 0.0
  %2425 = vmatpush1.msra.mxu0 0.0
  %2426 = vmatprep.subr.mxu0 0.0
  %2427 = vmatpush1.msra.mxu0 0.0
  %2428 = vmatprep.subr.mxu0 0.0
  %2429 = vmatpush1.msra.mxu0 0.0
  %2430 = vmatprep.subr.mxu0 0.0
  %2431 = vmatpush1.msra.mxu0 0.0
  %2432 = vmatprep.subr.mxu0 0.0
  %2433 = vmatpush1.msra.mxu0 0.0
  %2434 = vmatprep.subr.mxu0 0.0
  %2435 = vmatpush1.msra.mxu0 0.0
  %2436 = vmatprep.subr.mxu0 0.0
  %2437 = vmatpush1.msra.mxu0 0.0
  %2438 = vmatprep.subr.mxu0 0.0
  %2439 = vmatpush1.msra.mxu0 0.0
  %2440 = vmatprep.subr.mxu0 0.0
  %2441 = vmatpush1.msra.mxu0 0.0
  %2442 = vmatprep.subr.mxu0 0.0
  %2443 = vmatpush1.msra.mxu0 0.0
  %2444 = vmatprep.subr.mxu0 0.0
  %2445 = vmatpush1.msra.mxu0 0.0
  %2446 = vmatprep.subr.mxu0 0.0
  %2447 = vmatpush1.msra.mxu0 0.0
  %2448 = vmatprep.subr.mxu0 0.0
  %2449 = vmatpush1.msra.mxu0 0.0
  %2450 = vmatprep.subr.mxu0 0.0
  %2451 = vmatpush1.msra.mxu0 0.0
  %2452 = vmatprep.subr.mxu0 0.0
  %2453 = vmatpush1.msra.mxu0 0.0
  %2454 = vmatprep.subr.mxu0 0.0
  %2455 = vmatpush1.msra.mxu0 0.0
  %2456 = vmatprep.subr.mxu0 0.0
  %2457 = vmatpush1.msra.mxu0 0.0
  %2458 = vmatprep.subr.mxu0 0.0
  %2459 = vmatpush1.msra.mxu0 0.0
  %2460 = vmatprep.subr.mxu0 0.0
  %2461 = vmatpush1.msra.mxu0 0.0
  %2462 = vmatprep.subr.mxu0 0.0
  %2463 = vmatpush1.msra.mxu0 0.0
  %2464 = vmatprep.subr.mxu0 0.0
  %2465 = vmatpush1.msra.mxu0 0.0
  %2466 = vmatprep.subr.mxu0 0.0
  %2467 = vmatpush1.msra.mxu0 0.0
  %2468 = vmatprep.subr.mxu0 0.0
  %2469 = vmatpush1.msra.mxu0 0.0
  %2470 = vmatprep.subr.mxu0 0.0
  %2471 = vmatpush1.msra.mxu0 0.0
  %2472 = vmatprep.mubr.f32.mxu0 0.0
  %2473 = vmatmul.mubr.f32.gmra.mrb[0].mxu0 %v2239
  %v2474 = vpop.f32.mrb[0].mxu0
  %v2475 = vadd.f32 0.0, %v2474
  %v2476 = vpop.f32.mrb[0].mxu0
  %2477 = vdwg.mxu0
  %v2478 = vadd.f32 %v388, %v2475
  %v2479 = vmul.f32 %v2478, %v429
  %v2480 = vtanh.pop %v2479
  %v2481 = vmul.f32 %v2480, %v435
  %v2482 = vadd.f32 %v2481, %v440
  %v2483 = vmul.f32 %v2482, %v2229
  %2485 = vrot.lane.b32.xlu0 %v2482, 64
  %v2486 = vpop.permute.xlu0 %2485
  %v2488 = vmul.f32 %v2482, %v2486
  %2490 = vrot.lane.b32.xlu0 %v2488, 32
  %v2491 = vpop.permute.xlu0 %2490
  %v2493 = vadd.f32 %v2483, %v2491
  %v2494 = vtanh.pop %v2493
  %2496 = vrot.lane.b32.xlu0 %v2494, 64
  %v2497 = vpop.permute.xlu0 %2496
  %v2499 = vmul.f32 %v2482, %v2497
  %2501 = vrot.lane.b32.xlu0 %v2499, 32
  %v2502 = vpop.permute.xlu0 %2501
  %v2503 = vsel %vm466, %v2502, 0
  %2505 = vmatprep.subr.mxu0 0.0
  %2506 = vmatpush1.msra.mxu0 %v18
  %2507 = vmatprep.subr.mxu0 0.0
  %2508 = vmatpush1.msra.mxu0 %v19
  %2509 = vmatprep.subr.mxu0 0.0
  %2510 = vmatpush1.msra.mxu0 %v20
  %2511 = vmatprep.subr.mxu0 0.0
  %2512 = vmatpush1.msra.mxu0 %v21
  %2513 = vmatprep.subr.mxu0 0.0
  %2514 = vmatpush1.msra.mxu0 0.0
  %2515 = vmatprep.subr.mxu0 0.0
  %2516 = vmatpush1.msra.mxu0 0.0
  %2517 = vmatprep.subr.mxu0 0.0
  %2518 = vmatpush1.msra.mxu0 0.0
  %2519 = vmatprep.subr.mxu0 0.0
  %2520 = vmatpush1.msra.mxu0 0.0
  %2521 = vmatprep.subr.mxu0 0.0
  %2522 = vmatpush1.msra.mxu0 0.0
  %2523 = vmatprep.subr.mxu0 0.0
  %2524 = vmatpush1.msra.mxu0 0.0
  %2525 = vmatprep.subr.mxu0 0.0
  %2526 = vmatpush1.msra.mxu0 0.0
  %2527 = vmatprep.subr.mxu0 0.0
  %2528 = vmatpush1.msra.mxu0 0.0
  %2529 = vmatprep.subr.mxu0 0.0
  %2530 = vmatpush1.msra.mxu0 0.0
  %2531 = vmatprep.subr.mxu0 0.0
  %2532 = vmatpush1.msra.mxu0 0.0
  %2533 = vmatprep.subr.mxu0 0.0
  %2534 = vmatpush1.msra.mxu0 0.0
  %2535 = vmatprep.subr.mxu0 0.0
  %2536 = vmatpush1.msra.mxu0 0.0
  %2537 = vmatprep.subr.mxu0 0.0
  %2538 = vmatpush1.msra.mxu0 0.0
  %2539 = vmatprep.subr.mxu0 0.0
  %2540 = vmatpush1.msra.mxu0 0.0
  %2541 = vmatprep.subr.mxu0 0.0
  %2542 = vmatpush1.msra.mxu0 0.0
  %2543 = vmatprep.subr.mxu0 0.0
  %2544 = vmatpush1.msra.mxu0 0.0
  %2545 = vmatprep.subr.mxu0 0.0
  %2546 = vmatpush1.msra.mxu0 0.0
  %2547 = vmatprep.subr.mxu0 0.0
  %2548 = vmatpush1.msra.mxu0 0.0
  %2549 = vmatprep.subr.mxu0 0.0
  %2550 = vmatpush1.msra.mxu0 0.0
  %2551 = vmatprep.subr.mxu0 0.0
  %2552 = vmatpush1.msra.mxu0 0.0
  %2553 = vmatprep.subr.mxu0 0.0
  %2554 = vmatpush1.msra.mxu0 0.0
  %2555 = vmatprep.subr.mxu0 0.0
  %2556 = vmatpush1.msra.mxu0 0.0
  %2557 = vmatprep.subr.mxu0 0.0
  %2558 = vmatpush1.msra.mxu0 0.0
  %2559 = vmatprep.subr.mxu0 0.0
  %2560 = vmatpush1.msra.mxu0 0.0
  %2561 = vmatprep.subr.mxu0 0.0
  %2562 = vmatpush1.msra.mxu0 0.0
  %2563 = vmatprep.subr.mxu0 0.0
  %2564 = vmatpush1.msra.mxu0 0.0
  %2565 = vmatprep.subr.mxu0 0.0
  %2566 = vmatpush1.msra.mxu0 0.0
  %2567 = vmatprep.subr.mxu0 0.0
  %2568 = vmatpush1.msra.mxu0 0.0
  %2569 = vmatprep.mubr.f32.mxu0 0.0
  %2570 = vmatmul.mubr.f32.gmra.mrb[0].mxu0 %v2503
  %v2571 = vpop.f32.mrb[0].mxu0
  %v2572 = vadd.f32 %v462, %v2571
  %v2573 = vpop.f32.mrb[0].mxu0
  %2574 = vdwg.mxu0
  %2576 = vrot.lane.b32.xlu0 %v2407, 32
  %v2577 = vpop.permute.xlu0 %2576
  %v2578 = vsel %vm466, %v2577, 0
  %2580 = vmatprep.subr.mxu0 0.0
  %2581 = vmatpush1.msra.mxu0 %v22
  %2582 = vmatprep.subr.mxu0 0.0
  %2583 = vmatpush1.msra.mxu0 %v23
  %2584 = vmatprep.subr.mxu0 0.0
  %2585 = vmatpush1.msra.mxu0 %v24
  %2586 = vmatprep.subr.mxu0 0.0
  %2587 = vmatpush1.msra.mxu0 %v25
  %2588 = vmatprep.subr.mxu0 0.0
  %2589 = vmatpush1.msra.mxu0 0.0
  %2590 = vmatprep.subr.mxu0 0.0
  %2591 = vmatpush1.msra.mxu0 0.0
  %2592 = vmatprep.subr.mxu0 0.0
  %2593 = vmatpush1.msra.mxu0 0.0
  %2594 = vmatprep.subr.mxu0 0.0
  %2595 = vmatpush1.msra.mxu0 0.0
  %2596 = vmatprep.subr.mxu0 0.0
  %2597 = vmatpush1.msra.mxu0 0.0
  %2598 = vmatprep.subr.mxu0 0.0
  %2599 = vmatpush1.msra.mxu0 0.0
  %2600 = vmatprep.subr.mxu0 0.0
  %2601 = vmatpush1.msra.mxu0 0.0
  %2602 = vmatprep.subr.mxu0 0.0
  %2603 = vmatpush1.msra.mxu0 0.0
  %2604 = vmatprep.subr.mxu0 0.0
  %2605 = vmatpush1.msra.mxu0 0.0
  %2606 = vmatprep.subr.mxu0 0.0
  %2607 = vmatpush1.msra.mxu0 0.0
  %2608 = vmatprep.subr.mxu0 0.0
  %2609 = vmatpush1.msra.mxu0 0.0
  %2610 = vmatprep.subr.mxu0 0.0
  %2611 = vmatpush1.msra.mxu0 0.0
  %2612 = vmatprep.subr.mxu0 0.0
  %2613 = vmatpush1.msra.mxu0 0.0
  %2614 = vmatprep.subr.mxu0 0.0
  %2615 = vmatpush1.msra.mxu0 0.0
  %2616 = vmatprep.subr.mxu0 0.0
  %2617 = vmatpush1.msra.mxu0 0.0
  %2618 = vmatprep.subr.mxu0 0.0
  %2619 = vmatpush1.msra.mxu0 0.0
  %2620 = vmatprep.subr.mxu0 0.0
  %2621 = vmatpush1.msra.mxu0 0.0
  %2622 = vmatprep.subr.mxu0 0.0
  %2623 = vmatpush1.msra.mxu0 0.0
  %2624 = vmatprep.subr.mxu0 0.0
  %2625 = vmatpush1.msra.mxu0 0.0
  %2626 = vmatprep.subr.mxu0 0.0
  %2627 = vmatpush1.msra.mxu0 0.0
  %2628 = vmatprep.subr.mxu0 0.0
  %2629 = vmatpush1.msra.mxu0 0.0
  %2630 = vmatprep.subr.mxu0 0.0
  %2631 = vmatpush1.msra.mxu0 0.0
  %2632 = vmatprep.subr.mxu0 0.0
  %2633 = vmatpush1.msra.mxu0 0.0
  %2634 = vmatprep.subr.mxu0 0.0
  %2635 = vmatpush1.msra.mxu0 0.0
  %2636 = vmatprep.subr.mxu0 0.0
  %2637 = vmatpush1.msra.mxu0 0.0
  %2638 = vmatprep.subr.mxu0 0.0
  %2639 = vmatpush1.msra.mxu0 0.0
  %2640 = vmatprep.subr.mxu0 0.0
  %2641 = vmatpush1.msra.mxu0 0.0
  %2642 = vmatprep.subr.mxu0 0.0
  %2643 = vmatpush1.msra.mxu0 0.0
  %2644 = vmatprep.mubr.f32.mxu0 0.0
  %2645 = vmatmul.mubr.f32.gmra.mrb[0].mxu0 %v2578
  %v2646 = vpop.f32.mrb[0].mxu0
  %v2647 = vadd.f32 0.0, %v2646
  %v2648 = vpop.f32.mrb[0].mxu0
  %2649 = vdwg.mxu0
  %v2650 = vadd.f32 %v2572, %v2647
  %v2651 = vmul.f32 %v2650, %v429
  %v2652 = vtanh.pop %v2651
  %v2653 = vmul.f32 %v2652, %v435
  %v2654 = vadd.f32 %v2653, %v440
  %v2655 = vmul.f32 %v2654, %v2401
  %2657 = vrot.lane.b32.xlu0 %v2654, 64
  %v2658 = vpop.permute.xlu0 %2657
  %v2660 = vmul.f32 %v2654, %v2658
  %2662 = vrot.lane.b32.xlu0 %v2660, 32
  %v2663 = vpop.permute.xlu0 %2662
  %v2665 = vadd.f32 %v2655, %v2663
  %v2666 = vtanh.pop %v2665
  %2668 = vrot.lane.b32.xlu0 %v2666, 64
  %v2669 = vpop.permute.xlu0 %2668
  %v2671 = vmul.f32 %v2654, %v2669
  %2672 = vmatprep.subr.mxu0 0.0
  %2673 = vmatpush1.msra.mxu0 %v13
  %2674 = vmatprep.subr.mxu0 0.0
  %2675 = vmatpush1.msra.mxu0 %v14
  %2676 = vmatprep.subr.mxu0 0.0
  %2677 = vmatpush1.msra.mxu0 %v15
  %2678 = vmatprep.subr.mxu0 0.0
  %2679 = vmatpush1.msra.mxu0 %v16
  %2680 = vmatprep.subr.mxu0 0.0
  %2681 = vmatpush1.msra.mxu0 0.0
  %2682 = vmatprep.subr.mxu0 0.0
  %2683 = vmatpush1.msra.mxu0 0.0
  %2684 = vmatprep.subr.mxu0 0.0
  %2685 = vmatpush1.msra.mxu0 0.0
  %2686 = vmatprep.subr.mxu0 0.0
  %2687 = vmatpush1.msra.mxu0 0.0
  %2688 = vmatprep.subr.mxu0 0.0
  %2689 = vmatpush1.msra.mxu0 0.0
  %2690 = vmatprep.subr.mxu0 0.0
  %2691 = vmatpush1.msra.mxu0 0.0
  %2692 = vmatprep.subr.mxu0 0.0
  %2693 = vmatpush1.msra.mxu0 0.0
  %2694 = vmatprep.subr.mxu0 0.0
  %2695 = vmatpush1.msra.mxu0 0.0
  %2696 = vmatprep.subr.mxu0 0.0
  %2697 = vmatpush1.msra.mxu0 0.0
  %2698 = vmatprep.subr.mxu0 0.0
  %2699 = vmatpush1.msra.mxu0 0.0
  %2700 = vmatprep.subr.mxu0 0.0
  %2701 = vmatpush1.msra.mxu0 0.0
  %2702 = vmatprep.subr.mxu0 0.0
  %2703 = vmatpush1.msra.mxu0 0.0
  %2704 = vmatprep.subr.mxu0 0.0
  %2705 = vmatpush1.msra.mxu0 0.0
  %2706 = vmatprep.subr.mxu0 0.0
  %2707 = vmatpush1.msra.mxu0 0.0
  %2708 = vmatprep.subr.mxu0 0.0
  %2709 = vmatpush1.msra.mxu0 0.0
  %2710 = vmatprep.subr.mxu0 0.0
  %2711 = vmatpush1.msra.mxu0 0.0
  %2712 = vmatprep.subr.mxu0 0.0
  %2713 = vmatpush1.msra.mxu0 0.0
  %2714 = vmatprep.subr.mxu0 0.0
  %2715 = vmatpush1.msra.mxu0 0.0
  %2716 = vmatprep.subr.mxu0 0.0
  %2717 = vmatpush1.msra.mxu0 0.0
  %2718 = vmatprep.subr.mxu0 0.0
  %2719 = vmatpush1.msra.mxu0 0.0
  %2720 = vmatprep.subr.mxu0 0.0
  %2721 = vmatpush1.msra.mxu0 0.0
  %2722 = vmatprep.subr.mxu0 0.0
  %2723 = vmatpush1.msra.mxu0 0.0
  %2724 = vmatprep.subr.mxu0 0.0
  %2725 = vmatpush1.msra.mxu0 0.0
  %2726 = vmatprep.subr.mxu0 0.0
  %2727 = vmatpush1.msra.mxu0 0.0
  %2728 = vmatprep.subr.mxu0 0.0
  %2729 = vmatpush1.msra.mxu0 0.0
  %2730 = vmatprep.subr.mxu0 0.0
  %2731 = vmatpush1.msra.mxu0 0.0
  %2732 = vmatprep.subr.mxu0 0.0
  %2733 = vmatpush1.msra.mxu0 0.0
  %2734 = vmatprep.subr.mxu0 0.0
  %2735 = vmatpush1.msra.mxu0 0.0
  %2736 = vmatprep.mubr.f32.mxu0 0.0
  %2737 = vmatmul.mubr.f32.gmra.mrb[0].mxu0 %v2503
  %v2738 = vpop.f32.mrb[0].mxu0
  %v2739 = vadd.f32 0.0, %v2738
  %v2740 = vpop.f32.mrb[0].mxu0
  %2741 = vdwg.mxu0
  %v2742 = vadd.f32 %v393, %v2739
  %v2743 = vmul.f32 %v2742, %v429
  %v2744 = vtanh.pop %v2743
  %v2745 = vmul.f32 %v2744, %v435
  %v2746 = vadd.f32 %v2745, %v440
  %v2747 = vmul.f32 %v2746, %v2493
  %2749 = vrot.lane.b32.xlu0 %v2746, 64
  %v2750 = vpop.permute.xlu0 %2749
  %v2752 = vmul.f32 %v2746, %v2750
  %2754 = vrot.lane.b32.xlu0 %v2752, 32
  %v2755 = vpop.permute.xlu0 %2754
  %v2757 = vadd.f32 %v2747, %v2755
  %v2758 = vtanh.pop %v2757
  %2760 = vrot.lane.b32.xlu0 %v2758, 64
  %v2761 = vpop.permute.xlu0 %2760
  %v2763 = vmul.f32 %v2746, %v2761
  %2765 = vrot.lane.b32.xlu0 %v2763, 32
  %v2766 = vpop.permute.xlu0 %2765
  %v2767 = vsel %vm466, %v2766, 0
  %2769 = vmatprep.subr.mxu0 0.0
  %2770 = vmatpush1.msra.mxu0 %v18
  %2771 = vmatprep.subr.mxu0 0.0
  %2772 = vmatpush1.msra.mxu0 %v19
  %2773 = vmatprep.subr.mxu0 0.0
  %2774 = vmatpush1.msra.mxu0 %v20
  %2775 = vmatprep.subr.mxu0 0.0
  %2776 = vmatpush1.msra.mxu0 %v21
  %2777 = vmatprep.subr.mxu0 0.0
  %2778 = vmatpush1.msra.mxu0 0.0
  %2779 = vmatprep.subr.mxu0 0.0
  %2780 = vmatpush1.msra.mxu0 0.0
  %2781 = vmatprep.subr.mxu0 0.0
  %2782 = vmatpush1.msra.mxu0 0.0
  %2783 = vmatprep.subr.mxu0 0.0
  %2784 = vmatpush1.msra.mxu0 0.0
  %2785 = vmatprep.subr.mxu0 0.0
  %2786 = vmatpush1.msra.mxu0 0.0
  %2787 = vmatprep.subr.mxu0 0.0
  %2788 = vmatpush1.msra.mxu0 0.0
  %2789 = vmatprep.subr.mxu0 0.0
  %2790 = vmatpush1.msra.mxu0 0.0
  %2791 = vmatprep.subr.mxu0 0.0
  %2792 = vmatpush1.msra.mxu0 0.0
  %2793 = vmatprep.subr.mxu0 0.0
  %2794 = vmatpush1.msra.mxu0 0.0
  %2795 = vmatprep.subr.mxu0 0.0
  %2796 = vmatpush1.msra.mxu0 0.0
  %2797 = vmatprep.subr.mxu0 0.0
  %2798 = vmatpush1.msra.mxu0 0.0
  %2799 = vmatprep.subr.mxu0 0.0
  %2800 = vmatpush1.msra.mxu0 0.0
  %2801 = vmatprep.subr.mxu0 0.0
  %2802 = vmatpush1.msra.mxu0 0.0
  %2803 = vmatprep.subr.mxu0 0.0
  %2804 = vmatpush1.msra.mxu0 0.0
  %2805 = vmatprep.subr.mxu0 0.0
  %2806 = vmatpush1.msra.mxu0 0.0
  %2807 = vmatprep.subr.mxu0 0.0
  %2808 = vmatpush1.msra.mxu0 0.0
  %2809 = vmatprep.subr.mxu0 0.0
  %2810 = vmatpush1.msra.mxu0 0.0
  %2811 = vmatprep.subr.mxu0 0.0
  %2812 = vmatpush1.msra.mxu0 0.0
  %2813 = vmatprep.subr.mxu0 0.0
  %2814 = vmatpush1.msra.mxu0 0.0
  %2815 = vmatprep.subr.mxu0 0.0
  %2816 = vmatpush1.msra.mxu0 0.0
  %2817 = vmatprep.subr.mxu0 0.0
  %2818 = vmatpush1.msra.mxu0 0.0
  %2819 = vmatprep.subr.mxu0 0.0
  %2820 = vmatpush1.msra.mxu0 0.0
  %2821 = vmatprep.subr.mxu0 0.0
  %2822 = vmatpush1.msra.mxu0 0.0
  %2823 = vmatprep.subr.mxu0 0.0
  %2824 = vmatpush1.msra.mxu0 0.0
  %2825 = vmatprep.subr.mxu0 0.0
  %2826 = vmatpush1.msra.mxu0 0.0
  %2827 = vmatprep.subr.mxu0 0.0
  %2828 = vmatpush1.msra.mxu0 0.0
  %2829 = vmatprep.subr.mxu0 0.0
  %2830 = vmatpush1.msra.mxu0 0.0
  %2831 = vmatprep.subr.mxu0 0.0
  %2832 = vmatpush1.msra.mxu0 0.0
  %2833 = vmatprep.mubr.f32.mxu0 0.0
  %2834 = vmatmul.mubr.f32.gmra.mrb[0].mxu0 %v2767
  %v2835 = vpop.f32.mrb[0].mxu0
  %v2836 = vadd.f32 %v462, %v2835
  %v2837 = vpop.f32.mrb[0].mxu0
  %2838 = vdwg.mxu0
  %2840 = vrot.lane.b32.xlu0 %v2671, 32
  %v2841 = vpop.permute.xlu0 %2840
  %v2842 = vsel %vm466, %v2841, 0
  %2844 = vmatprep.subr.mxu0 0.0
  %2845 = vmatpush1.msra.mxu0 %v22
  %2846 = vmatprep.subr.mxu0 0.0
  %2847 = vmatpush1.msra.mxu0 %v23
  %2848 = vmatprep.subr.mxu0 0.0
  %2849 = vmatpush1.msra.mxu0 %v24
  %2850 = vmatprep.subr.mxu0 0.0
  %2851 = vmatpush1.msra.mxu0 %v25
  %2852 = vmatprep.subr.mxu0 0.0
  %2853 = vmatpush1.msra.mxu0 0.0
  %2854 = vmatprep.subr.mxu0 0.0
  %2855 = vmatpush1.msra.mxu0 0.0
  %2856 = vmatprep.subr.mxu0 0.0
  %2857 = vmatpush1.msra.mxu0 0.0
  %2858 = vmatprep.subr.mxu0 0.0
  %2859 = vmatpush1.msra.mxu0 0.0
  %2860 = vmatprep.subr.mxu0 0.0
  %2861 = vmatpush1.msra.mxu0 0.0
  %2862 = vmatprep.subr.mxu0 0.0
  %2863 = vmatpush1.msra.mxu0 0.0
  %2864 = vmatprep.subr.mxu0 0.0
  %2865 = vmatpush1.msra.mxu0 0.0
  %2866 = vmatprep.subr.mxu0 0.0
  %2867 = vmatpush1.msra.mxu0 0.0
  %2868 = vmatprep.subr.mxu0 0.0
  %2869 = vmatpush1.msra.mxu0 0.0
  %2870 = vmatprep.subr.mxu0 0.0
  %2871 = vmatpush1.msra.mxu0 0.0
  %2872 = vmatprep.subr.mxu0 0.0
  %2873 = vmatpush1.msra.mxu0 0.0
  %2874 = vmatprep.subr.mxu0 0.0
  %2875 = vmatpush1.msra.mxu0 0.0
  %2876 = vmatprep.subr.mxu0 0.0
  %2877 = vmatpush1.msra.mxu0 0.0
  %2878 = vmatprep.subr.mxu0 0.0
  %2879 = vmatpush1.msra.mxu0 0.0
  %2880 = vmatprep.subr.mxu0 0.0
  %2881 = vmatpush1.msra.mxu0 0.0
  %2882 = vmatprep.subr.mxu0 0.0
  %2883 = vmatpush1.msra.mxu0 0.0
  %2884 = vmatprep.subr.mxu0 0.0
  %2885 = vmatpush1.msra.mxu0 0.0
  %2886 = vmatprep.subr.mxu0 0.0
  %2887 = vmatpush1.msra.mxu0 0.0
  %2888 = vmatprep.subr.mxu0 0.0
  %2889 = vmatpush1.msra.mxu0 0.0
  %2890 = vmatprep.subr.mxu0 0.0
  %2891 = vmatpush1.msra.mxu0 0.0
  %2892 = vmatprep.subr.mxu0 0.0
  %2893 = vmatpush1.msra.mxu0 0.0
  %2894 = vmatprep.subr.mxu0 0.0
  %2895 = vmatpush1.msra.mxu0 0.0
  %2896 = vmatprep.subr.mxu0 0.0
  %2897 = vmatpush1.msra.mxu0 0.0
  %2898 = vmatprep.subr.mxu0 0.0
  %2899 = vmatpush1.msra.mxu0 0.0
  %2900 = vmatprep.subr.mxu0 0.0
  %2901 = vmatpush1.msra.mxu0 0.0
  %2902 = vmatprep.subr.mxu0 0.0
  %2903 = vmatpush1.msra.mxu0 0.0
  %2904 = vmatprep.subr.mxu0 0.0
  %2905 = vmatpush1.msra.mxu0 0.0
  %2906 = vmatprep.subr.mxu0 0.0
  %2907 = vmatpush1.msra.mxu0 0.0
  %2908 = vmatprep.mubr.f32.mxu0 0.0
  %2909 = vmatmul.mubr.f32.gmra.mrb[0].mxu0 %v2842
  %v2910 = vpop.f32.mrb[0].mxu0
  %v2911 = vadd.f32 0.0, %v2910
  %v2912 = vpop.f32.mrb[0].mxu0
  %2913 = vdwg.mxu0
  %v2914 = vadd.f32 %v2836, %v2911
  %v2915 = vmul.f32 %v2914, %v429
  %v2916 = vtanh.pop %v2915
  %v2917 = vmul.f32 %v2916, %v435
  %v2918 = vadd.f32 %v2917, %v440
  %v2919 = vmul.f32 %v2918, %v2665
  %2921 = vrot.lane.b32.xlu0 %v2918, 64
  %v2922 = vpop.permute.xlu0 %2921
  %v2924 = vmul.f32 %v2918, %v2922
  %2926 = vrot.lane.b32.xlu0 %v2924, 32
  %v2927 = vpop.permute.xlu0 %2926
  %v2929 = vadd.f32 %v2919, %v2927
  %v2930 = vtanh.pop %v2929
  %2932 = vrot.lane.b32.xlu0 %v2930, 64
  %v2933 = vpop.permute.xlu0 %2932
  %v2935 = vmul.f32 %v2918, %v2933
  %2936 = vmatprep.subr.mxu0 0.0
  %2937 = vmatpush1.msra.mxu0 %v13
  %2938 = vmatprep.subr.mxu0 0.0
  %2939 = vmatpush1.msra.mxu0 %v14
  %2940 = vmatprep.subr.mxu0 0.0
  %2941 = vmatpush1.msra.mxu0 %v15
  %2942 = vmatprep.subr.mxu0 0.0
  %2943 = vmatpush1.msra.mxu0 %v16
  %2944 = vmatprep.subr.mxu0 0.0
  %2945 = vmatpush1.msra.mxu0 0.0
  %2946 = vmatprep.subr.mxu0 0.0
  %2947 = vmatpush1.msra.mxu0 0.0
  %2948 = vmatprep.subr.mxu0 0.0
  %2949 = vmatpush1.msra.mxu0 0.0
  %2950 = vmatprep.subr.mxu0 0.0
  %2951 = vmatpush1.msra.mxu0 0.0
  %2952 = vmatprep.subr.mxu0 0.0
  %2953 = vmatpush1.msra.mxu0 0.0
  %2954 = vmatprep.subr.mxu0 0.0
  %2955 = vmatpush1.msra.mxu0 0.0
  %2956 = vmatprep.subr.mxu0 0.0
  %2957 = vmatpush1.msra.mxu0 0.0
  %2958 = vmatprep.subr.mxu0 0.0
  %2959 = vmatpush1.msra.mxu0 0.0
  %2960 = vmatprep.subr.mxu0 0.0
  %2961 = vmatpush1.msra.mxu0 0.0
  %2962 = vmatprep.subr.mxu0 0.0
  %2963 = vmatpush1.msra.mxu0 0.0
  %2964 = vmatprep.subr.mxu0 0.0
  %2965 = vmatpush1.msra.mxu0 0.0
  %2966 = vmatprep.subr.mxu0 0.0
  %2967 = vmatpush1.msra.mxu0 0.0
  %2968 = vmatprep.subr.mxu0 0.0
  %2969 = vmatpush1.msra.mxu0 0.0
  %2970 = vmatprep.subr.mxu0 0.0
  %2971 = vmatpush1.msra.mxu0 0.0
  %2972 = vmatprep.subr.mxu0 0.0
  %2973 = vmatpush1.msra.mxu0 0.0
  %2974 = vmatprep.subr.mxu0 0.0
  %2975 = vmatpush1.msra.mxu0 0.0
  %2976 = vmatprep.subr.mxu0 0.0
  %2977 = vmatpush1.msra.mxu0 0.0
  %2978 = vmatprep.subr.mxu0 0.0
  %2979 = vmatpush1.msra.mxu0 0.0
  %2980 = vmatprep.subr.mxu0 0.0
  %2981 = vmatpush1.msra.mxu0 0.0
  %2982 = vmatprep.subr.mxu0 0.0
  %2983 = vmatpush1.msra.mxu0 0.0
  %2984 = vmatprep.subr.mxu0 0.0
  %2985 = vmatpush1.msra.mxu0 0.0
  %2986 = vmatprep.subr.mxu0 0.0
  %2987 = vmatpush1.msra.mxu0 0.0
  %2988 = vmatprep.subr.mxu0 0.0
  %2989 = vmatpush1.msra.mxu0 0.0
  %2990 = vmatprep.subr.mxu0 0.0
  %2991 = vmatpush1.msra.mxu0 0.0
  %2992 = vmatprep.subr.mxu0 0.0
  %2993 = vmatpush1.msra.mxu0 0.0
  %2994 = vmatprep.subr.mxu0 0.0
  %2995 = vmatpush1.msra.mxu0 0.0
  %2996 = vmatprep.subr.mxu0 0.0
  %2997 = vmatpush1.msra.mxu0 0.0
  %2998 = vmatprep.subr.mxu0 0.0
  %2999 = vmatpush1.msra.mxu0 0.0
  %3000 = vmatprep.mubr.f32.mxu0 0.0
  %3001 = vmatmul.mubr.f32.gmra.mrb[0].mxu0 %v2767
  %v3002 = vpop.f32.mrb[0].mxu0
  %v3003 = vadd.f32 0.0, %v3002
  %v3004 = vpop.f32.mrb[0].mxu0
  %3005 = vdwg.mxu0
  %v3006 = vadd.f32 %v398, %v3003
  %v3007 = vmul.f32 %v3006, %v429
  %v3008 = vtanh.pop %v3007
  %v3009 = vmul.f32 %v3008, %v435
  %v3010 = vadd.f32 %v3009, %v440
  %v3011 = vmul.f32 %v3010, %v2757
  %3013 = vrot.lane.b32.xlu0 %v3010, 64
  %v3014 = vpop.permute.xlu0 %3013
  %v3016 = vmul.f32 %v3010, %v3014
  %3018 = vrot.lane.b32.xlu0 %v3016, 32
  %v3019 = vpop.permute.xlu0 %3018
  %v3021 = vadd.f32 %v3011, %v3019
  %v3022 = vtanh.pop %v3021
  %3024 = vrot.lane.b32.xlu0 %v3022, 64
  %v3025 = vpop.permute.xlu0 %3024
  %v3027 = vmul.f32 %v3010, %v3025
  %3029 = vrot.lane.b32.xlu0 %v3027, 32
  %v3030 = vpop.permute.xlu0 %3029
  %v3031 = vsel %vm466, %v3030, 0
  %3033 = vmatprep.subr.mxu0 0.0
  %3034 = vmatpush1.msra.mxu0 %v18
  %3035 = vmatprep.subr.mxu0 0.0
  %3036 = vmatpush1.msra.mxu0 %v19
  %3037 = vmatprep.subr.mxu0 0.0
  %3038 = vmatpush1.msra.mxu0 %v20
  %3039 = vmatprep.subr.mxu0 0.0
  %3040 = vmatpush1.msra.mxu0 %v21
  %3041 = vmatprep.subr.mxu0 0.0
  %3042 = vmatpush1.msra.mxu0 0.0
  %3043 = vmatprep.subr.mxu0 0.0
  %3044 = vmatpush1.msra.mxu0 0.0
  %3045 = vmatprep.subr.mxu0 0.0
  %3046 = vmatpush1.msra.mxu0 0.0
  %3047 = vmatprep.subr.mxu0 0.0
  %3048 = vmatpush1.msra.mxu0 0.0
  %3049 = vmatprep.subr.mxu0 0.0
  %3050 = vmatpush1.msra.mxu0 0.0
  %3051 = vmatprep.subr.mxu0 0.0
  %3052 = vmatpush1.msra.mxu0 0.0
  %3053 = vmatprep.subr.mxu0 0.0
  %3054 = vmatpush1.msra.mxu0 0.0
  %3055 = vmatprep.subr.mxu0 0.0
  %3056 = vmatpush1.msra.mxu0 0.0
  %3057 = vmatprep.subr.mxu0 0.0
  %3058 = vmatpush1.msra.mxu0 0.0
  %3059 = vmatprep.subr.mxu0 0.0
  %3060 = vmatpush1.msra.mxu0 0.0
  %3061 = vmatprep.subr.mxu0 0.0
  %3062 = vmatpush1.msra.mxu0 0.0
  %3063 = vmatprep.subr.mxu0 0.0
  %3064 = vmatpush1.msra.mxu0 0.0
  %3065 = vmatprep.subr.mxu0 0.0
  %3066 = vmatpush1.msra.mxu0 0.0
  %3067 = vmatprep.subr.mxu0 0.0
  %3068 = vmatpush1.msra.mxu0 0.0
  %3069 = vmatprep.subr.mxu0 0.0
  %3070 = vmatpush1.msra.mxu0 0.0
  %3071 = vmatprep.subr.mxu0 0.0
  %3072 = vmatpush1.msra.mxu0 0.0
  %3073 = vmatprep.subr.mxu0 0.0
  %3074 = vmatpush1.msra.mxu0 0.0
  %3075 = vmatprep.subr.mxu0 0.0
  %3076 = vmatpush1.msra.mxu0 0.0
  %3077 = vmatprep.subr.mxu0 0.0
  %3078 = vmatpush1.msra.mxu0 0.0
  %3079 = vmatprep.subr.mxu0 0.0
  %3080 = vmatpush1.msra.mxu0 0.0
  %3081 = vmatprep.subr.mxu0 0.0
  %3082 = vmatpush1.msra.mxu0 0.0
  %3083 = vmatprep.subr.mxu0 0.0
  %3084 = vmatpush1.msra.mxu0 0.0
  %3085 = vmatprep.subr.mxu0 0.0
  %3086 = vmatpush1.msra.mxu0 0.0
  %3087 = vmatprep.subr.mxu0 0.0
  %3088 = vmatpush1.msra.mxu0 0.0
  %3089 = vmatprep.subr.mxu0 0.0
  %3090 = vmatpush1.msra.mxu0 0.0
  %3091 = vmatprep.subr.mxu0 0.0
  %3092 = vmatpush1.msra.mxu0 0.0
  %3093 = vmatprep.subr.mxu0 0.0
  %3094 = vmatpush1.msra.mxu0 0.0
  %3095 = vmatprep.subr.mxu0 0.0
  %3096 = vmatpush1.msra.mxu0 0.0
  %3097 = vmatprep.mubr.f32.mxu0 0.0
  %3098 = vmatmul.mubr.f32.gmra.mrb[0].mxu0 %v3031
  %v3099 = vpop.f32.mrb[0].mxu0
  %v3100 = vadd.f32 %v462, %v3099
  %v3101 = vpop.f32.mrb[0].mxu0
  %3102 = vdwg.mxu0
  %3104 = vrot.lane.b32.xlu0 %v2935, 32
  %v3105 = vpop.permute.xlu0 %3104
  %v3106 = vsel %vm466, %v3105, 0
  %3108 = vmatprep.subr.mxu0 0.0
  %3109 = vmatpush1.msra.mxu0 %v22
  %3110 = vmatprep.subr.mxu0 0.0
  %3111 = vmatpush1.msra.mxu0 %v23
  %3112 = vmatprep.subr.mxu0 0.0
  %3113 = vmatpush1.msra.mxu0 %v24
  %3114 = vmatprep.subr.mxu0 0.0
  %3115 = vmatpush1.msra.mxu0 %v25
  %3116 = vmatprep.subr.mxu0 0.0
  %3117 = vmatpush1.msra.mxu0 0.0
  %3118 = vmatprep.subr.mxu0 0.0
  %3119 = vmatpush1.msra.mxu0 0.0
  %3120 = vmatprep.subr.mxu0 0.0
  %3121 = vmatpush1.msra.mxu0 0.0
  %3122 = vmatprep.subr.mxu0 0.0
  %3123 = vmatpush1.msra.mxu0 0.0
  %3124 = vmatprep.subr.mxu0 0.0
  %3125 = vmatpush1.msra.mxu0 0.0
  %3126 = vmatprep.subr.mxu0 0.0
  %3127 = vmatpush1.msra.mxu0 0.0
  %3128 = vmatprep.subr.mxu0 0.0
  %3129 = vmatpush1.msra.mxu0 0.0
  %3130 = vmatprep.subr.mxu0 0.0
  %3131 = vmatpush1.msra.mxu0 0.0
  %3132 = vmatprep.subr.mxu0 0.0
  %3133 = vmatpush1.msra.mxu0 0.0
  %3134 = vmatprep.subr.mxu0 0.0
  %3135 = vmatpush1.msra.mxu0 0.0
  %3136 = vmatprep.subr.mxu0 0.0
  %3137 = vmatpush1.msra.mxu0 0.0
  %3138 = vmatprep.subr.mxu0 0.0
  %3139 = vmatpush1.msra.mxu0 0.0
  %3140 = vmatprep.subr.mxu0 0.0
  %3141 = vmatpush1.msra.mxu0 0.0
  %3142 = vmatprep.subr.mxu0 0.0
  %3143 = vmatpush1.msra.mxu0 0.0
  %3144 = vmatprep.subr.mxu0 0.0
  %3145 = vmatpush1.msra.mxu0 0.0
  %3146 = vmatprep.subr.mxu0 0.0
  %3147 = vmatpush1.msra.mxu0 0.0
  %3148 = vmatprep.subr.mxu0 0.0
  %3149 = vmatpush1.msra.mxu0 0.0
  %3150 = vmatprep.subr.mxu0 0.0
  %3151 = vmatpush1.msra.mxu0 0.0
  %3152 = vmatprep.subr.mxu0 0.0
  %3153 = vmatpush1.msra.mxu0 0.0
  %3154 = vmatprep.subr.mxu0 0.0
  %3155 = vmatpush1.msra.mxu0 0.0
  %3156 = vmatprep.subr.mxu0 0.0
  %3157 = vmatpush1.msra.mxu0 0.0
  %3158 = vmatprep.subr.mxu0 0.0
  %3159 = vmatpush1.msra.mxu0 0.0
  %3160 = vmatprep.subr.mxu0 0.0
  %3161 = vmatpush1.msra.mxu0 0.0
  %3162 = vmatprep.subr.mxu0 0.0
  %3163 = vmatpush1.msra.mxu0 0.0
  %3164 = vmatprep.subr.mxu0 0.0
  %3165 = vmatpush1.msra.mxu0 0.0
  %3166 = vmatprep.subr.mxu0 0.0
  %3167 = vmatpush1.msra.mxu0 0.0
  %3168 = vmatprep.subr.mxu0 0.0
  %3169 = vmatpush1.msra.mxu0 0.0
  %3170 = vmatprep.subr.mxu0 0.0
  %3171 = vmatpush1.msra.mxu0 0.0
  %3172 = vmatprep.mubr.f32.mxu0 0.0
  %3173 = vmatmul.mubr.f32.gmra.mrb[0].mxu0 %v3106
  %v3174 = vpop.f32.mrb[0].mxu0
  %v3175 = vadd.f32 0.0, %v3174
  %v3176 = vpop.f32.mrb[0].mxu0
  %3177 = vdwg.mxu0
  %v3178 = vadd.f32 %v3100, %v3175
  %v3179 = vmul.f32 %v3178, %v429
  %v3180 = vtanh.pop %v3179
  %v3181 = vmul.f32 %v3180, %v435
  %v3182 = vadd.f32 %v3181, %v440
  %v3183 = vmul.f32 %v3182, %v2929
  %3185 = vrot.lane.b32.xlu0 %v3182, 64
  %v3186 = vpop.permute.xlu0 %3185
  %v3188 = vmul.f32 %v3182, %v3186
  %3190 = vrot.lane.b32.xlu0 %v3188, 32
  %v3191 = vpop.permute.xlu0 %3190
  %v3193 = vadd.f32 %v3183, %v3191
  %v3194 = vtanh.pop %v3193
  %3196 = vrot.lane.b32.xlu0 %v3194, 64
  %v3197 = vpop.permute.xlu0 %3196
  %v3199 = vmul.f32 %v3182, %v3197
  %3200 = vmatprep.subr.mxu0 0.0
  %3201 = vmatpush1.msra.mxu0 %v13
  %3202 = vmatprep.subr.mxu0 0.0
  %3203 = vmatpush1.msra.mxu0 %v14
  %3204 = vmatprep.subr.mxu0 0.0
  %3205 = vmatpush1.msra.mxu0 %v15
  %3206 = vmatprep.subr.mxu0 0.0
  %3207 = vmatpush1.msra.mxu0 %v16
  %3208 = vmatprep.subr.mxu0 0.0
  %3209 = vmatpush1.msra.mxu0 0.0
  %3210 = vmatprep.subr.mxu0 0.0
  %3211 = vmatpush1.msra.mxu0 0.0
  %3212 = vmatprep.subr.mxu0 0.0
  %3213 = vmatpush1.msra.mxu0 0.0
  %3214 = vmatprep.subr.mxu0 0.0
  %3215 = vmatpush1.msra.mxu0 0.0
  %3216 = vmatprep.subr.mxu0 0.0
  %3217 = vmatpush1.msra.mxu0 0.0
  %3218 = vmatprep.subr.mxu0 0.0
  %3219 = vmatpush1.msra.mxu0 0.0
  %3220 = vmatprep.subr.mxu0 0.0
  %3221 = vmatpush1.msra.mxu0 0.0
  %3222 = vmatprep.subr.mxu0 0.0
  %3223 = vmatpush1.msra.mxu0 0.0
  %3224 = vmatprep.subr.mxu0 0.0
  %3225 = vmatpush1.msra.mxu0 0.0
  %3226 = vmatprep.subr.mxu0 0.0
  %3227 = vmatpush1.msra.mxu0 0.0
  %3228 = vmatprep.subr.mxu0 0.0
  %3229 = vmatpush1.msra.mxu0 0.0
  %3230 = vmatprep.subr.mxu0 0.0
  %3231 = vmatpush1.msra.mxu0 0.0
  %3232 = vmatprep.subr.mxu0 0.0
  %3233 = vmatpush1.msra.mxu0 0.0
  %3234 = vmatprep.subr.mxu0 0.0
  %3235 = vmatpush1.msra.mxu0 0.0
  %3236 = vmatprep.subr.mxu0 0.0
  %3237 = vmatpush1.msra.mxu0 0.0
  %3238 = vmatprep.subr.mxu0 0.0
  %3239 = vmatpush1.msra.mxu0 0.0
  %3240 = vmatprep.subr.mxu0 0.0
  %3241 = vmatpush1.msra.mxu0 0.0
  %3242 = vmatprep.subr.mxu0 0.0
  %3243 = vmatpush1.msra.mxu0 0.0
  %3244 = vmatprep.subr.mxu0 0.0
  %3245 = vmatpush1.msra.mxu0 0.0
  %3246 = vmatprep.subr.mxu0 0.0
  %3247 = vmatpush1.msra.mxu0 0.0
  %3248 = vmatprep.subr.mxu0 0.0
  %3249 = vmatpush1.msra.mxu0 0.0
  %3250 = vmatprep.subr.mxu0 0.0
  %3251 = vmatpush1.msra.mxu0 0.0
  %3252 = vmatprep.subr.mxu0 0.0
  %3253 = vmatpush1.msra.mxu0 0.0
  %3254 = vmatprep.subr.mxu0 0.0
  %3255 = vmatpush1.msra.mxu0 0.0
  %3256 = vmatprep.subr.mxu0 0.0
  %3257 = vmatpush1.msra.mxu0 0.0
  %3258 = vmatprep.subr.mxu0 0.0
  %3259 = vmatpush1.msra.mxu0 0.0
  %3260 = vmatprep.subr.mxu0 0.0
  %3261 = vmatpush1.msra.mxu0 0.0
  %3262 = vmatprep.subr.mxu0 0.0
  %3263 = vmatpush1.msra.mxu0 0.0
  %3264 = vmatprep.mubr.f32.mxu0 0.0
  %3265 = vmatmul.mubr.f32.gmra.mrb[0].mxu0 %v3031
  %v3266 = vpop.f32.mrb[0].mxu0
  %v3267 = vadd.f32 0.0, %v3266
  %v3268 = vpop.f32.mrb[0].mxu0
  %3269 = vdwg.mxu0
  %v3270 = vadd.f32 %v403, %v3267
  %v3271 = vmul.f32 %v3270, %v429
  %v3272 = vtanh.pop %v3271
  %v3273 = vmul.f32 %v3272, %v435
  %v3274 = vadd.f32 %v3273, %v440
  %v3275 = vmul.f32 %v3274, %v3021
  %3277 = vrot.lane.b32.xlu0 %v3274, 64
  %v3278 = vpop.permute.xlu0 %3277
  %v3280 = vmul.f32 %v3274, %v3278
  %3282 = vrot.lane.b32.xlu0 %v3280, 32
  %v3283 = vpop.permute.xlu0 %3282
  %v3285 = vadd.f32 %v3275, %v3283
  %v3286 = vtanh.pop %v3285
  %3288 = vrot.lane.b32.xlu0 %v3286, 64
  %v3289 = vpop.permute.xlu0 %3288
  %v3291 = vmul.f32 %v3274, %v3289
  %3293 = vrot.lane.b32.xlu0 %v3291, 32
  %v3294 = vpop.permute.xlu0 %3293
  %v3295 = vsel %vm466, %v3294, 0
  %3297 = vmatprep.subr.mxu0 0.0
  %3298 = vmatpush1.msra.mxu0 %v18
  %3299 = vmatprep.subr.mxu0 0.0
  %3300 = vmatpush1.msra.mxu0 %v19
  %3301 = vmatprep.subr.mxu0 0.0
  %3302 = vmatpush1.msra.mxu0 %v20
  %3303 = vmatprep.subr.mxu0 0.0
  %3304 = vmatpush1.msra.mxu0 %v21
  %3305 = vmatprep.subr.mxu0 0.0
  %3306 = vmatpush1.msra.mxu0 0.0
  %3307 = vmatprep.subr.mxu0 0.0
  %3308 = vmatpush1.msra.mxu0 0.0
  %3309 = vmatprep.subr.mxu0 0.0
  %3310 = vmatpush1.msra.mxu0 0.0
  %3311 = vmatprep.subr.mxu0 0.0
  %3312 = vmatpush1.msra.mxu0 0.0
  %3313 = vmatprep.subr.mxu0 0.0
  %3314 = vmatpush1.msra.mxu0 0.0
  %3315 = vmatprep.subr.mxu0 0.0
  %3316 = vmatpush1.msra.mxu0 0.0
  %3317 = vmatprep.subr.mxu0 0.0
  %3318 = vmatpush1.msra.mxu0 0.0
  %3319 = vmatprep.subr.mxu0 0.0
  %3320 = vmatpush1.msra.mxu0 0.0
  %3321 = vmatprep.subr.mxu0 0.0
  %3322 = vmatpush1.msra.mxu0 0.0
  %3323 = vmatprep.subr.mxu0 0.0
  %3324 = vmatpush1.msra.mxu0 0.0
  %3325 = vmatprep.subr.mxu0 0.0
  %3326 = vmatpush1.msra.mxu0 0.0
  %3327 = vmatprep.subr.mxu0 0.0
  %3328 = vmatpush1.msra.mxu0 0.0
  %3329 = vmatprep.subr.mxu0 0.0
  %3330 = vmatpush1.msra.mxu0 0.0
  %3331 = vmatprep.subr.mxu0 0.0
  %3332 = vmatpush1.msra.mxu0 0.0
  %3333 = vmatprep.subr.mxu0 0.0
  %3334 = vmatpush1.msra.mxu0 0.0
  %3335 = vmatprep.subr.mxu0 0.0
  %3336 = vmatpush1.msra.mxu0 0.0
  %3337 = vmatprep.subr.mxu0 0.0
  %3338 = vmatpush1.msra.mxu0 0.0
  %3339 = vmatprep.subr.mxu0 0.0
  %3340 = vmatpush1.msra.mxu0 0.0
  %3341 = vmatprep.subr.mxu0 0.0
  %3342 = vmatpush1.msra.mxu0 0.0
  %3343 = vmatprep.subr.mxu0 0.0
  %3344 = vmatpush1.msra.mxu0 0.0
  %3345 = vmatprep.subr.mxu0 0.0
  %3346 = vmatpush1.msra.mxu0 0.0
  %3347 = vmatprep.subr.mxu0 0.0
  %3348 = vmatpush1.msra.mxu0 0.0
  %3349 = vmatprep.subr.mxu0 0.0
  %3350 = vmatpush1.msra.mxu0 0.0
  %3351 = vmatprep.subr.mxu0 0.0
  %3352 = vmatpush1.msra.mxu0 0.0
  %3353 = vmatprep.subr.mxu0 0.0
  %3354 = vmatpush1.msra.mxu0 0.0
  %3355 = vmatprep.subr.mxu0 0.0
  %3356 = vmatpush1.msra.mxu0 0.0
  %3357 = vmatprep.subr.mxu0 0.0
  %3358 = vmatpush1.msra.mxu0 0.0
  %3359 = vmatprep.subr.mxu0 0.0
  %3360 = vmatpush1.msra.mxu0 0.0
  %3361 = vmatprep.mubr.f32.mxu0 0.0
  %3362 = vmatmul.mubr.f32.gmra.mrb[0].mxu0 %v3295
  %v3363 = vpop.f32.mrb[0].mxu0
  %v3364 = vadd.f32 %v462, %v3363
  %v3365 = vpop.f32.mrb[0].mxu0
  %3366 = vdwg.mxu0
  %3368 = vrot.lane.b32.xlu0 %v3199, 32
  %v3369 = vpop.permute.xlu0 %3368
  %v3370 = vsel %vm466, %v3369, 0
  %3372 = vmatprep.subr.mxu0 0.0
  %3373 = vmatpush1.msra.mxu0 %v22
  %3374 = vmatprep.subr.mxu0 0.0
  %3375 = vmatpush1.msra.mxu0 %v23
  %3376 = vmatprep.subr.mxu0 0.0
  %3377 = vmatpush1.msra.mxu0 %v24
  %3378 = vmatprep.subr.mxu0 0.0
  %3379 = vmatpush1.msra.mxu0 %v25
  %3380 = vmatprep.subr.mxu0 0.0
  %3381 = vmatpush1.msra.mxu0 0.0
  %3382 = vmatprep.subr.mxu0 0.0
  %3383 = vmatpush1.msra.mxu0 0.0
  %3384 = vmatprep.subr.mxu0 0.0
  %3385 = vmatpush1.msra.mxu0 0.0
  %3386 = vmatprep.subr.mxu0 0.0
  %3387 = vmatpush1.msra.mxu0 0.0
  %3388 = vmatprep.subr.mxu0 0.0
  %3389 = vmatpush1.msra.mxu0 0.0
  %3390 = vmatprep.subr.mxu0 0.0
  %3391 = vmatpush1.msra.mxu0 0.0
  %3392 = vmatprep.subr.mxu0 0.0
  %3393 = vmatpush1.msra.mxu0 0.0
  %3394 = vmatprep.subr.mxu0 0.0
  %3395 = vmatpush1.msra.mxu0 0.0
  %3396 = vmatprep.subr.mxu0 0.0
  %3397 = vmatpush1.msra.mxu0 0.0
  %3398 = vmatprep.subr.mxu0 0.0
  %3399 = vmatpush1.msra.mxu0 0.0
  %3400 = vmatprep.subr.mxu0 0.0
  %3401 = vmatpush1.msra.mxu0 0.0
  %3402 = vmatprep.subr.mxu0 0.0
  %3403 = vmatpush1.msra.mxu0 0.0
  %3404 = vmatprep.subr.mxu0 0.0
  %3405 = vmatpush1.msra.mxu0 0.0
  %3406 = vmatprep.subr.mxu0 0.0
  %3407 = vmatpush1.msra.mxu0 0.0
  %3408 = vmatprep.subr.mxu0 0.0
  %3409 = vmatpush1.msra.mxu0 0.0
  %3410 = vmatprep.subr.mxu0 0.0
  %3411 = vmatpush1.msra.mxu0 0.0
  %3412 = vmatprep.subr.mxu0 0.0
  %3413 = vmatpush1.msra.mxu0 0.0
  %3414 = vmatprep.subr.mxu0 0.0
  %3415 = vmatpush1.msra.mxu0 0.0
  %3416 = vmatprep.subr.mxu0 0.0
  %3417 = vmatpush1.msra.mxu0 0.0
  %3418 = vmatprep.subr.mxu0 0.0
  %3419 = vmatpush1.msra.mxu0 0.0
  %3420 = vmatprep.subr.mxu0 0.0
  %3421 = vmatpush1.msra.mxu0 0.0
  %3422 = vmatprep.subr.mxu0 0.0
  %3423 = vmatpush1.msra.mxu0 0.0
  %3424 = vmatprep.subr.mxu0 0.0
  %3425 = vmatpush1.msra.mxu0 0.0
  %3426 = vmatprep.subr.mxu0 0.0
  %3427 = vmatpush1.msra.mxu0 0.0
  %3428 = vmatprep.subr.mxu0 0.0
  %3429 = vmatpush1.msra.mxu0 0.0
  %3430 = vmatprep.subr.mxu0 0.0
  %3431 = vmatpush1.msra.mxu0 0.0
  %3432 = vmatprep.subr.mxu0 0.0
  %3433 = vmatpush1.msra.mxu0 0.0
  %3434 = vmatprep.subr.mxu0 0.0
  %3435 = vmatpush1.msra.mxu0 0.0
  %3436 = vmatprep.mubr.f32.mxu0 0.0
  %3437 = vmatmul.mubr.f32.gmra.mrb[0].mxu0 %v3370
  %v3438 = vpop.f32.mrb[0].mxu0
  %v3439 = vadd.f32 0.0, %v3438
  %v3440 = vpop.f32.mrb[0].mxu0
  %3441 = vdwg.mxu0
  %v3442 = vadd.f32 %v3364, %v3439
  %v3443 = vmul.f32 %v3442, %v429
  %v3444 = vtanh.pop %v3443
  %v3445 = vmul.f32 %v3444, %v435
  %v3446 = vadd.f32 %v3445, %v440
  %v3447 = vmul.f32 %v3446, %v3193
  %3449 = vrot.lane.b32.xlu0 %v3446, 64
  %v3450 = vpop.permute.xlu0 %3449
  %v3452 = vmul.f32 %v3446, %v3450
  %3454 = vrot.lane.b32.xlu0 %v3452, 32
  %v3455 = vpop.permute.xlu0 %3454
  %v3457 = vadd.f32 %v3447, %v3455
  %v3458 = vtanh.pop %v3457
  %3460 = vrot.lane.b32.xlu0 %v3458, 64
  %v3461 = vpop.permute.xlu0 %3460
  %v3463 = vmul.f32 %v3446, %v3461
  %3464 = vmatprep.subr.mxu0 0.0
  %3465 = vmatpush1.msra.mxu0 %v13
  %3466 = vmatprep.subr.mxu0 0.0
  %3467 = vmatpush1.msra.mxu0 %v14
  %3468 = vmatprep.subr.mxu0 0.0
  %3469 = vmatpush1.msra.mxu0 %v15
  %3470 = vmatprep.subr.mxu0 0.0
  %3471 = vmatpush1.msra.mxu0 %v16
  %3472 = vmatprep.subr.mxu0 0.0
  %3473 = vmatpush1.msra.mxu0 0.0
  %3474 = vmatprep.subr.mxu0 0.0
  %3475 = vmatpush1.msra.mxu0 0.0
  %3476 = vmatprep.subr.mxu0 0.0
  %3477 = vmatpush1.msra.mxu0 0.0
  %3478 = vmatprep.subr.mxu0 0.0
  %3479 = vmatpush1.msra.mxu0 0.0
  %3480 = vmatprep.subr.mxu0 0.0
  %3481 = vmatpush1.msra.mxu0 0.0
  %3482 = vmatprep.subr.mxu0 0.0
  %3483 = vmatpush1.msra.mxu0 0.0
  %3484 = vmatprep.subr.mxu0 0.0
  %3485 = vmatpush1.msra.mxu0 0.0
  %3486 = vmatprep.subr.mxu0 0.0
  %3487 = vmatpush1.msra.mxu0 0.0
  %3488 = vmatprep.subr.mxu0 0.0
  %3489 = vmatpush1.msra.mxu0 0.0
  %3490 = vmatprep.subr.mxu0 0.0
  %3491 = vmatpush1.msra.mxu0 0.0
  %3492 = vmatprep.subr.mxu0 0.0
  %3493 = vmatpush1.msra.mxu0 0.0
  %3494 = vmatprep.subr.mxu0 0.0
  %3495 = vmatpush1.msra.mxu0 0.0
  %3496 = vmatprep.subr.mxu0 0.0
  %3497 = vmatpush1.msra.mxu0 0.0
  %3498 = vmatprep.subr.mxu0 0.0
  %3499 = vmatpush1.msra.mxu0 0.0
  %3500 = vmatprep.subr.mxu0 0.0
  %3501 = vmatpush1.msra.mxu0 0.0
  %3502 = vmatprep.subr.mxu0 0.0
  %3503 = vmatpush1.msra.mxu0 0.0
  %3504 = vmatprep.subr.mxu0 0.0
  %3505 = vmatpush1.msra.mxu0 0.0
  %3506 = vmatprep.subr.mxu0 0.0
  %3507 = vmatpush1.msra.mxu0 0.0
  %3508 = vmatprep.subr.mxu0 0.0
  %3509 = vmatpush1.msra.mxu0 0.0
  %3510 = vmatprep.subr.mxu0 0.0
  %3511 = vmatpush1.msra.mxu0 0.0
  %3512 = vmatprep.subr.mxu0 0.0
  %3513 = vmatpush1.msra.mxu0 0.0
  %3514 = vmatprep.subr.mxu0 0.0
  %3515 = vmatpush1.msra.mxu0 0.0
  %3516 = vmatprep.subr.mxu0 0.0
  %3517 = vmatpush1.msra.mxu0 0.0
  %3518 = vmatprep.subr.mxu0 0.0
  %3519 = vmatpush1.msra.mxu0 0.0
  %3520 = vmatprep.subr.mxu0 0.0
  %3521 = vmatpush1.msra.mxu0 0.0
  %3522 = vmatprep.subr.mxu0 0.0
  %3523 = vmatpush1.msra.mxu0 0.0
  %3524 = vmatprep.subr.mxu0 0.0
  %3525 = vmatpush1.msra.mxu0 0.0
  %3526 = vmatprep.subr.mxu0 0.0
  %3527 = vmatpush1.msra.mxu0 0.0
  %3528 = vmatprep.mubr.f32.mxu0 0.0
  %3529 = vmatmul.mubr.f32.gmra.mrb[0].mxu0 %v3295
  %v3530 = vpop.f32.mrb[0].mxu0
  %v3531 = vadd.f32 0.0, %v3530
  %v3532 = vpop.f32.mrb[0].mxu0
  %3533 = vdwg.mxu0
  %v3534 = vadd.f32 %v408, %v3531
  %v3535 = vmul.f32 %v3534, %v429
  %v3536 = vtanh.pop %v3535
  %v3537 = vmul.f32 %v3536, %v435
  %v3538 = vadd.f32 %v3537, %v440
  %v3539 = vmul.f32 %v3538, %v3285
  %3541 = vrot.lane.b32.xlu0 %v3538, 64
  %v3542 = vpop.permute.xlu0 %3541
  %v3544 = vmul.f32 %v3538, %v3542
  %3546 = vrot.lane.b32.xlu0 %v3544, 32
  %v3547 = vpop.permute.xlu0 %3546
  %v3549 = vadd.f32 %v3539, %v3547
  %v3550 = vtanh.pop %v3549
  %3552 = vrot.lane.b32.xlu0 %v3550, 64
  %v3553 = vpop.permute.xlu0 %3552
  %v3555 = vmul.f32 %v3538, %v3553
  %3557 = vrot.lane.b32.xlu0 %v3555, 32
  %v3558 = vpop.permute.xlu0 %3557
  %v3559 = vsel %vm466, %v3558, 0
  %3561 = vmatprep.subr.mxu0 0.0
  %3562 = vmatpush1.msra.mxu0 %v18
  %3563 = vmatprep.subr.mxu0 0.0
  %3564 = vmatpush1.msra.mxu0 %v19
  %3565 = vmatprep.subr.mxu0 0.0
  %3566 = vmatpush1.msra.mxu0 %v20
  %3567 = vmatprep.subr.mxu0 0.0
  %3568 = vmatpush1.msra.mxu0 %v21
  %3569 = vmatprep.subr.mxu0 0.0
  %3570 = vmatpush1.msra.mxu0 0.0
  %3571 = vmatprep.subr.mxu0 0.0
  %3572 = vmatpush1.msra.mxu0 0.0
  %3573 = vmatprep.subr.mxu0 0.0
  %3574 = vmatpush1.msra.mxu0 0.0
  %3575 = vmatprep.subr.mxu0 0.0
  %3576 = vmatpush1.msra.mxu0 0.0
  %3577 = vmatprep.subr.mxu0 0.0
  %3578 = vmatpush1.msra.mxu0 0.0
  %3579 = vmatprep.subr.mxu0 0.0
  %3580 = vmatpush1.msra.mxu0 0.0
  %3581 = vmatprep.subr.mxu0 0.0
  %3582 = vmatpush1.msra.mxu0 0.0
  %3583 = vmatprep.subr.mxu0 0.0
  %3584 = vmatpush1.msra.mxu0 0.0
  %3585 = vmatprep.subr.mxu0 0.0
  %3586 = vmatpush1.msra.mxu0 0.0
  %3587 = vmatprep.subr.mxu0 0.0
  %3588 = vmatpush1.msra.mxu0 0.0
  %3589 = vmatprep.subr.mxu0 0.0
  %3590 = vmatpush1.msra.mxu0 0.0
  %3591 = vmatprep.subr.mxu0 0.0
  %3592 = vmatpush1.msra.mxu0 0.0
  %3593 = vmatprep.subr.mxu0 0.0
  %3594 = vmatpush1.msra.mxu0 0.0
  %3595 = vmatprep.subr.mxu0 0.0
  %3596 = vmatpush1.msra.mxu0 0.0
  %3597 = vmatprep.subr.mxu0 0.0
  %3598 = vmatpush1.msra.mxu0 0.0
  %3599 = vmatprep.subr.mxu0 0.0
  %3600 = vmatpush1.msra.mxu0 0.0
  %3601 = vmatprep.subr.mxu0 0.0
  %3602 = vmatpush1.msra.mxu0 0.0
  %3603 = vmatprep.subr.mxu0 0.0
  %3604 = vmatpush1.msra.mxu0 0.0
  %3605 = vmatprep.subr.mxu0 0.0
  %3606 = vmatpush1.msra.mxu0 0.0
  %3607 = vmatprep.subr.mxu0 0.0
  %3608 = vmatpush1.msra.mxu0 0.0
  %3609 = vmatprep.subr.mxu0 0.0
  %3610 = vmatpush1.msra.mxu0 0.0
  %3611 = vmatprep.subr.mxu0 0.0
  %3612 = vmatpush1.msra.mxu0 0.0
  %3613 = vmatprep.subr.mxu0 0.0
  %3614 = vmatpush1.msra.mxu0 0.0
  %3615 = vmatprep.subr.mxu0 0.0
  %3616 = vmatpush1.msra.mxu0 0.0
  %3617 = vmatprep.subr.mxu0 0.0
  %3618 = vmatpush1.msra.mxu0 0.0
  %3619 = vmatprep.subr.mxu0 0.0
  %3620 = vmatpush1.msra.mxu0 0.0
  %3621 = vmatprep.subr.mxu0 0.0
  %3622 = vmatpush1.msra.mxu0 0.0
  %3623 = vmatprep.subr.mxu0 0.0
  %3624 = vmatpush1.msra.mxu0 0.0
  %3625 = vmatprep.mubr.f32.mxu0 0.0
  %3626 = vmatmul.mubr.f32.gmra.mrb[0].mxu0 %v3559
  %v3627 = vpop.f32.mrb[0].mxu0
  %v3628 = vadd.f32 %v462, %v3627
  %v3629 = vpop.f32.mrb[0].mxu0
  %3630 = vdwg.mxu0
  %3632 = vrot.lane.b32.xlu0 %v3463, 32
  %v3633 = vpop.permute.xlu0 %3632
  %v3634 = vsel %vm466, %v3633, 0
  %3636 = vmatprep.subr.mxu0 0.0
  %3637 = vmatpush1.msra.mxu0 %v22
  %3638 = vmatprep.subr.mxu0 0.0
  %3639 = vmatpush1.msra.mxu0 %v23
  %3640 = vmatprep.subr.mxu0 0.0
  %3641 = vmatpush1.msra.mxu0 %v24
  %3642 = vmatprep.subr.mxu0 0.0
  %3643 = vmatpush1.msra.mxu0 %v25
  %3644 = vmatprep.subr.mxu0 0.0
  %3645 = vmatpush1.msra.mxu0 0.0
  %3646 = vmatprep.subr.mxu0 0.0
  %3647 = vmatpush1.msra.mxu0 0.0
  %3648 = vmatprep.subr.mxu0 0.0
  %3649 = vmatpush1.msra.mxu0 0.0
  %3650 = vmatprep.subr.mxu0 0.0
  %3651 = vmatpush1.msra.mxu0 0.0
  %3652 = vmatprep.subr.mxu0 0.0
  %3653 = vmatpush1.msra.mxu0 0.0
  %3654 = vmatprep.subr.mxu0 0.0
  %3655 = vmatpush1.msra.mxu0 0.0
  %3656 = vmatprep.subr.mxu0 0.0
  %3657 = vmatpush1.msra.mxu0 0.0
  %3658 = vmatprep.subr.mxu0 0.0
  %3659 = vmatpush1.msra.mxu0 0.0
  %3660 = vmatprep.subr.mxu0 0.0
  %3661 = vmatpush1.msra.mxu0 0.0
  %3662 = vmatprep.subr.mxu0 0.0
  %3663 = vmatpush1.msra.mxu0 0.0
  %3664 = vmatprep.subr.mxu0 0.0
  %3665 = vmatpush1.msra.mxu0 0.0
  %3666 = vmatprep.subr.mxu0 0.0
  %3667 = vmatpush1.msra.mxu0 0.0
  %3668 = vmatprep.subr.mxu0 0.0
  %3669 = vmatpush1.msra.mxu0 0.0
  %3670 = vmatprep.subr.mxu0 0.0
  %3671 = vmatpush1.msra.mxu0 0.0
  %3672 = vmatprep.subr.mxu0 0.0
  %3673 = vmatpush1.msra.mxu0 0.0
  %3674 = vmatprep.subr.mxu0 0.0
  %3675 = vmatpush1.msra.mxu0 0.0
  %3676 = vmatprep.subr.mxu0 0.0
  %3677 = vmatpush1.msra.mxu0 0.0
  %3678 = vmatprep.subr.mxu0 0.0
  %3679 = vmatpush1.msra.mxu0 0.0
  %3680 = vmatprep.subr.mxu0 0.0
  %3681 = vmatpush1.msra.mxu0 0.0
  %3682 = vmatprep.subr.mxu0 0.0
  %3683 = vmatpush1.msra.mxu0 0.0
  %3684 = vmatprep.subr.mxu0 0.0
  %3685 = vmatpush1.msra.mxu0 0.0
  %3686 = vmatprep.subr.mxu0 0.0
  %3687 = vmatpush1.msra.mxu0 0.0
  %3688 = vmatprep.subr.mxu0 0.0
  %3689 = vmatpush1.msra.mxu0 0.0
  %3690 = vmatprep.subr.mxu0 0.0
  %3691 = vmatpush1.msra.mxu0 0.0
  %3692 = vmatprep.subr.mxu0 0.0
  %3693 = vmatpush1.msra.mxu0 0.0
  %3694 = vmatprep.subr.mxu0 0.0
  %3695 = vmatpush1.msra.mxu0 0.0
  %3696 = vmatprep.subr.mxu0 0.0
  %3697 = vmatpush1.msra.mxu0 0.0
  %3698 = vmatprep.subr.mxu0 0.0
  %3699 = vmatpush1.msra.mxu0 0.0
  %3700 = vmatprep.mubr.f32.mxu0 0.0
  %3701 = vmatmul.mubr.f32.gmra.mrb[0].mxu0 %v3634
  %v3702 = vpop.f32.mrb[0].mxu0
  %v3703 = vadd.f32 0.0, %v3702
  %v3704 = vpop.f32.mrb[0].mxu0
  %3705 = vdwg.mxu0
  %v3706 = vadd.f32 %v3628, %v3703
  %v3707 = vmul.f32 %v3706, %v429
  %v3708 = vtanh.pop %v3707
  %v3709 = vmul.f32 %v3708, %v435
  %v3710 = vadd.f32 %v3709, %v440
  %v3711 = vmul.f32 %v3710, %v3457
  %3713 = vrot.lane.b32.xlu0 %v3710, 64
  %v3714 = vpop.permute.xlu0 %3713
  %v3716 = vmul.f32 %v3710, %v3714
  %3718 = vrot.lane.b32.xlu0 %v3716, 32
  %v3719 = vpop.permute.xlu0 %3718
  %v3721 = vadd.f32 %v3711, %v3719
  %v3722 = vtanh.pop %v3721
  %3724 = vrot.lane.b32.xlu0 %v3722, 64
  %v3725 = vpop.permute.xlu0 %3724
  %v3727 = vmul.f32 %v3710, %v3725
  %3728 = vmatprep.subr.mxu0 0.0
  %3729 = vmatpush1.msra.mxu0 %v13
  %3730 = vmatprep.subr.mxu0 0.0
  %3731 = vmatpush1.msra.mxu0 %v14
  %3732 = vmatprep.subr.mxu0 0.0
  %3733 = vmatpush1.msra.mxu0 %v15
  %3734 = vmatprep.subr.mxu0 0.0
  %3735 = vmatpush1.msra.mxu0 %v16
  %3736 = vmatprep.subr.mxu0 0.0
  %3737 = vmatpush1.msra.mxu0 0.0
  %3738 = vmatprep.subr.mxu0 0.0
  %3739 = vmatpush1.msra.mxu0 0.0
  %3740 = vmatprep.subr.mxu0 0.0
  %3741 = vmatpush1.msra.mxu0 0.0
  %3742 = vmatprep.subr.mxu0 0.0
  %3743 = vmatpush1.msra.mxu0 0.0
  %3744 = vmatprep.subr.mxu0 0.0
  %3745 = vmatpush1.msra.mxu0 0.0
  %3746 = vmatprep.subr.mxu0 0.0
  %3747 = vmatpush1.msra.mxu0 0.0
  %3748 = vmatprep.subr.mxu0 0.0
  %3749 = vmatpush1.msra.mxu0 0.0
  %3750 = vmatprep.subr.mxu0 0.0
  %3751 = vmatpush1.msra.mxu0 0.0
  %3752 = vmatprep.subr.mxu0 0.0
  %3753 = vmatpush1.msra.mxu0 0.0
  %3754 = vmatprep.subr.mxu0 0.0
  %3755 = vmatpush1.msra.mxu0 0.0
  %3756 = vmatprep.subr.mxu0 0.0
  %3757 = vmatpush1.msra.mxu0 0.0
  %3758 = vmatprep.subr.mxu0 0.0
  %3759 = vmatpush1.msra.mxu0 0.0
  %3760 = vmatprep.subr.mxu0 0.0
  %3761 = vmatpush1.msra.mxu0 0.0
  %3762 = vmatprep.subr.mxu0 0.0
  %3763 = vmatpush1.msra.mxu0 0.0
  %3764 = vmatprep.subr.mxu0 0.0
  %3765 = vmatpush1.msra.mxu0 0.0
  %3766 = vmatprep.subr.mxu0 0.0
  %3767 = vmatpush1.msra.mxu0 0.0
  %3768 = vmatprep.subr.mxu0 0.0
  %3769 = vmatpush1.msra.mxu0 0.0
  %3770 = vmatprep.subr.mxu0 0.0
  %3771 = vmatpush1.msra.mxu0 0.0
  %3772 = vmatprep.subr.mxu0 0.0
  %3773 = vmatpush1.msra.mxu0 0.0
  %3774 = vmatprep.subr.mxu0 0.0
  %3775 = vmatpush1.msra.mxu0 0.0
  %3776 = vmatprep.subr.mxu0 0.0
  %3777 = vmatpush1.msra.mxu0 0.0
  %3778 = vmatprep.subr.mxu0 0.0
  %3779 = vmatpush1.msra.mxu0 0.0
  %3780 = vmatprep.subr.mxu0 0.0
  %3781 = vmatpush1.msra.mxu0 0.0
  %3782 = vmatprep.subr.mxu0 0.0
  %3783 = vmatpush1.msra.mxu0 0.0
  %3784 = vmatprep.subr.mxu0 0.0
  %3785 = vmatpush1.msra.mxu0 0.0
  %3786 = vmatprep.subr.mxu0 0.0
  %3787 = vmatpush1.msra.mxu0 0.0
  %3788 = vmatprep.subr.mxu0 0.0
  %3789 = vmatpush1.msra.mxu0 0.0
  %3790 = vmatprep.subr.mxu0 0.0
  %3791 = vmatpush1.msra.mxu0 0.0
  %3792 = vmatprep.mubr.f32.mxu0 0.0
  %3793 = vmatmul.mubr.f32.gmra.mrb[0].mxu0 %v3559
  %v3794 = vpop.f32.mrb[0].mxu0
  %v3795 = vadd.f32 0.0, %v3794
  %v3796 = vpop.f32.mrb[0].mxu0
  %3797 = vdwg.mxu0
  %v3798 = vadd.f32 %v413, %v3795
  %v3799 = vmul.f32 %v3798, %v429
  %v3800 = vtanh.pop %v3799
  %v3801 = vmul.f32 %v3800, %v435
  %v3802 = vadd.f32 %v3801, %v440
  %v3803 = vmul.f32 %v3802, %v3549
  %3805 = vrot.lane.b32.xlu0 %v3802, 64
  %v3806 = vpop.permute.xlu0 %3805
  %v3808 = vmul.f32 %v3802, %v3806
  %3810 = vrot.lane.b32.xlu0 %v3808, 32
  %v3811 = vpop.permute.xlu0 %3810
  %v3813 = vadd.f32 %v3803, %v3811
  %v3814 = vtanh.pop %v3813
  %3816 = vrot.lane.b32.xlu0 %v3814, 64
  %v3817 = vpop.permute.xlu0 %3816
  %v3819 = vmul.f32 %v3802, %v3817
  %3821 = vrot.lane.b32.xlu0 %v3819, 32
  %v3822 = vpop.permute.xlu0 %3821
  %v3823 = vsel %vm466, %v3822, 0
  %3825 = vmatprep.subr.mxu0 0.0
  %3826 = vmatpush1.msra.mxu0 %v18
  %3827 = vmatprep.subr.mxu0 0.0
  %3828 = vmatpush1.msra.mxu0 %v19
  %3829 = vmatprep.subr.mxu0 0.0
  %3830 = vmatpush1.msra.mxu0 %v20
  %3831 = vmatprep.subr.mxu0 0.0
  %3832 = vmatpush1.msra.mxu0 %v21
  %3833 = vmatprep.subr.mxu0 0.0
  %3834 = vmatpush1.msra.mxu0 0.0
  %3835 = vmatprep.subr.mxu0 0.0
  %3836 = vmatpush1.msra.mxu0 0.0
  %3837 = vmatprep.subr.mxu0 0.0
  %3838 = vmatpush1.msra.mxu0 0.0
  %3839 = vmatprep.subr.mxu0 0.0
  %3840 = vmatpush1.msra.mxu0 0.0
  %3841 = vmatprep.subr.mxu0 0.0
  %3842 = vmatpush1.msra.mxu0 0.0
  %3843 = vmatprep.subr.mxu0 0.0
  %3844 = vmatpush1.msra.mxu0 0.0
  %3845 = vmatprep.subr.mxu0 0.0
  %3846 = vmatpush1.msra.mxu0 0.0
  %3847 = vmatprep.subr.mxu0 0.0
  %3848 = vmatpush1.msra.mxu0 0.0
  %3849 = vmatprep.subr.mxu0 0.0
  %3850 = vmatpush1.msra.mxu0 0.0
  %3851 = vmatprep.subr.mxu0 0.0
  %3852 = vmatpush1.msra.mxu0 0.0
  %3853 = vmatprep.subr.mxu0 0.0
  %3854 = vmatpush1.msra.mxu0 0.0
  %3855 = vmatprep.subr.mxu0 0.0
  %3856 = vmatpush1.msra.mxu0 0.0
  %3857 = vmatprep.subr.mxu0 0.0
  %3858 = vmatpush1.msra.mxu0 0.0
  %3859 = vmatprep.subr.mxu0 0.0
  %3860 = vmatpush1.msra.mxu0 0.0
  %3861 = vmatprep.subr.mxu0 0.0
  %3862 = vmatpush1.msra.mxu0 0.0
  %3863 = vmatprep.subr.mxu0 0.0
  %3864 = vmatpush1.msra.mxu0 0.0
  %3865 = vmatprep.subr.mxu0 0.0
  %3866 = vmatpush1.msra.mxu0 0.0
  %3867 = vmatprep.subr.mxu0 0.0
  %3868 = vmatpush1.msra.mxu0 0.0
  %3869 = vmatprep.subr.mxu0 0.0
  %3870 = vmatpush1.msra.mxu0 0.0
  %3871 = vmatprep.subr.mxu0 0.0
  %3872 = vmatpush1.msra.mxu0 0.0
  %3873 = vmatprep.subr.mxu0 0.0
  %3874 = vmatpush1.msra.mxu0 0.0
  %3875 = vmatprep.subr.mxu0 0.0
  %3876 = vmatpush1.msra.mxu0 0.0
  %3877 = vmatprep.subr.mxu0 0.0
  %3878 = vmatpush1.msra.mxu0 0.0
  %3879 = vmatprep.subr.mxu0 0.0
  %3880 = vmatpush1.msra.mxu0 0.0
  %3881 = vmatprep.subr.mxu0 0.0
  %3882 = vmatpush1.msra.mxu0 0.0
  %3883 = vmatprep.subr.mxu0 0.0
  %3884 = vmatpush1.msra.mxu0 0.0
  %3885 = vmatprep.subr.mxu0 0.0
  %3886 = vmatpush1.msra.mxu0 0.0
  %3887 = vmatprep.subr.mxu0 0.0
  %3888 = vmatpush1.msra.mxu0 0.0
  %3889 = vmatprep.mubr.f32.mxu0 0.0
  %3890 = vmatmul.mubr.f32.gmra.mrb[0].mxu0 %v3823
  %v3891 = vpop.f32.mrb[0].mxu0
  %v3892 = vadd.f32 %v462, %v3891
  %v3893 = vpop.f32.mrb[0].mxu0
  %3894 = vdwg.mxu0
  %3896 = vrot.lane.b32.xlu0 %v3727, 32
  %v3897 = vpop.permute.xlu0 %3896
  %v3898 = vsel %vm466, %v3897, 0
  %3900 = vmatprep.subr.mxu0 0.0
  %3901 = vmatpush1.msra.mxu0 %v22
  %3902 = vmatprep.subr.mxu0 0.0
  %3903 = vmatpush1.msra.mxu0 %v23
  %3904 = vmatprep.subr.mxu0 0.0
  %3905 = vmatpush1.msra.mxu0 %v24
  %3906 = vmatprep.subr.mxu0 0.0
  %3907 = vmatpush1.msra.mxu0 %v25
  %3908 = vmatprep.subr.mxu0 0.0
  %3909 = vmatpush1.msra.mxu0 0.0
  %3910 = vmatprep.subr.mxu0 0.0
  %3911 = vmatpush1.msra.mxu0 0.0
  %3912 = vmatprep.subr.mxu0 0.0
  %3913 = vmatpush1.msra.mxu0 0.0
  %3914 = vmatprep.subr.mxu0 0.0
  %3915 = vmatpush1.msra.mxu0 0.0
  %3916 = vmatprep.subr.mxu0 0.0
  %3917 = vmatpush1.msra.mxu0 0.0
  %3918 = vmatprep.subr.mxu0 0.0
  %3919 = vmatpush1.msra.mxu0 0.0
  %3920 = vmatprep.subr.mxu0 0.0
  %3921 = vmatpush1.msra.mxu0 0.0
  %3922 = vmatprep.subr.mxu0 0.0
  %3923 = vmatpush1.msra.mxu0 0.0
  %3924 = vmatprep.subr.mxu0 0.0
  %3925 = vmatpush1.msra.mxu0 0.0
  %3926 = vmatprep.subr.mxu0 0.0
  %3927 = vmatpush1.msra.mxu0 0.0
  %3928 = vmatprep.subr.mxu0 0.0
  %3929 = vmatpush1.msra.mxu0 0.0
  %3930 = vmatprep.subr.mxu0 0.0
  %3931 = vmatpush1.msra.mxu0 0.0
  %3932 = vmatprep.subr.mxu0 0.0
  %3933 = vmatpush1.msra.mxu0 0.0
  %3934 = vmatprep.subr.mxu0 0.0
  %3935 = vmatpush1.msra.mxu0 0.0
  %3936 = vmatprep.subr.mxu0 0.0
  %3937 = vmatpush1.msra.mxu0 0.0
  %3938 = vmatprep.subr.mxu0 0.0
  %3939 = vmatpush1.msra.mxu0 0.0
  %3940 = vmatprep.subr.mxu0 0.0
  %3941 = vmatpush1.msra.mxu0 0.0
  %3942 = vmatprep.subr.mxu0 0.0
  %3943 = vmatpush1.msra.mxu0 0.0
  %3944 = vmatprep.subr.mxu0 0.0
  %3945 = vmatpush1.msra.mxu0 0.0
  %3946 = vmatprep.subr.mxu0 0.0
  %3947 = vmatpush1.msra.mxu0 0.0
  %3948 = vmatprep.subr.mxu0 0.0
  %3949 = vmatpush1.msra.mxu0 0.0
  %3950 = vmatprep.subr.mxu0 0.0
  %3951 = vmatpush1.msra.mxu0 0.0
  %3952 = vmatprep.subr.mxu0 0.0
  %3953 = vmatpush1.msra.mxu0 0.0
  %3954 = vmatprep.subr.mxu0 0.0
  %3955 = vmatpush1.msra.mxu0 0.0
  %3956 = vmatprep.subr.mxu0 0.0
  %3957 = vmatpush1.msra.mxu0 0.0
  %3958 = vmatprep.subr.mxu0 0.0
  %3959 = vmatpush1.msra.mxu0 0.0
  %3960 = vmatprep.subr.mxu0 0.0
  %3961 = vmatpush1.msra.mxu0 0.0
  %3962 = vmatprep.subr.mxu0 0.0
  %3963 = vmatpush1.msra.mxu0 0.0
  %3964 = vmatprep.mubr.f32.mxu0 0.0
  %3965 = vmatmul.mubr.f32.gmra.mrb[0].mxu0 %v3898
  %v3966 = vpop.f32.mrb[0].mxu0
  %v3967 = vadd.f32 0.0, %v3966
  %v3968 = vpop.f32.mrb[0].mxu0
  %3969 = vdwg.mxu0
  %v3970 = vadd.f32 %v3892, %v3967
  %v3971 = vmul.f32 %v3970, %v429
  %v3972 = vtanh.pop %v3971
  %v3973 = vmul.f32 %v3972, %v435
  %v3974 = vadd.f32 %v3973, %v440
  %v3975 = vmul.f32 %v3974, %v3721
  %3977 = vrot.lane.b32.xlu0 %v3974, 64
  %v3978 = vpop.permute.xlu0 %3977
  %v3980 = vmul.f32 %v3974, %v3978
  %3982 = vrot.lane.b32.xlu0 %v3980, 32
  %v3983 = vpop.permute.xlu0 %3982
  %v3985 = vadd.f32 %v3975, %v3983
  %v3986 = vtanh.pop %v3985
  %3988 = vrot.lane.b32.xlu0 %v3986, 64
  %v3989 = vpop.permute.xlu0 %3988
  %v3991 = vmul.f32 %v3974, %v3989
  %3992 = vmatprep.subr.mxu0 0.0
  %3993 = vmatpush1.msra.mxu0 %v13
  %3994 = vmatprep.subr.mxu0 0.0
  %3995 = vmatpush1.msra.mxu0 %v14
  %3996 = vmatprep.subr.mxu0 0.0
  %3997 = vmatpush1.msra.mxu0 %v15
  %3998 = vmatprep.subr.mxu0 0.0
  %3999 = vmatpush1.msra.mxu0 %v16
  %4000 = vmatprep.subr.mxu0 0.0
  %4001 = vmatpush1.msra.mxu0 0.0
  %4002 = vmatprep.subr.mxu0 0.0
  %4003 = vmatpush1.msra.mxu0 0.0
  %4004 = vmatprep.subr.mxu0 0.0
  %4005 = vmatpush1.msra.mxu0 0.0
  %4006 = vmatprep.subr.mxu0 0.0
  %4007 = vmatpush1.msra.mxu0 0.0
  %4008 = vmatprep.subr.mxu0 0.0
  %4009 = vmatpush1.msra.mxu0 0.0
  %4010 = vmatprep.subr.mxu0 0.0
  %4011 = vmatpush1.msra.mxu0 0.0
  %4012 = vmatprep.subr.mxu0 0.0
  %4013 = vmatpush1.msra.mxu0 0.0
  %4014 = vmatprep.subr.mxu0 0.0
  %4015 = vmatpush1.msra.mxu0 0.0
  %4016 = vmatprep.subr.mxu0 0.0
  %4017 = vmatpush1.msra.mxu0 0.0
  %4018 = vmatprep.subr.mxu0 0.0
  %4019 = vmatpush1.msra.mxu0 0.0
  %4020 = vmatprep.subr.mxu0 0.0
  %4021 = vmatpush1.msra.mxu0 0.0
  %4022 = vmatprep.subr.mxu0 0.0
  %4023 = vmatpush1.msra.mxu0 0.0
  %4024 = vmatprep.subr.mxu0 0.0
  %4025 = vmatpush1.msra.mxu0 0.0
  %4026 = vmatprep.subr.mxu0 0.0
  %4027 = vmatpush1.msra.mxu0 0.0
  %4028 = vmatprep.subr.mxu0 0.0
  %4029 = vmatpush1.msra.mxu0 0.0
  %4030 = vmatprep.subr.mxu0 0.0
  %4031 = vmatpush1.msra.mxu0 0.0
  %4032 = vmatprep.subr.mxu0 0.0
  %4033 = vmatpush1.msra.mxu0 0.0
  %4034 = vmatprep.subr.mxu0 0.0
  %4035 = vmatpush1.msra.mxu0 0.0
  %4036 = vmatprep.subr.mxu0 0.0
  %4037 = vmatpush1.msra.mxu0 0.0
  %4038 = vmatprep.subr.mxu0 0.0
  %4039 = vmatpush1.msra.mxu0 0.0
  %4040 = vmatprep.subr.mxu0 0.0
  %4041 = vmatpush1.msra.mxu0 0.0
  %4042 = vmatprep.subr.mxu0 0.0
  %4043 = vmatpush1.msra.mxu0 0.0
  %4044 = vmatprep.subr.mxu0 0.0
  %4045 = vmatpush1.msra.mxu0 0.0
  %4046 = vmatprep.subr.mxu0 0.0
  %4047 = vmatpush1.msra.mxu0 0.0
  %4048 = vmatprep.subr.mxu0 0.0
  %4049 = vmatpush1.msra.mxu0 0.0
  %4050 = vmatprep.subr.mxu0 0.0
  %4051 = vmatpush1.msra.mxu0 0.0
  %4052 = vmatprep.subr.mxu0 0.0
  %4053 = vmatpush1.msra.mxu0 0.0
  %4054 = vmatprep.subr.mxu0 0.0
  %4055 = vmatpush1.msra.mxu0 0.0
  %4056 = vmatprep.mubr.f32.mxu0 0.0
  %4057 = vmatmul.mubr.f32.gmra.mrb[0].mxu0 %v3823
  %v4058 = vpop.f32.mrb[0].mxu0
  %v4059 = vadd.f32 0.0, %v4058
  %v4060 = vpop.f32.mrb[0].mxu0
  %4061 = vdwg.mxu0
  %v4062 = vadd.f32 %v418, %v4059
  %v4063 = vmul.f32 %v4062, %v429
  %v4064 = vtanh.pop %v4063
  %v4065 = vmul.f32 %v4064, %v435
  %v4066 = vadd.f32 %v4065, %v440
  %v4067 = vmul.f32 %v4066, %v3813
  %4069 = vrot.lane.b32.xlu0 %v4066, 64
  %v4070 = vpop.permute.xlu0 %4069
  %v4072 = vmul.f32 %v4066, %v4070
  %4074 = vrot.lane.b32.xlu0 %v4072, 32
  %v4075 = vpop.permute.xlu0 %4074
  %v4077 = vadd.f32 %v4067, %v4075
  %v4078 = vtanh.pop %v4077
  %4080 = vrot.lane.b32.xlu0 %v4078, 64
  %v4081 = vpop.permute.xlu0 %4080
  %v4083 = vmul.f32 %v4066, %v4081
  %4085 = vrot.lane.b32.xlu0 %v4083, 32
  %v4086 = vpop.permute.xlu0 %4085
  %v4087 = vsel %vm466, %v4086, 0
  %4089 = vmatprep.subr.mxu0 0.0
  %4090 = vmatpush1.msra.mxu0 %v18
  %4091 = vmatprep.subr.mxu0 0.0
  %4092 = vmatpush1.msra.mxu0 %v19
  %4093 = vmatprep.subr.mxu0 0.0
  %4094 = vmatpush1.msra.mxu0 %v20
  %4095 = vmatprep.subr.mxu0 0.0
  %4096 = vmatpush1.msra.mxu0 %v21
  %4097 = vmatprep.subr.mxu0 0.0
  %4098 = vmatpush1.msra.mxu0 0.0
  %4099 = vmatprep.subr.mxu0 0.0
  %4100 = vmatpush1.msra.mxu0 0.0
  %4101 = vmatprep.subr.mxu0 0.0
  %4102 = vmatpush1.msra.mxu0 0.0
  %4103 = vmatprep.subr.mxu0 0.0
  %4104 = vmatpush1.msra.mxu0 0.0
  %4105 = vmatprep.subr.mxu0 0.0
  %4106 = vmatpush1.msra.mxu0 0.0
  %4107 = vmatprep.subr.mxu0 0.0
  %4108 = vmatpush1.msra.mxu0 0.0
  %4109 = vmatprep.subr.mxu0 0.0
  %4110 = vmatpush1.msra.mxu0 0.0
  %4111 = vmatprep.subr.mxu0 0.0
  %4112 = vmatpush1.msra.mxu0 0.0
  %4113 = vmatprep.subr.mxu0 0.0
  %4114 = vmatpush1.msra.mxu0 0.0
  %4115 = vmatprep.subr.mxu0 0.0
  %4116 = vmatpush1.msra.mxu0 0.0
  %4117 = vmatprep.subr.mxu0 0.0
  %4118 = vmatpush1.msra.mxu0 0.0
  %4119 = vmatprep.subr.mxu0 0.0
  %4120 = vmatpush1.msra.mxu0 0.0
  %4121 = vmatprep.subr.mxu0 0.0
  %4122 = vmatpush1.msra.mxu0 0.0
  %4123 = vmatprep.subr.mxu0 0.0
  %4124 = vmatpush1.msra.mxu0 0.0
  %4125 = vmatprep.subr.mxu0 0.0
  %4126 = vmatpush1.msra.mxu0 0.0
  %4127 = vmatprep.subr.mxu0 0.0
  %4128 = vmatpush1.msra.mxu0 0.0
  %4129 = vmatprep.subr.mxu0 0.0
  %4130 = vmatpush1.msra.mxu0 0.0
  %4131 = vmatprep.subr.mxu0 0.0
  %4132 = vmatpush1.msra.mxu0 0.0
  %4133 = vmatprep.subr.mxu0 0.0
  %4134 = vmatpush1.msra.mxu0 0.0
  %4135 = vmatprep.subr.mxu0 0.0
  %4136 = vmatpush1.msra.mxu0 0.0
  %4137 = vmatprep.subr.mxu0 0.0
  %4138 = vmatpush1.msra.mxu0 0.0
  %4139 = vmatprep.subr.mxu0 0.0
  %4140 = vmatpush1.msra.mxu0 0.0
  %4141 = vmatprep.subr.mxu0 0.0
  %4142 = vmatpush1.msra.mxu0 0.0
  %4143 = vmatprep.subr.mxu0 0.0
  %4144 = vmatpush1.msra.mxu0 0.0
  %4145 = vmatprep.subr.mxu0 0.0
  %4146 = vmatpush1.msra.mxu0 0.0
  %4147 = vmatprep.subr.mxu0 0.0
  %4148 = vmatpush1.msra.mxu0 0.0
  %4149 = vmatprep.subr.mxu0 0.0
  %4150 = vmatpush1.msra.mxu0 0.0
  %4151 = vmatprep.subr.mxu0 0.0
  %4152 = vmatpush1.msra.mxu0 0.0
  %4153 = vmatprep.mubr.f32.mxu0 0.0
  %4154 = vmatmul.mubr.f32.gmra.mrb[0].mxu0 %v4087
  %v4155 = vpop.f32.mrb[0].mxu0
  %v4156 = vadd.f32 %v462, %v4155
  %v4157 = vpop.f32.mrb[0].mxu0
  %4158 = vdwg.mxu0
  %4160 = vrot.lane.b32.xlu0 %v3991, 32
  %v4161 = vpop.permute.xlu0 %4160
  %v4162 = vsel %vm466, %v4161, 0
  %4164 = vmatprep.subr.mxu0 0.0
  %4165 = vmatpush1.msra.mxu0 %v22
  %4166 = vmatprep.subr.mxu0 0.0
  %4167 = vmatpush1.msra.mxu0 %v23
  %4168 = vmatprep.subr.mxu0 0.0
  %4169 = vmatpush1.msra.mxu0 %v24
  %4170 = vmatprep.subr.mxu0 0.0
  %4171 = vmatpush1.msra.mxu0 %v25
  %4172 = vmatprep.subr.mxu0 0.0
  %4173 = vmatpush1.msra.mxu0 0.0
  %4174 = vmatprep.subr.mxu0 0.0
  %4175 = vmatpush1.msra.mxu0 0.0
  %4176 = vmatprep.subr.mxu0 0.0
  %4177 = vmatpush1.msra.mxu0 0.0
  %4178 = vmatprep.subr.mxu0 0.0
  %4179 = vmatpush1.msra.mxu0 0.0
  %4180 = vmatprep.subr.mxu0 0.0
  %4181 = vmatpush1.msra.mxu0 0.0
  %4182 = vmatprep.subr.mxu0 0.0
  %4183 = vmatpush1.msra.mxu0 0.0
  %4184 = vmatprep.subr.mxu0 0.0
  %4185 = vmatpush1.msra.mxu0 0.0
  %4186 = vmatprep.subr.mxu0 0.0
  %4187 = vmatpush1.msra.mxu0 0.0
  %4188 = vmatprep.subr.mxu0 0.0
  %4189 = vmatpush1.msra.mxu0 0.0
  %4190 = vmatprep.subr.mxu0 0.0
  %4191 = vmatpush1.msra.mxu0 0.0
  %4192 = vmatprep.subr.mxu0 0.0
  %4193 = vmatpush1.msra.mxu0 0.0
  %4194 = vmatprep.subr.mxu0 0.0
  %4195 = vmatpush1.msra.mxu0 0.0
  %4196 = vmatprep.subr.mxu0 0.0
  %4197 = vmatpush1.msra.mxu0 0.0
  %4198 = vmatprep.subr.mxu0 0.0
  %4199 = vmatpush1.msra.mxu0 0.0
  %4200 = vmatprep.subr.mxu0 0.0
  %4201 = vmatpush1.msra.mxu0 0.0
  %4202 = vmatprep.subr.mxu0 0.0
  %4203 = vmatpush1.msra.mxu0 0.0
  %4204 = vmatprep.subr.mxu0 0.0
  %4205 = vmatpush1.msra.mxu0 0.0
  %4206 = vmatprep.subr.mxu0 0.0
  %4207 = vmatpush1.msra.mxu0 0.0
  %4208 = vmatprep.subr.mxu0 0.0
  %4209 = vmatpush1.msra.mxu0 0.0
  %4210 = vmatprep.subr.mxu0 0.0
  %4211 = vmatpush1.msra.mxu0 0.0
  %4212 = vmatprep.subr.mxu0 0.0
  %4213 = vmatpush1.msra.mxu0 0.0
  %4214 = vmatprep.subr.mxu0 0.0
  %4215 = vmatpush1.msra.mxu0 0.0
  %4216 = vmatprep.subr.mxu0 0.0
  %4217 = vmatpush1.msra.mxu0 0.0
  %4218 = vmatprep.subr.mxu0 0.0
  %4219 = vmatpush1.msra.mxu0 0.0
  %4220 = vmatprep.subr.mxu0 0.0
  %4221 = vmatpush1.msra.mxu0 0.0
  %4222 = vmatprep.subr.mxu0 0.0
  %4223 = vmatpush1.msra.mxu0 0.0
  %4224 = vmatprep.subr.mxu0 0.0
  %4225 = vmatpush1.msra.mxu0 0.0
  %4226 = vmatprep.subr.mxu0 0.0
  %4227 = vmatpush1.msra.mxu0 0.0
  %4228 = vmatprep.mubr.f32.mxu0 0.0
  %4229 = vmatmul.mubr.f32.gmra.mrb[0].mxu0 %v4162
  %v4230 = vpop.f32.mrb[0].mxu0
  %v4231 = vadd.f32 0.0, %v4230
  %v4232 = vpop.f32.mrb[0].mxu0
  %4233 = vdwg.mxu0
  %v4234 = vadd.f32 %v4156, %v4231
  %v4235 = vmul.f32 %v4234, %v429
  %v4236 = vtanh.pop %v4235
  %v4237 = vmul.f32 %v4236, %v435
  %v4238 = vadd.f32 %v4237, %v440
  %v4239 = vmul.f32 %v4238, %v3985
  %4241 = vrot.lane.b32.xlu0 %v4238, 64
  %v4242 = vpop.permute.xlu0 %4241
  %v4244 = vmul.f32 %v4238, %v4242
  %4246 = vrot.lane.b32.xlu0 %v4244, 32
  %v4247 = vpop.permute.xlu0 %4246
  %v4249 = vadd.f32 %v4239, %v4247
  %v4250 = vtanh.pop %v4249
  %4252 = vrot.lane.b32.xlu0 %v4250, 64
  %v4253 = vpop.permute.xlu0 %4252
  %v4255 = vmul.f32 %v4238, %v4253
  %4256 = vmatprep.subr.mxu0 0.0
  %4257 = vmatpush1.msra.mxu0 %v13
  %4258 = vmatprep.subr.mxu0 0.0
  %4259 = vmatpush1.msra.mxu0 %v14
  %4260 = vmatprep.subr.mxu0 0.0
  %4261 = vmatpush1.msra.mxu0 %v15
  %4262 = vmatprep.subr.mxu0 0.0
  %4263 = vmatpush1.msra.mxu0 %v16
  %4264 = vmatprep.subr.mxu0 0.0
  %4265 = vmatpush1.msra.mxu0 0.0
  %4266 = vmatprep.subr.mxu0 0.0
  %4267 = vmatpush1.msra.mxu0 0.0
  %4268 = vmatprep.subr.mxu0 0.0
  %4269 = vmatpush1.msra.mxu0 0.0
  %4270 = vmatprep.subr.mxu0 0.0
  %4271 = vmatpush1.msra.mxu0 0.0
  %4272 = vmatprep.subr.mxu0 0.0
  %4273 = vmatpush1.msra.mxu0 0.0
  %4274 = vmatprep.subr.mxu0 0.0
  %4275 = vmatpush1.msra.mxu0 0.0
  %4276 = vmatprep.subr.mxu0 0.0
  %4277 = vmatpush1.msra.mxu0 0.0
  %4278 = vmatprep.subr.mxu0 0.0
  %4279 = vmatpush1.msra.mxu0 0.0
  %4280 = vmatprep.subr.mxu0 0.0
  %4281 = vmatpush1.msra.mxu0 0.0
  %4282 = vmatprep.subr.mxu0 0.0
  %4283 = vmatpush1.msra.mxu0 0.0
  %4284 = vmatprep.subr.mxu0 0.0
  %4285 = vmatpush1.msra.mxu0 0.0
  %4286 = vmatprep.subr.mxu0 0.0
  %4287 = vmatpush1.msra.mxu0 0.0
  %4288 = vmatprep.subr.mxu0 0.0
  %4289 = vmatpush1.msra.mxu0 0.0
  %4290 = vmatprep.subr.mxu0 0.0
  %4291 = vmatpush1.msra.mxu0 0.0
  %4292 = vmatprep.subr.mxu0 0.0
  %4293 = vmatpush1.msra.mxu0 0.0
  %4294 = vmatprep.subr.mxu0 0.0
  %4295 = vmatpush1.msra.mxu0 0.0
  %4296 = vmatprep.subr.mxu0 0.0
  %4297 = vmatpush1.msra.mxu0 0.0
  %4298 = vmatprep.subr.mxu0 0.0
  %4299 = vmatpush1.msra.mxu0 0.0
  %4300 = vmatprep.subr.mxu0 0.0
  %4301 = vmatpush1.msra.mxu0 0.0
  %4302 = vmatprep.subr.mxu0 0.0
  %4303 = vmatpush1.msra.mxu0 0.0
  %4304 = vmatprep.subr.mxu0 0.0
  %4305 = vmatpush1.msra.mxu0 0.0
  %4306 = vmatprep.subr.mxu0 0.0
  %4307 = vmatpush1.msra.mxu0 0.0
  %4308 = vmatprep.subr.mxu0 0.0
  %4309 = vmatpush1.msra.mxu0 0.0
  %4310 = vmatprep.subr.mxu0 0.0
  %4311 = vmatpush1.msra.mxu0 0.0
  %4312 = vmatprep.subr.mxu0 0.0
  %4313 = vmatpush1.msra.mxu0 0.0
  %4314 = vmatprep.subr.mxu0 0.0
  %4315 = vmatpush1.msra.mxu0 0.0
  %4316 = vmatprep.subr.mxu0 0.0
  %4317 = vmatpush1.msra.mxu0 0.0
  %4318 = vmatprep.subr.mxu0 0.0
  %4319 = vmatpush1.msra.mxu0 0.0
  %4320 = vmatprep.mubr.f32.mxu0 0.0
  %4321 = vmatmul.mubr.f32.gmra.mrb[0].mxu0 %v4087
  %v4322 = vpop.f32.mrb[0].mxu0
  %v4323 = vadd.f32 0.0, %v4322
  %v4324 = vpop.f32.mrb[0].mxu0
  %4325 = vdwg.mxu0
  %v4326 = vadd.f32 %v423, %v4323
  %v4327 = vmul.f32 %v4326, %v429
  %v4328 = vtanh.pop %v4327
  %v4329 = vmul.f32 %v4328, %v435
  %v4330 = vadd.f32 %v4329, %v440
  %v4331 = vmul.f32 %v4330, %v4077
  %4333 = vrot.lane.b32.xlu0 %v4330, 64
  %v4334 = vpop.permute.xlu0 %4333
  %v4336 = vmul.f32 %v4330, %v4334
  %4338 = vrot.lane.b32.xlu0 %v4336, 32
  %v4339 = vpop.permute.xlu0 %4338
  %v4341 = vadd.f32 %v4331, %v4339
  %v4342 = vtanh.pop %v4341
  %4344 = vrot.lane.b32.xlu0 %v4342, 64
  %v4345 = vpop.permute.xlu0 %4344
  %v4347 = vmul.f32 %v4330, %v4345
  %4349 = vrot.lane.b32.xlu0 %v4347, 32
  %v4350 = vpop.permute.xlu0 %4349
  %v4351 = vsel %vm466, %v4350, 0
  %4353 = vmatprep.subr.mxu0 0.0
  %4354 = vmatpush1.msra.mxu0 %v18
  %4355 = vmatprep.subr.mxu0 0.0
  %4356 = vmatpush1.msra.mxu0 %v19
  %4357 = vmatprep.subr.mxu0 0.0
  %4358 = vmatpush1.msra.mxu0 %v20
  %4359 = vmatprep.subr.mxu0 0.0
  %4360 = vmatpush1.msra.mxu0 %v21
  %4361 = vmatprep.subr.mxu0 0.0
  %4362 = vmatpush1.msra.mxu0 0.0
  %4363 = vmatprep.subr.mxu0 0.0
  %4364 = vmatpush1.msra.mxu0 0.0
  %4365 = vmatprep.subr.mxu0 0.0
  %4366 = vmatpush1.msra.mxu0 0.0
  %4367 = vmatprep.subr.mxu0 0.0
  %4368 = vmatpush1.msra.mxu0 0.0
  %4369 = vmatprep.subr.mxu0 0.0
  %4370 = vmatpush1.msra.mxu0 0.0
  %4371 = vmatprep.subr.mxu0 0.0
  %4372 = vmatpush1.msra.mxu0 0.0
  %4373 = vmatprep.subr.mxu0 0.0
  %4374 = vmatpush1.msra.mxu0 0.0
  %4375 = vmatprep.subr.mxu0 0.0
  %4376 = vmatpush1.msra.mxu0 0.0
  %4377 = vmatprep.subr.mxu0 0.0
  %4378 = vmatpush1.msra.mxu0 0.0
  %4379 = vmatprep.subr.mxu0 0.0
  %4380 = vmatpush1.msra.mxu0 0.0
  %4381 = vmatprep.subr.mxu0 0.0
  %4382 = vmatpush1.msra.mxu0 0.0
  %4383 = vmatprep.subr.mxu0 0.0
  %4384 = vmatpush1.msra.mxu0 0.0
  %4385 = vmatprep.subr.mxu0 0.0
  %4386 = vmatpush1.msra.mxu0 0.0
  %4387 = vmatprep.subr.mxu0 0.0
  %4388 = vmatpush1.msra.mxu0 0.0
  %4389 = vmatprep.subr.mxu0 0.0
  %4390 = vmatpush1.msra.mxu0 0.0
  %4391 = vmatprep.subr.mxu0 0.0
  %4392 = vmatpush1.msra.mxu0 0.0
  %4393 = vmatprep.subr.mxu0 0.0
  %4394 = vmatpush1.msra.mxu0 0.0
  %4395 = vmatprep.subr.mxu0 0.0
  %4396 = vmatpush1.msra.mxu0 0.0
  %4397 = vmatprep.subr.mxu0 0.0
  %4398 = vmatpush1.msra.mxu0 0.0
  %4399 = vmatprep.subr.mxu0 0.0
  %4400 = vmatpush1.msra.mxu0 0.0
  %4401 = vmatprep.subr.mxu0 0.0
  %4402 = vmatpush1.msra.mxu0 0.0
  %4403 = vmatprep.subr.mxu0 0.0
  %4404 = vmatpush1.msra.mxu0 0.0
  %4405 = vmatprep.subr.mxu0 0.0
  %4406 = vmatpush1.msra.mxu0 0.0
  %4407 = vmatprep.subr.mxu0 0.0
  %4408 = vmatpush1.msra.mxu0 0.0
  %4409 = vmatprep.subr.mxu0 0.0
  %4410 = vmatpush1.msra.mxu0 0.0
  %4411 = vmatprep.subr.mxu0 0.0
  %4412 = vmatpush1.msra.mxu0 0.0
  %4413 = vmatprep.subr.mxu0 0.0
  %4414 = vmatpush1.msra.mxu0 0.0
  %4415 = vmatprep.subr.mxu0 0.0
  %4416 = vmatpush1.msra.mxu0 0.0
  %4417 = vmatprep.mubr.f32.mxu0 0.0
  %4418 = vmatmul.mubr.f32.gmra.mrb[0].mxu0 %v4351
  %v4419 = vpop.f32.mrb[0].mxu0
  %v4420 = vadd.f32 %v462, %v4419
  %v4421 = vpop.f32.mrb[0].mxu0
  %4422 = vdwg.mxu0
  %4424 = vrot.lane.b32.xlu0 %v4255, 32
  %v4425 = vpop.permute.xlu0 %4424
  %v4426 = vsel %vm466, %v4425, 0
  %4428 = vmatprep.subr.mxu0 0.0
  %4429 = vmatpush1.msra.mxu0 %v22
  %4430 = vmatprep.subr.mxu0 0.0
  %4431 = vmatpush1.msra.mxu0 %v23
  %4432 = vmatprep.subr.mxu0 0.0
  %4433 = vmatpush1.msra.mxu0 %v24
  %4434 = vmatprep.subr.mxu0 0.0
  %4435 = vmatpush1.msra.mxu0 %v25
  %4436 = vmatprep.subr.mxu0 0.0
  %4437 = vmatpush1.msra.mxu0 0.0
  %4438 = vmatprep.subr.mxu0 0.0
  %4439 = vmatpush1.msra.mxu0 0.0
  %4440 = vmatprep.subr.mxu0 0.0
  %4441 = vmatpush1.msra.mxu0 0.0
  %4442 = vmatprep.subr.mxu0 0.0
  %4443 = vmatpush1.msra.mxu0 0.0
  %4444 = vmatprep.subr.mxu0 0.0
  %4445 = vmatpush1.msra.mxu0 0.0
  %4446 = vmatprep.subr.mxu0 0.0
  %4447 = vmatpush1.msra.mxu0 0.0
  %4448 = vmatprep.subr.mxu0 0.0
  %4449 = vmatpush1.msra.mxu0 0.0
  %4450 = vmatprep.subr.mxu0 0.0
  %4451 = vmatpush1.msra.mxu0 0.0
  %4452 = vmatprep.subr.mxu0 0.0
  %4453 = vmatpush1.msra.mxu0 0.0
  %4454 = vmatprep.subr.mxu0 0.0
  %4455 = vmatpush1.msra.mxu0 0.0
  %4456 = vmatprep.subr.mxu0 0.0
  %4457 = vmatpush1.msra.mxu0 0.0
  %4458 = vmatprep.subr.mxu0 0.0
  %4459 = vmatpush1.msra.mxu0 0.0
  %4460 = vmatprep.subr.mxu0 0.0
  %4461 = vmatpush1.msra.mxu0 0.0
  %4462 = vmatprep.subr.mxu0 0.0
  %4463 = vmatpush1.msra.mxu0 0.0
  %4464 = vmatprep.subr.mxu0 0.0
  %4465 = vmatpush1.msra.mxu0 0.0
  %4466 = vmatprep.subr.mxu0 0.0
  %4467 = vmatpush1.msra.mxu0 0.0
  %4468 = vmatprep.subr.mxu0 0.0
  %4469 = vmatpush1.msra.mxu0 0.0
  %4470 = vmatprep.subr.mxu0 0.0
  %4471 = vmatpush1.msra.mxu0 0.0
  %4472 = vmatprep.subr.mxu0 0.0
  %4473 = vmatpush1.msra.mxu0 0.0
  %4474 = vmatprep.subr.mxu0 0.0
  %4475 = vmatpush1.msra.mxu0 0.0
  %4476 = vmatprep.subr.mxu0 0.0
  %4477 = vmatpush1.msra.mxu0 0.0
  %4478 = vmatprep.subr.mxu0 0.0
  %4479 = vmatpush1.msra.mxu0 0.0
  %4480 = vmatprep.subr.mxu0 0.0
  %4481 = vmatpush1.msra.mxu0 0.0
  %4482 = vmatprep.subr.mxu0 0.0
  %4483 = vmatpush1.msra.mxu0 0.0
  %4484 = vmatprep.subr.mxu0 0.0
  %4485 = vmatpush1.msra.mxu0 0.0
  %4486 = vmatprep.subr.mxu0 0.0
  %4487 = vmatpush1.msra.mxu0 0.0
  %4488 = vmatprep.subr.mxu0 0.0
  %4489 = vmatpush1.msra.mxu0 0.0
  %4490 = vmatprep.subr.mxu0 0.0
  %4491 = vmatpush1.msra.mxu0 0.0
  %4492 = vmatprep.mubr.f32.mxu0 0.0
  %4493 = vmatmul.mubr.f32.gmra.mrb[0].mxu0 %v4426
  %v4494 = vpop.f32.mrb[0].mxu0
  %v4495 = vadd.f32 0.0, %v4494
  %v4496 = vpop.f32.mrb[0].mxu0
  %4497 = vdwg.mxu0
  %v4498 = vadd.f32 %v4420, %v4495
  %v4499 = vmul.f32 %v4498, %v429
  %v4500 = vtanh.pop %v4499
  %v4501 = vmul.f32 %v4500, %v435
  %v4502 = vadd.f32 %v4501, %v440
  %v4503 = vmul.f32 %v4502, %v4249
  %4505 = vrot.lane.b32.xlu0 %v4502, 64
  %v4506 = vpop.permute.xlu0 %4505
  %v4508 = vmul.f32 %v4502, %v4506
  %4510 = vrot.lane.b32.xlu0 %v4508, 32
  %v4511 = vpop.permute.xlu0 %4510
  %v4513 = vadd.f32 %v4503, %v4511
  %v4514 = vtanh.pop %v4513
  %4516 = vrot.lane.b32.xlu0 %v4514, 64
  %v4517 = vpop.permute.xlu0 %4516
  %v4519 = vmul.f32 %v4502, %v4517
  %v4520 = vlaneseq
  %v4521 = vshrl.u32 %v4520, 7
  %v4522 = vsub.s32 0, %v4521
  %v4523 = vrot.slane %v31, %v4522
  %4525 = vrot.lane.b32.xlu0 %v4519, 32
  %v4526 = vpop.permute.xlu0 %4525
  %v4527 = vsel %vm466, %v4526, 0
  %4529 = vmatprep.subr.mxu0 0.0
  %4530 = vmatpush1.msra.mxu0 %v27
  %4531 = vmatprep.subr.mxu0 0.0
  %4532 = vmatpush1.msra.mxu0 %v28
  %4533 = vmatprep.subr.mxu0 0.0
  %4534 = vmatpush1.msra.mxu0 %v29
  %4535 = vmatprep.subr.mxu0 0.0
  %4536 = vmatpush1.msra.mxu0 %v30
  %4537 = vmatprep.subr.mxu0 0.0
  %4538 = vmatpush1.msra.mxu0 0.0
  %4539 = vmatprep.subr.mxu0 0.0
  %4540 = vmatpush1.msra.mxu0 0.0
  %4541 = vmatprep.subr.mxu0 0.0
  %4542 = vmatpush1.msra.mxu0 0.0
  %4543 = vmatprep.subr.mxu0 0.0
  %4544 = vmatpush1.msra.mxu0 0.0
  %4545 = vmatprep.subr.mxu0 0.0
  %4546 = vmatpush1.msra.mxu0 0.0
  %4547 = vmatprep.subr.mxu0 0.0
  %4548 = vmatpush1.msra.mxu0 0.0
  %4549 = vmatprep.subr.mxu0 0.0
  %4550 = vmatpush1.msra.mxu0 0.0
  %4551 = vmatprep.subr.mxu0 0.0
  %4552 = vmatpush1.msra.mxu0 0.0
  %4553 = vmatprep.subr.mxu0 0.0
  %4554 = vmatpush1.msra.mxu0 0.0
  %4555 = vmatprep.subr.mxu0 0.0
  %4556 = vmatpush1.msra.mxu0 0.0
  %4557 = vmatprep.subr.mxu0 0.0
  %4558 = vmatpush1.msra.mxu0 0.0
  %4559 = vmatprep.subr.mxu0 0.0
  %4560 = vmatpush1.msra.mxu0 0.0
  %4561 = vmatprep.subr.mxu0 0.0
  %4562 = vmatpush1.msra.mxu0 0.0
  %4563 = vmatprep.subr.mxu0 0.0
  %4564 = vmatpush1.msra.mxu0 0.0
  %4565 = vmatprep.subr.mxu0 0.0
  %4566 = vmatpush1.msra.mxu0 0.0
  %4567 = vmatprep.subr.mxu0 0.0
  %4568 = vmatpush1.msra.mxu0 0.0
  %4569 = vmatprep.subr.mxu0 0.0
  %4570 = vmatpush1.msra.mxu0 0.0
  %4571 = vmatprep.subr.mxu0 0.0
  %4572 = vmatpush1.msra.mxu0 0.0
  %4573 = vmatprep.subr.mxu0 0.0
  %4574 = vmatpush1.msra.mxu0 0.0
  %4575 = vmatprep.subr.mxu0 0.0
  %4576 = vmatpush1.msra.mxu0 0.0
  %4577 = vmatprep.subr.mxu0 0.0
  %4578 = vmatpush1.msra.mxu0 0.0
  %4579 = vmatprep.subr.mxu0 0.0
  %4580 = vmatpush1.msra.mxu0 0.0
  %4581 = vmatprep.subr.mxu0 0.0
  %4582 = vmatpush1.msra.mxu0 0.0
  %4583 = vmatprep.subr.mxu0 0.0
  %4584 = vmatpush1.msra.mxu0 0.0
  %4585 = vmatprep.subr.mxu0 0.0
  %4586 = vmatpush1.msra.mxu0 0.0
  %4587 = vmatprep.subr.mxu0 0.0
  %4588 = vmatpush1.msra.mxu0 0.0
  %4589 = vmatprep.subr.mxu0 0.0
  %4590 = vmatpush1.msra.mxu0 0.0
  %4591 = vmatprep.subr.mxu0 0.0
  %4592 = vmatpush1.msra.mxu0 0.0
  %4593 = vmatprep.mubr.f32.mxu0 0.0
  %4594 = vmatmul.mubr.f32.gmra.mrb[0].mxu0 %v4527
  %v4595 = vpop.f32.mrb[0].mxu0
  %v4596 = vadd.f32 %v4523, %v4595
  %v4597 = vpop.f32.mrb[0].mxu0
  %4598 = vdwg.mxu0
  %4599 = vst [vmem:[%s2] sm:$0xff] %v4596
  // Predicated region
  $region10: #{seq_glm_forward.1} parent=0 // pred_check
    _
  $region11: #{seq_glm_forward.1} parent=0 // pred_check_branch
    %4601 = sbr.rel (0) target = $region13
  $region12: #{seq_glm_forward.1} parent=0 // pred_region
    _
  $region13: #{seq_glm_forward.1} parent=0 // pred_fallthru
    _
  // Predicated region
  $region14: #{seq_glm_forward.1} parent=0 // pred_check
    _
  $region15: #{seq_glm_forward.1} parent=0 // pred_check_branch
    %4603 = sbr.rel (0) target = $region17
  $region16: #{seq_glm_forward.1} parent=0 // pred_region
    _
  $region17: #{seq_glm_forward.1} parent=0 // pred_fallthru
    _

</llo_original>
